<compile_context>
chip_gen: v7x
topology: tpu7x:2x2x1
jax: 0.10.0
libtpu: 0.0.40
codegen_flags: <defaults>
</compile_context>

<pallas_src>
import jax
import jax.numpy as jnp
from jax.experimental import pallas as pl
from jax.experimental.pallas import tpu as pltpu


# ------------------------------ fused kernel ---------------------------------

def _lenet_kernel(x_ref,
                  wb1_ref, bc1_ref, she1_ref, sho1_ref, swe1_ref, swo1_ref,
                  wb2_ref, bc2_ref, she2_ref, sho2_ref, swe2_ref, swo2_ref,
                  w1_ref, b1_ref, w2_ref, b2_ref, w3_ref, b3_ref,
                  o_ref):
    """Whole LeNet forward for one image; all intermediates stay in VMEM.

    x_ref        : (32, 96)      input slab, row-major [h, w*3 + c], f32
    wb1_ref      : (5, 96, 168)  conv1 banded weights (one slab per ki), bf16
    bc1_ref      : (1, 168)      conv1 bias broadcast over w  ([w*6 + co]), f32
    she1/sho1    : (14, 28)      H-pool even/odd row selectors, bf16 one-hot
    swe1/swo1    : (168, 84)     W-pool even/odd column selectors, bf16 one-hot
    wb2_ref      : (5, 84, 160)  conv2 banded weights, bf16 ; bc2_ref: (1, 160)
    she2/sho2    : (5, 10) ; swe2/swo2 : (160, 80)
    w1_ref       : (5, 80, 128)  fc1 weights per pooled row h (torch flatten folded in)
    b1_ref       : (1, 128) ; w2_ref/w3_ref : (128, 128) bf16 ; b2_ref/b3_ref : (1, 128)
    o_ref        : (1, 128)      logits (first 19 lanes live)
    """
    f32, bf16 = jnp.float32, jnp.bfloat16
    x = x_ref[...]                                            # (32, 96) f32

    # ---- conv1 (5x5, 3->6): 5 shift-and-accumulate banded matmuls -----------
    acc1 = jnp.zeros((28, 168), f32)
    for ki in range(5):                                       # unrolled, static slices
        acc1 = acc1 + jnp.dot(x[ki:ki + 28, :].astype(bf16), wb1_ref[ki],
                              preferred_element_type=f32)
    y1 = jnp.maximum(acc1 + bc1_ref[...], 0.0)                # bias + ReLU (f32)
    y1b = y1.astype(bf16)

    # ---- 2x2/2 maxpool via exact one-hot selection matmuls ------------------
    hm1 = jnp.maximum(jnp.dot(she1_ref[...], y1b, preferred_element_type=f32),
                      jnp.dot(sho1_ref[...], y1b, preferred_element_type=f32))
    hm1b = hm1.astype(bf16)                                   # (14, 168), lossless
    p1 = jnp.maximum(jnp.dot(hm1b, swe1_ref[...], preferred_element_type=f32),
                     jnp.dot(hm1b, swo1_ref[...], preferred_element_type=f32))
    # p1: (14, 84) = [h, w*6 + c]

    # ---- conv2 (5x5, 6->16) --------------------------------------------------
    acc2 = jnp.zeros((10, 160), f32)
    for ki in range(5):
        acc2 = acc2 + jnp.dot(p1[ki:ki + 10, :].astype(bf16), wb2_ref[ki],
                              preferred_element_type=f32)
    y2 = jnp.maximum(acc2 + bc2_ref[...], 0.0)
    y2b = y2.astype(bf16)

    hm2 = jnp.maximum(jnp.dot(she2_ref[...], y2b, preferred_element_type=f32),
                      jnp.dot(sho2_ref[...], y2b, preferred_element_type=f32))
    hm2b = hm2.astype(bf16)                                   # (5, 160)
    p2 = jnp.maximum(jnp.dot(hm2b, swe2_ref[...], preferred_element_type=f32),
                     jnp.dot(hm2b, swo2_ref[...], preferred_element_type=f32))
    # p2: (5, 80) = [h, w*16 + c]

    # ---- fc1 -> ReLU -> fc2 -> ReLU -> fc3 (all VMEM-resident) --------------
    acc3 = jnp.zeros((1, 128), f32)
    for h in range(5):                                        # contract pooled-row dim
        acc3 = acc3 + jnp.dot(p2[h:h + 1, :].astype(bf16), w1_ref[h],
                              preferred_element_type=f32)
    h1 = jnp.maximum(acc3 + b1_ref[...], 0.0).astype(bf16)
    h2 = jnp.dot(h1, w2_ref[...], preferred_element_type=f32) + b2_ref[...]
    h2 = jnp.maximum(h2, 0.0).astype(bf16)
    o_ref[...] = jnp.dot(h2, w3_ref[...], preferred_element_type=f32) + b3_ref[...]


# -------------------------------- wrapper -------------------------------------

def _bcast_spec(arr):
    zeros = (0,) * arr.ndim
    return pl.BlockSpec(arr.shape, lambda i, z=zeros: z)


def lenet_forward_fused(x2d, p):
    """x2d: (N, 32, 96) f32 input slabs. Returns (N, 128) f32 padded logits."""
    n, hdim, wc = x2d.shape
    weights = (p["wb1"], p["bc1"], p["she1"], p["sho1"], p["swe1"], p["swo1"],
               p["wb2"], p["bc2"], p["she2"], p["sho2"], p["swe2"], p["swo2"],
               p["w1"], p["b1"], p["w2"], p["b2"], p["w3"], p["b3"])
    in_specs = [pl.BlockSpec((None, hdim, wc), lambda i: (i, 0, 0))]
    in_specs += [_bcast_spec(w) for w in weights]
    out = pl.pallas_call(
        _lenet_kernel,
        out_shape=jax.ShapeDtypeStruct((n, 1, 128), jnp.float32),
        grid=(n,),
        in_specs=in_specs,
        out_specs=pl.BlockSpec((None, 1, 128), lambda i: (i, 0, 0)),
        compiler_params=pltpu.CompilerParams(
            dimension_semantics=("parallel",)),
    )(x2d, *weights)
    return out.reshape(n, 128)


def net_forward(prepped, x_nchw):
    n = x_nchw.shape[0]
    # NCHW -> [h, w*3+c] slab per image (one tiny XLA transpose at the very input).
    x2d = jnp.transpose(x_nchw, (0, 2, 3, 1)).reshape(n, 32, 32 * 3)
    logits = lenet_forward_fused(x2d, prepped)
    return logits[:, :19]


# ------------------------------ parameters -------------------------------------

def init_params(key):
    def uniform(k, shape, fan_in):
        bound = 1.0 / jnp.sqrt(jnp.float32(fan_in))
        return jax.random.uniform(k, shape, jnp.float32, -bound, bound)

    ks = jax.random.split(key, 10)
    return {
        "conv1_w": uniform(ks[0], (6, 3, 5, 5), 3 * 5 * 5),
        "conv1_b": uniform(ks[1], (6,), 3 * 5 * 5),
        "conv2_w": uniform(ks[2], (16, 6, 5, 5), 6 * 5 * 5),
        "conv2_b": uniform(ks[3], (16,), 6 * 5 * 5),
        "fc1_w": uniform(ks[4], (120, 16 * 5 * 5), 16 * 5 * 5),
        "fc1_b": uniform(ks[5], (120,), 16 * 5 * 5),
        "fc2_w": uniform(ks[6], (84, 120), 120),
        "fc2_b": uniform(ks[7], (84,), 120),
        "fc3_w": uniform(ks[8], (19, 84), 84),
        "fc3_b": uniform(ks[9], (19,), 84),
    }


def _conv_band(w_oihw, in_w):
    """Banded (Toeplitz-along-W) conv weights: (kh, in_w*cin, out_w*cout) bf16."""
    cout, cin, kh, kw = w_oihw.shape
    out_w = in_w - kw + 1
    wsrc = jnp.arange(in_w)[:, None]
    wdst = jnp.arange(out_w)[None, :]
    bands = []
    for ki in range(kh):
        b = jnp.zeros((in_w * cin, out_w * cout), jnp.float32)
        for kj in range(kw):
            shift = (wsrc == wdst + kj).astype(jnp.float32)          # (in_w, out_w)
            tap = jnp.transpose(w_oihw[:, :, ki, kj])                # (cin, cout)
            b = b + jnp.kron(shift, tap)
        bands.append(b)
    return jnp.stack(bands).astype(jnp.bfloat16)


def _rowsel(npool, nsrc, offset):
    """(npool, nsrc) one-hot: row i selects source row 2*i + offset."""
    i = jnp.arange(npool)[:, None]
    j = jnp.arange(nsrc)[None, :]
    return (j == 2 * i + offset).astype(jnp.bfloat16)


def _colsel(ow, cout, offset):
    """(ow*cout, (ow//2)*cout) one-hot: column w*cout+c selects source (2w+offset)*cout+c."""
    m = jnp.arange(ow * cout)[:, None]
    n = jnp.arange((ow // 2) * cout)[None, :]
    src = 2 * cout * (n // cout) + (n % cout) + offset * cout
    return (m == src).astype(jnp.bfloat16)


def prepare_params(params):
    """One-time rearrangement of torch-layout params into kernel layouts."""
    f32, bf16 = jnp.float32, jnp.bfloat16

    wb1 = _conv_band(params["conv1_w"], in_w=32)             # (5, 96, 168)
    wb2 = _conv_band(params["conv2_w"], in_w=14)             # (5, 84, 160)
    bc1 = jnp.tile(params["conv1_b"], 28).reshape(1, 168).astype(f32)
    bc2 = jnp.tile(params["conv2_b"], 10).reshape(1, 160).astype(f32)

    # 2x2 max-pool selection matrices (exact one-hot, bf16 MXU operands)
    she1, sho1 = _rowsel(14, 28, 0), _rowsel(14, 28, 1)
    swe1, swo1 = _colsel(28, 6, 0), _colsel(28, 6, 1)
    she2, sho2 = _rowsel(5, 10, 0), _rowsel(5, 10, 1)
    swe2, swo2 = _colsel(10, 16, 0), _colsel(10, 16, 1)

    # fc1: torch flattens (c, h, w); our activations are [h, w*16+c], so fold the
    # permutation into per-pooled-row weight slabs (5, 80, 128). Pad 120 -> 128 lanes.
    w1 = params["fc1_w"].reshape(120, 16, 5, 5)              # (o, c, h, w)
    w1 = jnp.transpose(w1, (2, 3, 1, 0)).reshape(5, 80, 120)  # [h, w*16+c, o]
    w1 = jnp.pad(w1, ((0, 0), (0, 0), (0, 8))).astype(bf16)
    b1 = jnp.pad(params["fc1_b"], (0, 8)).reshape(1, 128).astype(f32)

    def fc_prep(w, b):
        n_out, k_in = w.shape
        wp = jnp.pad(w.T, ((0, 128 - k_in), (0, 128 - n_out))).astype(bf16)
        bp = jnp.pad(b, (0, 128 - n_out)).reshape(1, 128).astype(f32)
        return wp, bp

    w2, b2 = fc_prep(params["fc2_w"], params["fc2_b"])
    w3, b3 = fc_prep(params["fc3_w"], params["fc3_b"])

    return dict(wb1=wb1, bc1=bc1, she1=she1, sho1=sho1, swe1=swe1, swo1=swo1,
                wb2=wb2, bc2=bc2, she2=she2, sho2=sho2, swe2=swe2, swo2=swo2,
                w1=w1, b1=b1, w2=w2, b2=b2, w3=w3, b3=b3)


# ---------------------------- pure-JAX reference --------------------------------

def reference_forward(params, x):
    def conv(x, w, b):
        y = jax.lax.conv_general_dilated(
            x, w, window_strides=(1, 1), padding="VALID",
            dimension_numbers=("NCHW", "OIHW", "NCHW"))
        return jax.nn.relu(y + b[None, :, None, None])

    def pool(x):
        return jax.lax.reduce_window(x, -jnp.inf, jax.lax.max,
                                     (1, 1, 2, 2), (1, 1, 2, 2), "VALID")

    x = pool(conv(x, params["conv1_w"], params["conv1_b"]))
    x = pool(conv(x, params["conv2_w"], params["conv2_b"]))
    x = x.reshape(x.shape[0], -1)
    x = jax.nn.relu(x @ params["fc1_w"].T + params["fc1_b"])
    x = jax.nn.relu(x @ params["fc2_w"].T + params["fc2_b"])
    return x @ params["fc3_w"].T + params["fc3_b"]


if __name__ == "__main__":
    key = jax.random.PRNGKey(0)
    pkey, xkey = jax.random.split(key)
    params = init_params(pkey)
    # 32x32 spatial / 3 channels are required by the module (16*5*5 flatten); batch=2.
    x = jax.random.normal(xkey, (2, 3, 32, 32), jnp.float32)

    prepped = prepare_params(params)
    out = jax.block_until_ready(jax.jit(net_forward)(prepped, x))
    assert out.shape == (2, 19), out.shape
    assert bool(jnp.all(jnp.isfinite(out)))

    # Correctness check against a pure-JAX/XLA reference (tolerance covers bf16 MXU
    # operands with f32 accumulation used throughout the fused kernel).
    ref = jax.block_until_ready(jax.jit(reference_forward)(params, x))
    max_err = float(jnp.max(jnp.abs(out - ref)))
    assert max_err < 5e-2, f"mismatch vs reference: max_err={max_err}"
    print("KERNEL_OK")
</pallas_src>

<mosaic_0001>
module attributes {stable_mosaic.version = 11 : i64} {
  func.func @_lenet_kernel(%arg0: i32, %arg1: memref<1x32x96xf32, #tpu.memory_space<vmem>>, %arg2: memref<5x96x168xbf16, #tpu.memory_space<vmem>>, %arg3: memref<1x168xf32, #tpu.memory_space<vmem>>, %arg4: memref<14x28xbf16, #tpu.memory_space<vmem>>, %arg5: memref<14x28xbf16, #tpu.memory_space<vmem>>, %arg6: memref<168x84xbf16, #tpu.memory_space<vmem>>, %arg7: memref<168x84xbf16, #tpu.memory_space<vmem>>, %arg8: memref<5x84x160xbf16, #tpu.memory_space<vmem>>, %arg9: memref<1x160xf32, #tpu.memory_space<vmem>>, %arg10: memref<5x10xbf16, #tpu.memory_space<vmem>>, %arg11: memref<5x10xbf16, #tpu.memory_space<vmem>>, %arg12: memref<160x80xbf16, #tpu.memory_space<vmem>>, %arg13: memref<160x80xbf16, #tpu.memory_space<vmem>>, %arg14: memref<5x80x128xbf16, #tpu.memory_space<vmem>>, %arg15: memref<1x128xf32, #tpu.memory_space<vmem>>, %arg16: memref<128x128xbf16, #tpu.memory_space<vmem>>, %arg17: memref<1x128xf32, #tpu.memory_space<vmem>>, %arg18: memref<128x128xbf16, #tpu.memory_space<vmem>>, %arg19: memref<1x128xf32, #tpu.memory_space<vmem>>, %arg20: memref<1x1x128xf32, #tpu.memory_space<vmem>>) attributes {dimension_semantics = [#tpu.dimension_semantics<parallel>], iteration_bounds = array<i64: 2>, scalar_prefetch = 0 : i64, scratch_operands = 0 : i64, tpu.core_type = #tpu.core_type<tc>, window_params = [{transform_indices = @transform_0, window_bounds = array<i64: 1, 32, 96>}, {pipeline_mode = #tpu.pipeline_mode<synchronous>, transform_indices = @transform_1, window_bounds = array<i64: 5, 96, 168>}, {pipeline_mode = #tpu.pipeline_mode<synchronous>, transform_indices = @transform_2, window_bounds = array<i64: 1, 168>}, {pipeline_mode = #tpu.pipeline_mode<synchronous>, transform_indices = @transform_3, window_bounds = array<i64: 14, 28>}, {pipeline_mode = #tpu.pipeline_mode<synchronous>, transform_indices = @transform_4, window_bounds = array<i64: 14, 28>}, {pipeline_mode = #tpu.pipeline_mode<synchronous>, transform_indices = @transform_5, window_bounds = array<i64: 168, 84>}, {pipeline_mode = #tpu.pipeline_mode<synchronous>, transform_indices = @transform_6, window_bounds = array<i64: 168, 84>}, {pipeline_mode = #tpu.pipeline_mode<synchronous>, transform_indices = @transform_7, window_bounds = array<i64: 5, 84, 160>}, {pipeline_mode = #tpu.pipeline_mode<synchronous>, transform_indices = @transform_8, window_bounds = array<i64: 1, 160>}, {pipeline_mode = #tpu.pipeline_mode<synchronous>, transform_indices = @transform_9, window_bounds = array<i64: 5, 10>}, {pipeline_mode = #tpu.pipeline_mode<synchronous>, transform_indices = @transform_10, window_bounds = array<i64: 5, 10>}, {pipeline_mode = #tpu.pipeline_mode<synchronous>, transform_indices = @transform_11, window_bounds = array<i64: 160, 80>}, {pipeline_mode = #tpu.pipeline_mode<synchronous>, transform_indices = @transform_12, window_bounds = array<i64: 160, 80>}, {pipeline_mode = #tpu.pipeline_mode<synchronous>, transform_indices = @transform_13, window_bounds = array<i64: 5, 80, 128>}, {pipeline_mode = #tpu.pipeline_mode<synchronous>, transform_indices = @transform_14, window_bounds = array<i64: 1, 128>}, {pipeline_mode = #tpu.pipeline_mode<synchronous>, transform_indices = @transform_15, window_bounds = array<i64: 128, 128>}, {pipeline_mode = #tpu.pipeline_mode<synchronous>, transform_indices = @transform_16, window_bounds = array<i64: 1, 128>}, {pipeline_mode = #tpu.pipeline_mode<synchronous>, transform_indices = @transform_17, window_bounds = array<i64: 128, 128>}, {pipeline_mode = #tpu.pipeline_mode<synchronous>, transform_indices = @transform_18, window_bounds = array<i64: 1, 128>}, {transform_indices = @transform_19, window_bounds = array<i64: 1, 1, 128>}]} {
    %c0 = arith.constant 0 : index
    %c0_0 = arith.constant 0 : index
    %c0_1 = arith.constant 0 : index
    %0 = vector.load %arg1[%c0, %c0_0, %c0_1] : memref<1x32x96xf32, #tpu.memory_space<vmem>>, vector<1x32x96xf32>
    %1 = vector.shape_cast %0 : vector<1x32x96xf32> to vector<32x96xf32>
    %cst = arith.constant 0.000000e+00 : f32
    %2 = vector.broadcast %cst : f32 to vector<28x168xf32>
    %3 = vector.extract_strided_slice %1 {offsets = [0, 0], sizes = [28, 96], strides = [1, 1]} : vector<32x96xf32> to vector<28x96xf32>
    %4 = arith.truncf %3 : vector<28x96xf32> to vector<28x96xbf16>
    %c0_2 = arith.constant 0 : index
    %c0_3 = arith.constant 0 : index
    %c0_4 = arith.constant 0 : index
    %5 = vector.load %arg2[%c0_2, %c0_3, %c0_4] : memref<5x96x168xbf16, #tpu.memory_space<vmem>>, vector<1x96x168xbf16>
    %6 = vector.shape_cast %5 : vector<1x96x168xbf16> to vector<96x168xbf16>
    %cst_5 = arith.constant dense<0.000000e+00> : vector<28x168xf32>
    %7 = tpu.matmul %4, %6, %cst_5 {dimension_numbers = #tpu.dot_dimension_numbers<[1], [0], [0], [1], [0, 0, 1, 1], [], []>} : vector<28x96xbf16>, vector<96x168xbf16>, vector<28x168xf32> -> vector<28x168xf32>
    %8 = arith.addf %2, %7 : vector<28x168xf32>
    %9 = vector.extract_strided_slice %1 {offsets = [1, 0], sizes = [28, 96], strides = [1, 1]} : vector<32x96xf32> to vector<28x96xf32>
    %10 = arith.truncf %9 : vector<28x96xf32> to vector<28x96xbf16>
    %c1 = arith.constant 1 : index
    %c0_6 = arith.constant 0 : index
    %c0_7 = arith.constant 0 : index
    %11 = vector.load %arg2[%c1, %c0_6, %c0_7] : memref<5x96x168xbf16, #tpu.memory_space<vmem>>, vector<1x96x168xbf16>
    %12 = vector.shape_cast %11 : vector<1x96x168xbf16> to vector<96x168xbf16>
    %cst_8 = arith.constant dense<0.000000e+00> : vector<28x168xf32>
    %13 = tpu.matmul %10, %12, %cst_8 {dimension_numbers = #tpu.dot_dimension_numbers<[1], [0], [0], [1], [0, 0, 1, 1], [], []>} : vector<28x96xbf16>, vector<96x168xbf16>, vector<28x168xf32> -> vector<28x168xf32>
    %14 = arith.addf %8, %13 : vector<28x168xf32>
    %15 = vector.extract_strided_slice %1 {offsets = [2, 0], sizes = [28, 96], strides = [1, 1]} : vector<32x96xf32> to vector<28x96xf32>
    %16 = arith.truncf %15 : vector<28x96xf32> to vector<28x96xbf16>
    %c2 = arith.constant 2 : index
    %c0_9 = arith.constant 0 : index
    %c0_10 = arith.constant 0 : index
    %17 = vector.load %arg2[%c2, %c0_9, %c0_10] : memref<5x96x168xbf16, #tpu.memory_space<vmem>>, vector<1x96x168xbf16>
    %18 = vector.shape_cast %17 : vector<1x96x168xbf16> to vector<96x168xbf16>
    %cst_11 = arith.constant dense<0.000000e+00> : vector<28x168xf32>
    %19 = tpu.matmul %16, %18, %cst_11 {dimension_numbers = #tpu.dot_dimension_numbers<[1], [0], [0], [1], [0, 0, 1, 1], [], []>} : vector<28x96xbf16>, vector<96x168xbf16>, vector<28x168xf32> -> vector<28x168xf32>
    %20 = arith.addf %14, %19 : vector<28x168xf32>
    %21 = vector.extract_strided_slice %1 {offsets = [3, 0], sizes = [28, 96], strides = [1, 1]} : vector<32x96xf32> to vector<28x96xf32>
    %22 = arith.truncf %21 : vector<28x96xf32> to vector<28x96xbf16>
    %c3 = arith.constant 3 : index
    %c0_12 = arith.constant 0 : index
    %c0_13 = arith.constant 0 : index
    %23 = vector.load %arg2[%c3, %c0_12, %c0_13] : memref<5x96x168xbf16, #tpu.memory_space<vmem>>, vector<1x96x168xbf16>
    %24 = vector.shape_cast %23 : vector<1x96x168xbf16> to vector<96x168xbf16>
    %cst_14 = arith.constant dense<0.000000e+00> : vector<28x168xf32>
    %25 = tpu.matmul %22, %24, %cst_14 {dimension_numbers = #tpu.dot_dimension_numbers<[1], [0], [0], [1], [0, 0, 1, 1], [], []>} : vector<28x96xbf16>, vector<96x168xbf16>, vector<28x168xf32> -> vector<28x168xf32>
    %26 = arith.addf %20, %25 : vector<28x168xf32>
    %27 = vector.extract_strided_slice %1 {offsets = [4, 0], sizes = [28, 96], strides = [1, 1]} : vector<32x96xf32> to vector<28x96xf32>
    %28 = arith.truncf %27 : vector<28x96xf32> to vector<28x96xbf16>
    %c4 = arith.constant 4 : index
    %c0_15 = arith.constant 0 : index
    %c0_16 = arith.constant 0 : index
    %29 = vector.load %arg2[%c4, %c0_15, %c0_16] : memref<5x96x168xbf16, #tpu.memory_space<vmem>>, vector<1x96x168xbf16>
    %30 = vector.shape_cast %29 : vector<1x96x168xbf16> to vector<96x168xbf16>
    %cst_17 = arith.constant dense<0.000000e+00> : vector<28x168xf32>
    %31 = tpu.matmul %28, %30, %cst_17 {dimension_numbers = #tpu.dot_dimension_numbers<[1], [0], [0], [1], [0, 0, 1, 1], [], []>} : vector<28x96xbf16>, vector<96x168xbf16>, vector<28x168xf32> -> vector<28x168xf32>
    %32 = arith.addf %26, %31 : vector<28x168xf32>
    %c0_18 = arith.constant 0 : index
    %c0_19 = arith.constant 0 : index
    %33 = vector.load %arg3[%c0_18, %c0_19] : memref<1x168xf32, #tpu.memory_space<vmem>>, vector<1x168xf32>
    %34 = vector.broadcast %33 : vector<1x168xf32> to vector<28x168xf32>
    %35 = arith.addf %32, %34 : vector<28x168xf32>
    %cst_20 = arith.constant 0.000000e+00 : f32
    %36 = vector.broadcast %cst_20 : f32 to vector<28x168xf32>
    %37 = arith.maximumf %35, %36 : vector<28x168xf32>
    %38 = arith.truncf %37 : vector<28x168xf32> to vector<28x168xbf16>
    %c0_21 = arith.constant 0 : index
    %c0_22 = arith.constant 0 : index
    %39 = vector.load %arg4[%c0_21, %c0_22] : memref<14x28xbf16, #tpu.memory_space<vmem>>, vector<14x28xbf16>
    %cst_23 = arith.constant dense<0.000000e+00> : vector<14x168xf32>
    %40 = tpu.matmul %39, %38, %cst_23 {dimension_numbers = #tpu.dot_dimension_numbers<[1], [0], [0], [1], [0, 0, 1, 1], [], []>} : vector<14x28xbf16>, vector<28x168xbf16>, vector<14x168xf32> -> vector<14x168xf32>
    %c0_24 = arith.constant 0 : index
    %c0_25 = arith.constant 0 : index
    %41 = vector.load %arg5[%c0_24, %c0_25] : memref<14x28xbf16, #tpu.memory_space<vmem>>, vector<14x28xbf16>
    %cst_26 = arith.constant dense<0.000000e+00> : vector<14x168xf32>
    %42 = tpu.matmul %41, %38, %cst_26 {dimension_numbers = #tpu.dot_dimension_numbers<[1], [0], [0], [1], [0, 0, 1, 1], [], []>} : vector<14x28xbf16>, vector<28x168xbf16>, vector<14x168xf32> -> vector<14x168xf32>
    %43 = arith.maximumf %40, %42 : vector<14x168xf32>
    %44 = arith.truncf %43 : vector<14x168xf32> to vector<14x168xbf16>
    %c0_27 = arith.constant 0 : index
    %c0_28 = arith.constant 0 : index
    %45 = vector.load %arg6[%c0_27, %c0_28] : memref<168x84xbf16, #tpu.memory_space<vmem>>, vector<168x84xbf16>
    %cst_29 = arith.constant dense<0.000000e+00> : vector<14x84xf32>
    %46 = tpu.matmul %44, %45, %cst_29 {dimension_numbers = #tpu.dot_dimension_numbers<[1], [0], [0], [1], [0, 0, 1, 1], [], []>} : vector<14x168xbf16>, vector<168x84xbf16>, vector<14x84xf32> -> vector<14x84xf32>
    %c0_30 = arith.constant 0 : index
    %c0_31 = arith.constant 0 : index
    %47 = vector.load %arg7[%c0_30, %c0_31] : memref<168x84xbf16, #tpu.memory_space<vmem>>, vector<168x84xbf16>
    %cst_32 = arith.constant dense<0.000000e+00> : vector<14x84xf32>
    %48 = tpu.matmul %44, %47, %cst_32 {dimension_numbers = #tpu.dot_dimension_numbers<[1], [0], [0], [1], [0, 0, 1, 1], [], []>} : vector<14x168xbf16>, vector<168x84xbf16>, vector<14x84xf32> -> vector<14x84xf32>
    %49 = arith.maximumf %46, %48 : vector<14x84xf32>
    %cst_33 = arith.constant 0.000000e+00 : f32
    %50 = vector.broadcast %cst_33 : f32 to vector<10x160xf32>
    %51 = vector.extract_strided_slice %49 {offsets = [0, 0], sizes = [10, 84], strides = [1, 1]} : vector<14x84xf32> to vector<10x84xf32>
    %52 = arith.truncf %51 : vector<10x84xf32> to vector<10x84xbf16>
    %c0_34 = arith.constant 0 : index
    %c0_35 = arith.constant 0 : index
    %c0_36 = arith.constant 0 : index
    %53 = vector.load %arg8[%c0_34, %c0_35, %c0_36] : memref<5x84x160xbf16, #tpu.memory_space<vmem>>, vector<1x84x160xbf16>
    %54 = vector.shape_cast %53 : vector<1x84x160xbf16> to vector<84x160xbf16>
    %cst_37 = arith.constant dense<0.000000e+00> : vector<10x160xf32>
    %55 = tpu.matmul %52, %54, %cst_37 {dimension_numbers = #tpu.dot_dimension_numbers<[1], [0], [0], [1], [0, 0, 1, 1], [], []>} : vector<10x84xbf16>, vector<84x160xbf16>, vector<10x160xf32> -> vector<10x160xf32>
    %56 = arith.addf %50, %55 : vector<10x160xf32>
    %57 = vector.extract_strided_slice %49 {offsets = [1, 0], sizes = [10, 84], strides = [1, 1]} : vector<14x84xf32> to vector<10x84xf32>
    %58 = arith.truncf %57 : vector<10x84xf32> to vector<10x84xbf16>
    %c1_38 = arith.constant 1 : index
    %c0_39 = arith.constant 0 : index
    %c0_40 = arith.constant 0 : index
    %59 = vector.load %arg8[%c1_38, %c0_39, %c0_40] : memref<5x84x160xbf16, #tpu.memory_space<vmem>>, vector<1x84x160xbf16>
    %60 = vector.shape_cast %59 : vector<1x84x160xbf16> to vector<84x160xbf16>
    %cst_41 = arith.constant dense<0.000000e+00> : vector<10x160xf32>
    %61 = tpu.matmul %58, %60, %cst_41 {dimension_numbers = #tpu.dot_dimension_numbers<[1], [0], [0], [1], [0, 0, 1, 1], [], []>} : vector<10x84xbf16>, vector<84x160xbf16>, vector<10x160xf32> -> vector<10x160xf32>
    %62 = arith.addf %56, %61 : vector<10x160xf32>
    %63 = vector.extract_strided_slice %49 {offsets = [2, 0], sizes = [10, 84], strides = [1, 1]} : vector<14x84xf32> to vector<10x84xf32>
    %64 = arith.truncf %63 : vector<10x84xf32> to vector<10x84xbf16>
    %c2_42 = arith.constant 2 : index
    %c0_43 = arith.constant 0 : index
    %c0_44 = arith.constant 0 : index
    %65 = vector.load %arg8[%c2_42, %c0_43, %c0_44] : memref<5x84x160xbf16, #tpu.memory_space<vmem>>, vector<1x84x160xbf16>
    %66 = vector.shape_cast %65 : vector<1x84x160xbf16> to vector<84x160xbf16>
    %cst_45 = arith.constant dense<0.000000e+00> : vector<10x160xf32>
    %67 = tpu.matmul %64, %66, %cst_45 {dimension_numbers = #tpu.dot_dimension_numbers<[1], [0], [0], [1], [0, 0, 1, 1], [], []>} : vector<10x84xbf16>, vector<84x160xbf16>, vector<10x160xf32> -> vector<10x160xf32>
    %68 = arith.addf %62, %67 : vector<10x160xf32>
    %69 = vector.extract_strided_slice %49 {offsets = [3, 0], sizes = [10, 84], strides = [1, 1]} : vector<14x84xf32> to vector<10x84xf32>
    %70 = arith.truncf %69 : vector<10x84xf32> to vector<10x84xbf16>
    %c3_46 = arith.constant 3 : index
    %c0_47 = arith.constant 0 : index
    %c0_48 = arith.constant 0 : index
    %71 = vector.load %arg8[%c3_46, %c0_47, %c0_48] : memref<5x84x160xbf16, #tpu.memory_space<vmem>>, vector<1x84x160xbf16>
    %72 = vector.shape_cast %71 : vector<1x84x160xbf16> to vector<84x160xbf16>
    %cst_49 = arith.constant dense<0.000000e+00> : vector<10x160xf32>
    %73 = tpu.matmul %70, %72, %cst_49 {dimension_numbers = #tpu.dot_dimension_numbers<[1], [0], [0], [1], [0, 0, 1, 1], [], []>} : vector<10x84xbf16>, vector<84x160xbf16>, vector<10x160xf32> -> vector<10x160xf32>
    %74 = arith.addf %68, %73 : vector<10x160xf32>
    %75 = vector.extract_strided_slice %49 {offsets = [4, 0], sizes = [10, 84], strides = [1, 1]} : vector<14x84xf32> to vector<10x84xf32>
    %76 = arith.truncf %75 : vector<10x84xf32> to vector<10x84xbf16>
    %c4_50 = arith.constant 4 : index
    %c0_51 = arith.constant 0 : index
    %c0_52 = arith.constant 0 : index
    %77 = vector.load %arg8[%c4_50, %c0_51, %c0_52] : memref<5x84x160xbf16, #tpu.memory_space<vmem>>, vector<1x84x160xbf16>
    %78 = vector.shape_cast %77 : vector<1x84x160xbf16> to vector<84x160xbf16>
    %cst_53 = arith.constant dense<0.000000e+00> : vector<10x160xf32>
    %79 = tpu.matmul %76, %78, %cst_53 {dimension_numbers = #tpu.dot_dimension_numbers<[1], [0], [0], [1], [0, 0, 1, 1], [], []>} : vector<10x84xbf16>, vector<84x160xbf16>, vector<10x160xf32> -> vector<10x160xf32>
    %80 = arith.addf %74, %79 : vector<10x160xf32>
    %c0_54 = arith.constant 0 : index
    %c0_55 = arith.constant 0 : index
    %81 = vector.load %arg9[%c0_54, %c0_55] : memref<1x160xf32, #tpu.memory_space<vmem>>, vector<1x160xf32>
    %82 = vector.broadcast %81 : vector<1x160xf32> to vector<10x160xf32>
    %83 = arith.addf %80, %82 : vector<10x160xf32>
    %cst_56 = arith.constant 0.000000e+00 : f32
    %84 = vector.broadcast %cst_56 : f32 to vector<10x160xf32>
    %85 = arith.maximumf %83, %84 : vector<10x160xf32>
    %86 = arith.truncf %85 : vector<10x160xf32> to vector<10x160xbf16>
    %c0_57 = arith.constant 0 : index
    %c0_58 = arith.constant 0 : index
    %87 = vector.load %arg10[%c0_57, %c0_58] : memref<5x10xbf16, #tpu.memory_space<vmem>>, vector<5x10xbf16>
    %cst_59 = arith.constant dense<0.000000e+00> : vector<5x160xf32>
    %88 = tpu.matmul %87, %86, %cst_59 {dimension_numbers = #tpu.dot_dimension_numbers<[1], [0], [0], [1], [0, 0, 1, 1], [], []>} : vector<5x10xbf16>, vector<10x160xbf16>, vector<5x160xf32> -> vector<5x160xf32>
    %c0_60 = arith.constant 0 : index
    %c0_61 = arith.constant 0 : index
    %89 = vector.load %arg11[%c0_60, %c0_61] : memref<5x10xbf16, #tpu.memory_space<vmem>>, vector<5x10xbf16>
    %cst_62 = arith.constant dense<0.000000e+00> : vector<5x160xf32>
    %90 = tpu.matmul %89, %86, %cst_62 {dimension_numbers = #tpu.dot_dimension_numbers<[1], [0], [0], [1], [0, 0, 1, 1], [], []>} : vector<5x10xbf16>, vector<10x160xbf16>, vector<5x160xf32> -> vector<5x160xf32>
    %91 = arith.maximumf %88, %90 : vector<5x160xf32>
    %92 = arith.truncf %91 : vector<5x160xf32> to vector<5x160xbf16>
    %c0_63 = arith.constant 0 : index
    %c0_64 = arith.constant 0 : index
    %93 = vector.load %arg12[%c0_63, %c0_64] : memref<160x80xbf16, #tpu.memory_space<vmem>>, vector<160x80xbf16>
    %cst_65 = arith.constant dense<0.000000e+00> : vector<5x80xf32>
    %94 = tpu.matmul %92, %93, %cst_65 {dimension_numbers = #tpu.dot_dimension_numbers<[1], [0], [0], [1], [0, 0, 1, 1], [], []>} : vector<5x160xbf16>, vector<160x80xbf16>, vector<5x80xf32> -> vector<5x80xf32>
    %c0_66 = arith.constant 0 : index
    %c0_67 = arith.constant 0 : index
    %95 = vector.load %arg13[%c0_66, %c0_67] : memref<160x80xbf16, #tpu.memory_space<vmem>>, vector<160x80xbf16>
    %cst_68 = arith.constant dense<0.000000e+00> : vector<5x80xf32>
    %96 = tpu.matmul %92, %95, %cst_68 {dimension_numbers = #tpu.dot_dimension_numbers<[1], [0], [0], [1], [0, 0, 1, 1], [], []>} : vector<5x160xbf16>, vector<160x80xbf16>, vector<5x80xf32> -> vector<5x80xf32>
    %97 = arith.maximumf %94, %96 : vector<5x80xf32>
    %cst_69 = arith.constant 0.000000e+00 : f32
    %98 = vector.broadcast %cst_69 : f32 to vector<1x128xf32>
    %99 = vector.extract_strided_slice %97 {offsets = [0, 0], sizes = [1, 80], strides = [1, 1]} : vector<5x80xf32> to vector<1x80xf32>
    %100 = arith.truncf %99 : vector<1x80xf32> to vector<1x80xbf16>
    %c0_70 = arith.constant 0 : index
    %c0_71 = arith.constant 0 : index
    %c0_72 = arith.constant 0 : index
    %101 = vector.load %arg14[%c0_70, %c0_71, %c0_72] : memref<5x80x128xbf16, #tpu.memory_space<vmem>>, vector<1x80x128xbf16>
    %102 = vector.shape_cast %101 : vector<1x80x128xbf16> to vector<80x128xbf16>
    %cst_73 = arith.constant dense<0.000000e+00> : vector<1x128xf32>
    %103 = tpu.matmul %100, %102, %cst_73 {dimension_numbers = #tpu.dot_dimension_numbers<[1], [0], [0], [1], [0, 0, 1, 1], [], []>} : vector<1x80xbf16>, vector<80x128xbf16>, vector<1x128xf32> -> vector<1x128xf32>
    %104 = arith.addf %98, %103 : vector<1x128xf32>
    %105 = vector.extract_strided_slice %97 {offsets = [1, 0], sizes = [1, 80], strides = [1, 1]} : vector<5x80xf32> to vector<1x80xf32>
    %106 = arith.truncf %105 : vector<1x80xf32> to vector<1x80xbf16>
    %c1_74 = arith.constant 1 : index
    %c0_75 = arith.constant 0 : index
    %c0_76 = arith.constant 0 : index
    %107 = vector.load %arg14[%c1_74, %c0_75, %c0_76] : memref<5x80x128xbf16, #tpu.memory_space<vmem>>, vector<1x80x128xbf16>
    %108 = vector.shape_cast %107 : vector<1x80x128xbf16> to vector<80x128xbf16>
    %cst_77 = arith.constant dense<0.000000e+00> : vector<1x128xf32>
    %109 = tpu.matmul %106, %108, %cst_77 {dimension_numbers = #tpu.dot_dimension_numbers<[1], [0], [0], [1], [0, 0, 1, 1], [], []>} : vector<1x80xbf16>, vector<80x128xbf16>, vector<1x128xf32> -> vector<1x128xf32>
    %110 = arith.addf %104, %109 : vector<1x128xf32>
    %111 = vector.extract_strided_slice %97 {offsets = [2, 0], sizes = [1, 80], strides = [1, 1]} : vector<5x80xf32> to vector<1x80xf32>
    %112 = arith.truncf %111 : vector<1x80xf32> to vector<1x80xbf16>
    %c2_78 = arith.constant 2 : index
    %c0_79 = arith.constant 0 : index
    %c0_80 = arith.constant 0 : index
    %113 = vector.load %arg14[%c2_78, %c0_79, %c0_80] : memref<5x80x128xbf16, #tpu.memory_space<vmem>>, vector<1x80x128xbf16>
    %114 = vector.shape_cast %113 : vector<1x80x128xbf16> to vector<80x128xbf16>
    %cst_81 = arith.constant dense<0.000000e+00> : vector<1x128xf32>
    %115 = tpu.matmul %112, %114, %cst_81 {dimension_numbers = #tpu.dot_dimension_numbers<[1], [0], [0], [1], [0, 0, 1, 1], [], []>} : vector<1x80xbf16>, vector<80x128xbf16>, vector<1x128xf32> -> vector<1x128xf32>
    %116 = arith.addf %110, %115 : vector<1x128xf32>
    %117 = vector.extract_strided_slice %97 {offsets = [3, 0], sizes = [1, 80], strides = [1, 1]} : vector<5x80xf32> to vector<1x80xf32>
    %118 = arith.truncf %117 : vector<1x80xf32> to vector<1x80xbf16>
    %c3_82 = arith.constant 3 : index
    %c0_83 = arith.constant 0 : index
    %c0_84 = arith.constant 0 : index
    %119 = vector.load %arg14[%c3_82, %c0_83, %c0_84] : memref<5x80x128xbf16, #tpu.memory_space<vmem>>, vector<1x80x128xbf16>
    %120 = vector.shape_cast %119 : vector<1x80x128xbf16> to vector<80x128xbf16>
    %cst_85 = arith.constant dense<0.000000e+00> : vector<1x128xf32>
    %121 = tpu.matmul %118, %120, %cst_85 {dimension_numbers = #tpu.dot_dimension_numbers<[1], [0], [0], [1], [0, 0, 1, 1], [], []>} : vector<1x80xbf16>, vector<80x128xbf16>, vector<1x128xf32> -> vector<1x128xf32>
    %122 = arith.addf %116, %121 : vector<1x128xf32>
    %123 = vector.extract_strided_slice %97 {offsets = [4, 0], sizes = [1, 80], strides = [1, 1]} : vector<5x80xf32> to vector<1x80xf32>
    %124 = arith.truncf %123 : vector<1x80xf32> to vector<1x80xbf16>
    %c4_86 = arith.constant 4 : index
    %c0_87 = arith.constant 0 : index
    %c0_88 = arith.constant 0 : index
    %125 = vector.load %arg14[%c4_86, %c0_87, %c0_88] : memref<5x80x128xbf16, #tpu.memory_space<vmem>>, vector<1x80x128xbf16>
    %126 = vector.shape_cast %125 : vector<1x80x128xbf16> to vector<80x128xbf16>
    %cst_89 = arith.constant dense<0.000000e+00> : vector<1x128xf32>
    %127 = tpu.matmul %124, %126, %cst_89 {dimension_numbers = #tpu.dot_dimension_numbers<[1], [0], [0], [1], [0, 0, 1, 1], [], []>} : vector<1x80xbf16>, vector<80x128xbf16>, vector<1x128xf32> -> vector<1x128xf32>
    %128 = arith.addf %122, %127 : vector<1x128xf32>
    %c0_90 = arith.constant 0 : index
    %c0_91 = arith.constant 0 : index
    %129 = vector.load %arg15[%c0_90, %c0_91] : memref<1x128xf32, #tpu.memory_space<vmem>>, vector<1x128xf32>
    %130 = arith.addf %128, %129 : vector<1x128xf32>
    %cst_92 = arith.constant 0.000000e+00 : f32
    %131 = vector.broadcast %cst_92 : f32 to vector<1x128xf32>
    %132 = arith.maximumf %130, %131 : vector<1x128xf32>
    %133 = arith.truncf %132 : vector<1x128xf32> to vector<1x128xbf16>
    %c0_93 = arith.constant 0 : index
    %c0_94 = arith.constant 0 : index
    %134 = vector.load %arg16[%c0_93, %c0_94] : memref<128x128xbf16, #tpu.memory_space<vmem>>, vector<128x128xbf16>
    %cst_95 = arith.constant dense<0.000000e+00> : vector<1x128xf32>
    %135 = tpu.matmul %133, %134, %cst_95 {dimension_numbers = #tpu.dot_dimension_numbers<[1], [0], [0], [1], [0, 0, 1, 1], [], []>} : vector<1x128xbf16>, vector<128x128xbf16>, vector<1x128xf32> -> vector<1x128xf32>
    %c0_96 = arith.constant 0 : index
    %c0_97 = arith.constant 0 : index
    %136 = vector.load %arg17[%c0_96, %c0_97] : memref<1x128xf32, #tpu.memory_space<vmem>>, vector<1x128xf32>
    %137 = arith.addf %135, %136 : vector<1x128xf32>
    %cst_98 = arith.constant 0.000000e+00 : f32
    %138 = vector.broadcast %cst_98 : f32 to vector<1x128xf32>
    %139 = arith.maximumf %137, %138 : vector<1x128xf32>
    %140 = arith.truncf %139 : vector<1x128xf32> to vector<1x128xbf16>
    %c0_99 = arith.constant 0 : index
    %c0_100 = arith.constant 0 : index
    %141 = vector.load %arg18[%c0_99, %c0_100] : memref<128x128xbf16, #tpu.memory_space<vmem>>, vector<128x128xbf16>
    %cst_101 = arith.constant dense<0.000000e+00> : vector<1x128xf32>
    %142 = tpu.matmul %140, %141, %cst_101 {dimension_numbers = #tpu.dot_dimension_numbers<[1], [0], [0], [1], [0, 0, 1, 1], [], []>} : vector<1x128xbf16>, vector<128x128xbf16>, vector<1x128xf32> -> vector<1x128xf32>
    %c0_102 = arith.constant 0 : index
    %c0_103 = arith.constant 0 : index
    %143 = vector.load %arg19[%c0_102, %c0_103] : memref<1x128xf32, #tpu.memory_space<vmem>>, vector<1x128xf32>
    %144 = arith.addf %142, %143 : vector<1x128xf32>
    %c0_104 = arith.constant 0 : index
    %c0_105 = arith.constant 0 : index
    %c0_106 = arith.constant 0 : index
    %145 = vector.load %arg20[%c0_104, %c0_105, %c0_106] : memref<1x1x128xf32, #tpu.memory_space<vmem>>, vector<1x1x128xf32>
    %146 = vector.shape_cast %145 : vector<1x1x128xf32> to vector<1x128xf32>
    %147 = vector.shape_cast %144 : vector<1x128xf32> to vector<1x1x128xf32>
    tpu.vector_store %arg20[%c0_104, %c0_105, %c0_106], %147 {strides = array<i32>} : memref<1x1x128xf32, #tpu.memory_space<vmem>>, vector<1x1x128xf32>,
    return
  }
  func.func @transform_0(%arg0: i32) -> (i32, i32, i32) {
    %c0_i32 = arith.constant 0 : i32
    %c0_i32_0 = arith.constant 0 : i32
    %c0_i32_1 = arith.constant 0 : i32
    return %arg0, %c0_i32, %c0_i32_0 : i32, i32, i32
  }
  func.func @transform_1(%arg0: i32) -> (i32, i32, i32) {
    %c0_i32 = arith.constant 0 : i32
    %c0_i32_0 = arith.constant 0 : i32
    %c0_i32_1 = arith.constant 0 : i32
    %c0_i32_2 = arith.constant 0 : i32
    return %c0_i32, %c0_i32_0, %c0_i32_1 : i32, i32, i32
  }
  func.func @transform_2(%arg0: i32) -> (i32, i32) {
    %c0_i32 = arith.constant 0 : i32
    %c0_i32_0 = arith.constant 0 : i32
    %c0_i32_1 = arith.constant 0 : i32
    return %c0_i32, %c0_i32_0 : i32, i32
  }
  func.func @transform_3(%arg0: i32) -> (i32, i32) {
    %c0_i32 = arith.constant 0 : i32
    %c0_i32_0 = arith.constant 0 : i32
    %c0_i32_1 = arith.constant 0 : i32
    return %c0_i32, %c0_i32_0 : i32, i32
  }
  func.func @transform_4(%arg0: i32) -> (i32, i32) {
    %c0_i32 = arith.constant 0 : i32
    %c0_i32_0 = arith.constant 0 : i32
    %c0_i32_1 = arith.constant 0 : i32
    return %c0_i32, %c0_i32_0 : i32, i32
  }
  func.func @transform_5(%arg0: i32) -> (i32, i32) {
    %c0_i32 = arith.constant 0 : i32
    %c0_i32_0 = arith.constant 0 : i32
    %c0_i32_1 = arith.constant 0 : i32
    return %c0_i32, %c0_i32_0 : i32, i32
  }
  func.func @transform_6(%arg0: i32) -> (i32, i32) {
    %c0_i32 = arith.constant 0 : i32
    %c0_i32_0 = arith.constant 0 : i32
    %c0_i32_1 = arith.constant 0 : i32
    return %c0_i32, %c0_i32_0 : i32, i32
  }
  func.func @transform_7(%arg0: i32) -> (i32, i32, i32) {
    %c0_i32 = arith.constant 0 : i32
    %c0_i32_0 = arith.constant 0 : i32
    %c0_i32_1 = arith.constant 0 : i32
    %c0_i32_2 = arith.constant 0 : i32
    return %c0_i32, %c0_i32_0, %c0_i32_1 : i32, i32, i32
  }
  func.func @transform_8(%arg0: i32) -> (i32, i32) {
    %c0_i32 = arith.constant 0 : i32
    %c0_i32_0 = arith.constant 0 : i32
    %c0_i32_1 = arith.constant 0 : i32
    return %c0_i32, %c0_i32_0 : i32, i32
  }
  func.func @transform_9(%arg0: i32) -> (i32, i32) {
    %c0_i32 = arith.constant 0 : i32
    %c0_i32_0 = arith.constant 0 : i32
    %c0_i32_1 = arith.constant 0 : i32
    return %c0_i32, %c0_i32_0 : i32, i32
  }
  func.func @transform_10(%arg0: i32) -> (i32, i32) {
    %c0_i32 = arith.constant 0 : i32
    %c0_i32_0 = arith.constant 0 : i32
    %c0_i32_1 = arith.constant 0 : i32
    return %c0_i32, %c0_i32_0 : i32, i32
  }
  func.func @transform_11(%arg0: i32) -> (i32, i32) {
    %c0_i32 = arith.constant 0 : i32
    %c0_i32_0 = arith.constant 0 : i32
    %c0_i32_1 = arith.constant 0 : i32
    return %c0_i32, %c0_i32_0 : i32, i32
  }
  func.func @transform_12(%arg0: i32) -> (i32, i32) {
    %c0_i32 = arith.constant 0 : i32
    %c0_i32_0 = arith.constant 0 : i32
    %c0_i32_1 = arith.constant 0 : i32
    return %c0_i32, %c0_i32_0 : i32, i32
  }
  func.func @transform_13(%arg0: i32) -> (i32, i32, i32) {
    %c0_i32 = arith.constant 0 : i32
    %c0_i32_0 = arith.constant 0 : i32
    %c0_i32_1 = arith.constant 0 : i32
    %c0_i32_2 = arith.constant 0 : i32
    return %c0_i32, %c0_i32_0, %c0_i32_1 : i32, i32, i32
  }
  func.func @transform_14(%arg0: i32) -> (i32, i32) {
    %c0_i32 = arith.constant 0 : i32
    %c0_i32_0 = arith.constant 0 : i32
    %c0_i32_1 = arith.constant 0 : i32
    return %c0_i32, %c0_i32_0 : i32, i32
  }
  func.func @transform_15(%arg0: i32) -> (i32, i32) {
    %c0_i32 = arith.constant 0 : i32
    %c0_i32_0 = arith.constant 0 : i32
    %c0_i32_1 = arith.constant 0 : i32
    return %c0_i32, %c0_i32_0 : i32, i32
  }
  func.func @transform_16(%arg0: i32) -> (i32, i32) {
    %c0_i32 = arith.constant 0 : i32
    %c0_i32_0 = arith.constant 0 : i32
    %c0_i32_1 = arith.constant 0 : i32
    return %c0_i32, %c0_i32_0 : i32, i32
  }
  func.func @transform_17(%arg0: i32) -> (i32, i32) {
    %c0_i32 = arith.constant 0 : i32
    %c0_i32_0 = arith.constant 0 : i32
    %c0_i32_1 = arith.constant 0 : i32
    return %c0_i32, %c0_i32_0 : i32, i32
  }
  func.func @transform_18(%arg0: i32) -> (i32, i32) {
    %c0_i32 = arith.constant 0 : i32
    %c0_i32_0 = arith.constant 0 : i32
    %c0_i32_1 = arith.constant 0 : i32
    return %c0_i32, %c0_i32_0 : i32, i32
  }
  func.func @transform_19(%arg0: i32) -> (i32, i32, i32) {
    %c0_i32 = arith.constant 0 : i32
    %c0_i32_0 = arith.constant 0 : i32
    %c0_i32_1 = arith.constant 0 : i32
    return %arg0, %c0_i32, %c0_i32_0 : i32, i32, i32
  }
}

</mosaic_0001>

<llo_original>
// kernel: net_forward.1
$region0: #{net_forward.1}
  #allocation0 [shape = 'u32[]', space=smem, size = 0x4, offset = 0x4, fixed_abs, tag = 'smem constant byte address 0x4 - core index']
  #allocation1 [shape = 'u32[144,128]{1,0:T(1,128)}', space=vmem, size = 0x12000, scoped, tag = 'internal scratch']
  %s0 = inlined_call_operand.vmem [shape: f32[2,32,96], index: 0, kind: input, shape index: {}]
  %s1 = inlined_call_operand.vmem [shape: bf16[5,96,168], index: 1, kind: input, shape index: {}]
  %s2 = inlined_call_operand.vmem [shape: f32[1,168], index: 2, kind: input, shape index: {}]
  %s3 = inlined_call_operand.vmem [shape: bf16[14,28], index: 3, kind: input, shape index: {}]
  %s4 = inlined_call_operand.vmem [shape: bf16[14,28], index: 4, kind: input, shape index: {}]
  %s5 = inlined_call_operand.vmem [shape: bf16[168,84], index: 5, kind: input, shape index: {}]
  %s6 = inlined_call_operand.vmem [shape: bf16[168,84], index: 6, kind: input, shape index: {}]
  %s7 = inlined_call_operand.vmem [shape: bf16[5,84,160], index: 7, kind: input, shape index: {}]
  %s8 = inlined_call_operand.vmem [shape: f32[1,160], index: 8, kind: input, shape index: {}]
  %s9 = inlined_call_operand.vmem [shape: bf16[5,10], index: 9, kind: input, shape index: {}]
  %s10 = inlined_call_operand.vmem [shape: bf16[5,10], index: 10, kind: input, shape index: {}]
  %s11 = inlined_call_operand.vmem [shape: bf16[160,80], index: 11, kind: input, shape index: {}]
  %s12 = inlined_call_operand.vmem [shape: bf16[160,80], index: 12, kind: input, shape index: {}]
  %s13 = inlined_call_operand.vmem [shape: bf16[5,80,128], index: 13, kind: input, shape index: {}]
  %s14 = inlined_call_operand.vmem [shape: f32[1,128], index: 14, kind: input, shape index: {}]
  %s15 = inlined_call_operand.vmem [shape: bf16[128,128], index: 15, kind: input, shape index: {}]
  %s16 = inlined_call_operand.vmem [shape: f32[1,128], index: 16, kind: input, shape index: {}]
  %s17 = inlined_call_operand.vmem [shape: bf16[128,128], index: 17, kind: input, shape index: {}]
  %s18 = inlined_call_operand.vmem [shape: f32[1,128], index: 18, kind: input, shape index: {}]
  %s19 = inlined_call_operand.hbm [shape: f32[2,1,128], index: 19, kind: output, shape index: {}]
  %s20 = sld [smem:[#allocation0]]
  $region109: #{net_forward.1} parent=0
    _
  %s22 = ssub.s32 1, %s20
  %s23 = scalar_select 0, %s22, %s20
  $region1: #{net_forward.1} parent=0
    #allocation2 [shape = 'u8[1024]{0}', space=vmem, size = 0x400, scoped, tag = 'output window, operand 0']
    #allocation3 [shape = 's32[2]{0}', space=sflag, size = 0x8, scoped, tag = 'scoped memory for net_forward.1']
    %24 = vsyncpa [#allocation3], 0
    %s25 = scalar_lea.sflag [#allocation3], 1
    %26 = vsyncpa %s25, 0
    loop: start=0, step=1, limit=4
    $region2: #{net_forward.1} parent=1 // loop_pre_header
      _
    $region3: #{net_forward.1} parent=1 // loop_header
      %s28 = sphi 0, %s32
      %p29 = scmp.ge.s32.totalorder %s28, 4
      %s38 = sphi 0, %s40
      %s41 = sphi 0, %s38
      %s42 = sphi 0, %s41
      %s58 = sphi 0, %s42
      %s62 = sphi 0, %s62
      %s64 = sphi 0, %s62
      %s65 = sphi 0, %s64
      %s79 = sphi 0, %s65
      %s83 = sphi 0, %s83
      %s85 = sphi 0, %s83
      %s86 = sphi 0, %s85
      %s100 = sphi 0, %s86
      %s104 = sphi 0, %s104
      %s106 = sphi 0, %s104
      %s107 = sphi 0, %s106
      %s121 = sphi 0, %s107
      %s125 = sphi 0, %s125
      %s127 = sphi 0, %s125
      %s128 = sphi 0, %s127
      %s142 = sphi 0, %s128
      %s146 = sphi 0, %s146
      %s148 = sphi 0, %s146
      %s149 = sphi 0, %s148
      %s163 = sphi 0, %s149
      %s167 = sphi 0, %s167
      %s169 = sphi 0, %s167
      %s170 = sphi 0, %s169
      %s184 = sphi 0, %s170
      %s188 = sphi 0, %s188
      %s190 = sphi 0, %s188
      %s191 = sphi 0, %s190
      %s205 = sphi 0, %s191
      %s209 = sphi 0, %s209
      %s211 = sphi 0, %s209
      %s212 = sphi 0, %s211
      %s226 = sphi 0, %s212
      %s230 = sphi 0, %s230
      %s232 = sphi 0, %s230
      %s233 = sphi 0, %s232
      %s247 = sphi 0, %s233
      %s251 = sphi 0, %s251
      %s253 = sphi 0, %s251
      %s254 = sphi 0, %s253
      %s268 = sphi 0, %s254
      %s272 = sphi 0, %s272
      %s274 = sphi 0, %s272
      %s275 = sphi 0, %s274
      %s289 = sphi 0, %s275
      %s293 = sphi 0, %s293
      %s295 = sphi 0, %s293
      %s296 = sphi 0, %s295
      %s310 = sphi 0, %s296
      %s314 = sphi 0, %s314
      %s316 = sphi 0, %s314
      %s317 = sphi 0, %s316
      %s331 = sphi 0, %s317
      %s335 = sphi 0, %s335
      %s337 = sphi 0, %s335
      %s338 = sphi 0, %s337
      %s352 = sphi 0, %s338
      %s356 = sphi 0, %s356
      %s358 = sphi 0, %s356
      %s359 = sphi 0, %s358
      %s373 = sphi 0, %s359
      %s377 = sphi 0, %s377
      %s379 = sphi 0, %s377
      %s380 = sphi 0, %s379
      %s394 = sphi 0, %s380
      %s398 = sphi 0, %s398
      %s400 = sphi 0, %s398
      %s401 = sphi 0, %s400
      %s415 = sphi 0, %s401
      %s419 = sphi 0, %s419
      %s421 = sphi 0, %s419
      %s422 = sphi 0, %s421
      %s436 = sphi 0, %s422
      %s442 = sphi 0, %s444
      %s445 = sphi 0, %s442
      %s446 = sphi 0, %s445
      %s462 = sphi 0, %s446
    $region4: #{net_forward.1} parent=1 // loop_header_branch
      %31 = sbr.rel (%p29) target = $region8
    $region5: #{net_forward.1} parent=1 // loop_body
      %s33 = ssub.s32 %s28, 1
      %s34 = ssub.s32 %s28, 2
      %s35 = sadd.s32 %s28, 1
      %s36 = ssub.s32 %s28, %s35
      %p37 = scmp.eq.s32.totalorder %s36, 0
      %s39 = sadd.s32 %s38, 1
      %s40 = scalar_select %p37, %s38, %s39
      %p43 = pneg %p37
      %p44 = scmp.eq.s32.totalorder %s28, 1
      %p45 = por %p43, %p44
      %p46 = scmp.ne.s32.totalorder %s38, %s41
      %p47 = scmp.eq.s32.totalorder %s28, 0
      %p48 = por %p46, %p47
      %p49 = scmp.ne.s32.totalorder %s38, %s41
      %p50 = scmp.eq.s32.totalorder %s33, 1
      %p51 = por %p49, %p50
      %p52 = scmp.ne.s32.totalorder %s41, %s42
      %p53 = scmp.eq.s32.totalorder %s33, 0
      %p54 = por %p52, %p53
      %p55 = scmp.ne.s32.totalorder %s41, %s42
      %p56 = scmp.eq.s32.totalorder %s34, 1
      %p57 = por %p55, %p56
      %p59 = scmp.ne.s32.totalorder %s42, %s58
      %p60 = scmp.eq.s32.totalorder %s34, 0
      %p61 = por %p59, %p60
      %s63 = sadd.s32 %s62, 1
      %p66 = scmp.eq.s32.totalorder %s28, 1
      %p67 = scmp.ne.s32.totalorder %s62, %s64
      %p68 = scmp.eq.s32.totalorder %s28, 0
      %p69 = por %p67, %p68
      %p70 = scmp.ne.s32.totalorder %s62, %s64
      %p71 = scmp.eq.s32.totalorder %s33, 1
      %p72 = por %p70, %p71
      %p73 = scmp.ne.s32.totalorder %s64, %s65
      %p74 = scmp.eq.s32.totalorder %s33, 0
      %p75 = por %p73, %p74
      %p76 = scmp.ne.s32.totalorder %s64, %s65
      %p77 = scmp.eq.s32.totalorder %s34, 1
      %p78 = por %p76, %p77
      %p80 = scmp.ne.s32.totalorder %s65, %s79
      %p81 = scmp.eq.s32.totalorder %s34, 0
      %p82 = por %p80, %p81
      %s84 = sadd.s32 %s83, 1
      %p87 = scmp.eq.s32.totalorder %s28, 1
      %p88 = scmp.ne.s32.totalorder %s83, %s85
      %p89 = scmp.eq.s32.totalorder %s28, 0
      %p90 = por %p88, %p89
      %p91 = scmp.ne.s32.totalorder %s83, %s85
      %p92 = scmp.eq.s32.totalorder %s33, 1
      %p93 = por %p91, %p92
      %p94 = scmp.ne.s32.totalorder %s85, %s86
      %p95 = scmp.eq.s32.totalorder %s33, 0
      %p96 = por %p94, %p95
      %p97 = scmp.ne.s32.totalorder %s85, %s86
      %p98 = scmp.eq.s32.totalorder %s34, 1
      %p99 = por %p97, %p98
      %p101 = scmp.ne.s32.totalorder %s86, %s100
      %p102 = scmp.eq.s32.totalorder %s34, 0
      %p103 = por %p101, %p102
      %s105 = sadd.s32 %s104, 1
      %p108 = scmp.eq.s32.totalorder %s28, 1
      %p109 = scmp.ne.s32.totalorder %s104, %s106
      %p110 = scmp.eq.s32.totalorder %s28, 0
      %p111 = por %p109, %p110
      %p112 = scmp.ne.s32.totalorder %s104, %s106
      %p113 = scmp.eq.s32.totalorder %s33, 1
      %p114 = por %p112, %p113
      %p115 = scmp.ne.s32.totalorder %s106, %s107
      %p116 = scmp.eq.s32.totalorder %s33, 0
      %p117 = por %p115, %p116
      %p118 = scmp.ne.s32.totalorder %s106, %s107
      %p119 = scmp.eq.s32.totalorder %s34, 1
      %p120 = por %p118, %p119
      %p122 = scmp.ne.s32.totalorder %s107, %s121
      %p123 = scmp.eq.s32.totalorder %s34, 0
      %p124 = por %p122, %p123
      %s126 = sadd.s32 %s125, 1
      %p129 = scmp.eq.s32.totalorder %s28, 1
      %p130 = scmp.ne.s32.totalorder %s125, %s127
      %p131 = scmp.eq.s32.totalorder %s28, 0
      %p132 = por %p130, %p131
      %p133 = scmp.ne.s32.totalorder %s125, %s127
      %p134 = scmp.eq.s32.totalorder %s33, 1
      %p135 = por %p133, %p134
      %p136 = scmp.ne.s32.totalorder %s127, %s128
      %p137 = scmp.eq.s32.totalorder %s33, 0
      %p138 = por %p136, %p137
      %p139 = scmp.ne.s32.totalorder %s127, %s128
      %p140 = scmp.eq.s32.totalorder %s34, 1
      %p141 = por %p139, %p140
      %p143 = scmp.ne.s32.totalorder %s128, %s142
      %p144 = scmp.eq.s32.totalorder %s34, 0
      %p145 = por %p143, %p144
      %s147 = sadd.s32 %s146, 1
      %p150 = scmp.eq.s32.totalorder %s28, 1
      %p151 = scmp.ne.s32.totalorder %s146, %s148
      %p152 = scmp.eq.s32.totalorder %s28, 0
      %p153 = por %p151, %p152
      %p154 = scmp.ne.s32.totalorder %s146, %s148
      %p155 = scmp.eq.s32.totalorder %s33, 1
      %p156 = por %p154, %p155
      %p157 = scmp.ne.s32.totalorder %s148, %s149
      %p158 = scmp.eq.s32.totalorder %s33, 0
      %p159 = por %p157, %p158
      %p160 = scmp.ne.s32.totalorder %s148, %s149
      %p161 = scmp.eq.s32.totalorder %s34, 1
      %p162 = por %p160, %p161
      %p164 = scmp.ne.s32.totalorder %s149, %s163
      %p165 = scmp.eq.s32.totalorder %s34, 0
      %p166 = por %p164, %p165
      %s168 = sadd.s32 %s167, 1
      %p171 = scmp.eq.s32.totalorder %s28, 1
      %p172 = scmp.ne.s32.totalorder %s167, %s169
      %p173 = scmp.eq.s32.totalorder %s28, 0
      %p174 = por %p172, %p173
      %p175 = scmp.ne.s32.totalorder %s167, %s169
      %p176 = scmp.eq.s32.totalorder %s33, 1
      %p177 = por %p175, %p176
      %p178 = scmp.ne.s32.totalorder %s169, %s170
      %p179 = scmp.eq.s32.totalorder %s33, 0
      %p180 = por %p178, %p179
      %p181 = scmp.ne.s32.totalorder %s169, %s170
      %p182 = scmp.eq.s32.totalorder %s34, 1
      %p183 = por %p181, %p182
      %p185 = scmp.ne.s32.totalorder %s170, %s184
      %p186 = scmp.eq.s32.totalorder %s34, 0
      %p187 = por %p185, %p186
      %s189 = sadd.s32 %s188, 1
      %p192 = scmp.eq.s32.totalorder %s28, 1
      %p193 = scmp.ne.s32.totalorder %s188, %s190
      %p194 = scmp.eq.s32.totalorder %s28, 0
      %p195 = por %p193, %p194
      %p196 = scmp.ne.s32.totalorder %s188, %s190
      %p197 = scmp.eq.s32.totalorder %s33, 1
      %p198 = por %p196, %p197
      %p199 = scmp.ne.s32.totalorder %s190, %s191
      %p200 = scmp.eq.s32.totalorder %s33, 0
      %p201 = por %p199, %p200
      %p202 = scmp.ne.s32.totalorder %s190, %s191
      %p203 = scmp.eq.s32.totalorder %s34, 1
      %p204 = por %p202, %p203
      %p206 = scmp.ne.s32.totalorder %s191, %s205
      %p207 = scmp.eq.s32.totalorder %s34, 0
      %p208 = por %p206, %p207
      %s210 = sadd.s32 %s209, 1
      %p213 = scmp.eq.s32.totalorder %s28, 1
      %p214 = scmp.ne.s32.totalorder %s209, %s211
      %p215 = scmp.eq.s32.totalorder %s28, 0
      %p216 = por %p214, %p215
      %p217 = scmp.ne.s32.totalorder %s209, %s211
      %p218 = scmp.eq.s32.totalorder %s33, 1
      %p219 = por %p217, %p218
      %p220 = scmp.ne.s32.totalorder %s211, %s212
      %p221 = scmp.eq.s32.totalorder %s33, 0
      %p222 = por %p220, %p221
      %p223 = scmp.ne.s32.totalorder %s211, %s212
      %p224 = scmp.eq.s32.totalorder %s34, 1
      %p225 = por %p223, %p224
      %p227 = scmp.ne.s32.totalorder %s212, %s226
      %p228 = scmp.eq.s32.totalorder %s34, 0
      %p229 = por %p227, %p228
      %s231 = sadd.s32 %s230, 1
      %p234 = scmp.eq.s32.totalorder %s28, 1
      %p235 = scmp.ne.s32.totalorder %s230, %s232
      %p236 = scmp.eq.s32.totalorder %s28, 0
      %p237 = por %p235, %p236
      %p238 = scmp.ne.s32.totalorder %s230, %s232
      %p239 = scmp.eq.s32.totalorder %s33, 1
      %p240 = por %p238, %p239
      %p241 = scmp.ne.s32.totalorder %s232, %s233
      %p242 = scmp.eq.s32.totalorder %s33, 0
      %p243 = por %p241, %p242
      %p244 = scmp.ne.s32.totalorder %s232, %s233
      %p245 = scmp.eq.s32.totalorder %s34, 1
      %p246 = por %p244, %p245
      %p248 = scmp.ne.s32.totalorder %s233, %s247
      %p249 = scmp.eq.s32.totalorder %s34, 0
      %p250 = por %p248, %p249
      %s252 = sadd.s32 %s251, 1
      %p255 = scmp.eq.s32.totalorder %s28, 1
      %p256 = scmp.ne.s32.totalorder %s251, %s253
      %p257 = scmp.eq.s32.totalorder %s28, 0
      %p258 = por %p256, %p257
      %p259 = scmp.ne.s32.totalorder %s251, %s253
      %p260 = scmp.eq.s32.totalorder %s33, 1
      %p261 = por %p259, %p260
      %p262 = scmp.ne.s32.totalorder %s253, %s254
      %p263 = scmp.eq.s32.totalorder %s33, 0
      %p264 = por %p262, %p263
      %p265 = scmp.ne.s32.totalorder %s253, %s254
      %p266 = scmp.eq.s32.totalorder %s34, 1
      %p267 = por %p265, %p266
      %p269 = scmp.ne.s32.totalorder %s254, %s268
      %p270 = scmp.eq.s32.totalorder %s34, 0
      %p271 = por %p269, %p270
      %s273 = sadd.s32 %s272, 1
      %p276 = scmp.eq.s32.totalorder %s28, 1
      %p277 = scmp.ne.s32.totalorder %s272, %s274
      %p278 = scmp.eq.s32.totalorder %s28, 0
      %p279 = por %p277, %p278
      %p280 = scmp.ne.s32.totalorder %s272, %s274
      %p281 = scmp.eq.s32.totalorder %s33, 1
      %p282 = por %p280, %p281
      %p283 = scmp.ne.s32.totalorder %s274, %s275
      %p284 = scmp.eq.s32.totalorder %s33, 0
      %p285 = por %p283, %p284
      %p286 = scmp.ne.s32.totalorder %s274, %s275
      %p287 = scmp.eq.s32.totalorder %s34, 1
      %p288 = por %p286, %p287
      %p290 = scmp.ne.s32.totalorder %s275, %s289
      %p291 = scmp.eq.s32.totalorder %s34, 0
      %p292 = por %p290, %p291
      %s294 = sadd.s32 %s293, 1
      %p297 = scmp.eq.s32.totalorder %s28, 1
      %p298 = scmp.ne.s32.totalorder %s293, %s295
      %p299 = scmp.eq.s32.totalorder %s28, 0
      %p300 = por %p298, %p299
      %p301 = scmp.ne.s32.totalorder %s293, %s295
      %p302 = scmp.eq.s32.totalorder %s33, 1
      %p303 = por %p301, %p302
      %p304 = scmp.ne.s32.totalorder %s295, %s296
      %p305 = scmp.eq.s32.totalorder %s33, 0
      %p306 = por %p304, %p305
      %p307 = scmp.ne.s32.totalorder %s295, %s296
      %p308 = scmp.eq.s32.totalorder %s34, 1
      %p309 = por %p307, %p308
      %p311 = scmp.ne.s32.totalorder %s296, %s310
      %p312 = scmp.eq.s32.totalorder %s34, 0
      %p313 = por %p311, %p312
      %s315 = sadd.s32 %s314, 1
      %p318 = scmp.eq.s32.totalorder %s28, 1
      %p319 = scmp.ne.s32.totalorder %s314, %s316
      %p320 = scmp.eq.s32.totalorder %s28, 0
      %p321 = por %p319, %p320
      %p322 = scmp.ne.s32.totalorder %s314, %s316
      %p323 = scmp.eq.s32.totalorder %s33, 1
      %p324 = por %p322, %p323
      %p325 = scmp.ne.s32.totalorder %s316, %s317
      %p326 = scmp.eq.s32.totalorder %s33, 0
      %p327 = por %p325, %p326
      %p328 = scmp.ne.s32.totalorder %s316, %s317
      %p329 = scmp.eq.s32.totalorder %s34, 1
      %p330 = por %p328, %p329
      %p332 = scmp.ne.s32.totalorder %s317, %s331
      %p333 = scmp.eq.s32.totalorder %s34, 0
      %p334 = por %p332, %p333
      %s336 = sadd.s32 %s335, 1
      %p339 = scmp.eq.s32.totalorder %s28, 1
      %p340 = scmp.ne.s32.totalorder %s335, %s337
      %p341 = scmp.eq.s32.totalorder %s28, 0
      %p342 = por %p340, %p341
      %p343 = scmp.ne.s32.totalorder %s335, %s337
      %p344 = scmp.eq.s32.totalorder %s33, 1
      %p345 = por %p343, %p344
      %p346 = scmp.ne.s32.totalorder %s337, %s338
      %p347 = scmp.eq.s32.totalorder %s33, 0
      %p348 = por %p346, %p347
      %p349 = scmp.ne.s32.totalorder %s337, %s338
      %p350 = scmp.eq.s32.totalorder %s34, 1
      %p351 = por %p349, %p350
      %p353 = scmp.ne.s32.totalorder %s338, %s352
      %p354 = scmp.eq.s32.totalorder %s34, 0
      %p355 = por %p353, %p354
      %s357 = sadd.s32 %s356, 1
      %p360 = scmp.eq.s32.totalorder %s28, 1
      %p361 = scmp.ne.s32.totalorder %s356, %s358
      %p362 = scmp.eq.s32.totalorder %s28, 0
      %p363 = por %p361, %p362
      %p364 = scmp.ne.s32.totalorder %s356, %s358
      %p365 = scmp.eq.s32.totalorder %s33, 1
      %p366 = por %p364, %p365
      %p367 = scmp.ne.s32.totalorder %s358, %s359
      %p368 = scmp.eq.s32.totalorder %s33, 0
      %p369 = por %p367, %p368
      %p370 = scmp.ne.s32.totalorder %s358, %s359
      %p371 = scmp.eq.s32.totalorder %s34, 1
      %p372 = por %p370, %p371
      %p374 = scmp.ne.s32.totalorder %s359, %s373
      %p375 = scmp.eq.s32.totalorder %s34, 0
      %p376 = por %p374, %p375
      %s378 = sadd.s32 %s377, 1
      %p381 = scmp.eq.s32.totalorder %s28, 1
      %p382 = scmp.ne.s32.totalorder %s377, %s379
      %p383 = scmp.eq.s32.totalorder %s28, 0
      %p384 = por %p382, %p383
      %p385 = scmp.ne.s32.totalorder %s377, %s379
      %p386 = scmp.eq.s32.totalorder %s33, 1
      %p387 = por %p385, %p386
      %p388 = scmp.ne.s32.totalorder %s379, %s380
      %p389 = scmp.eq.s32.totalorder %s33, 0
      %p390 = por %p388, %p389
      %p391 = scmp.ne.s32.totalorder %s379, %s380
      %p392 = scmp.eq.s32.totalorder %s34, 1
      %p393 = por %p391, %p392
      %p395 = scmp.ne.s32.totalorder %s380, %s394
      %p396 = scmp.eq.s32.totalorder %s34, 0
      %p397 = por %p395, %p396
      %s399 = sadd.s32 %s398, 1
      %p402 = scmp.eq.s32.totalorder %s28, 1
      %p403 = scmp.ne.s32.totalorder %s398, %s400
      %p404 = scmp.eq.s32.totalorder %s28, 0
      %p405 = por %p403, %p404
      %p406 = scmp.ne.s32.totalorder %s398, %s400
      %p407 = scmp.eq.s32.totalorder %s33, 1
      %p408 = por %p406, %p407
      %p409 = scmp.ne.s32.totalorder %s400, %s401
      %p410 = scmp.eq.s32.totalorder %s33, 0
      %p411 = por %p409, %p410
      %p412 = scmp.ne.s32.totalorder %s400, %s401
      %p413 = scmp.eq.s32.totalorder %s34, 1
      %p414 = por %p412, %p413
      %p416 = scmp.ne.s32.totalorder %s401, %s415
      %p417 = scmp.eq.s32.totalorder %s34, 0
      %p418 = por %p416, %p417
      %s420 = sadd.s32 %s419, 1
      %p423 = scmp.eq.s32.totalorder %s28, 1
      %p424 = scmp.ne.s32.totalorder %s419, %s421
      %p425 = scmp.eq.s32.totalorder %s28, 0
      %p426 = por %p424, %p425
      %p427 = scmp.ne.s32.totalorder %s419, %s421
      %p428 = scmp.eq.s32.totalorder %s33, 1
      %p429 = por %p427, %p428
      %p430 = scmp.ne.s32.totalorder %s421, %s422
      %p431 = scmp.eq.s32.totalorder %s33, 0
      %p432 = por %p430, %p431
      %p433 = scmp.ne.s32.totalorder %s421, %s422
      %p434 = scmp.eq.s32.totalorder %s34, 1
      %p435 = por %p433, %p434
      %p437 = scmp.ne.s32.totalorder %s422, %s436
      %p438 = scmp.eq.s32.totalorder %s34, 0
      %p439 = por %p437, %p438
      %s440 = ssub.s32 %s28, %s35
      %p441 = scmp.eq.s32.totalorder %s440, 0
      %s443 = sadd.s32 %s442, 1
      %s444 = scalar_select %p441, %s442, %s443
      %p447 = pneg %p441
      %p448 = scmp.eq.s32.totalorder %s28, 1
      %p449 = por %p447, %p448
      %p450 = scmp.ne.s32.totalorder %s442, %s445
      %p451 = scmp.eq.s32.totalorder %s28, 0
      %p452 = por %p450, %p451
      %p453 = scmp.ne.s32.totalorder %s442, %s445
      %p454 = scmp.eq.s32.totalorder %s33, 1
      %p455 = por %p453, %p454
      %p456 = scmp.ne.s32.totalorder %s445, %s446
      %p457 = scmp.eq.s32.totalorder %s33, 0
      %p458 = por %p456, %p457
      %p459 = scmp.ne.s32.totalorder %s445, %s446
      %p460 = scmp.eq.s32.totalorder %s34, 1
      %p461 = por %p459, %p460
      %p463 = scmp.ne.s32.totalorder %s446, %s462
      %p464 = scmp.eq.s32.totalorder %s34, 0
      %p465 = por %p463, %p464
      %p466 = scmp.le.s32.totalorder 1, %s28
      %p467 = scmp.lt.s32.totalorder %s28, 3
      %p468 = pnand %p466, %p467
      %p469 = pneg %p468
      // Predicated region
      $region9: #{net_forward.1} parent=5 // pred_check
        _
      $region10: #{net_forward.1} parent=5 // pred_check_branch
        %471 = sbr.rel (%p468) target = $region12
      $region11: #{net_forward.1} parent=5 // pred_region
        %s472 = ssub.s32 %s28, 1
        // Predicated region
        $region13: #{net_forward.1} parent=11 // pred_check
          %p473 = pneg %p75
        $region14: #{net_forward.1} parent=11 // pred_check_branch
          %475 = sbr.rel (%p473) target = $region16
        $region15: #{net_forward.1} parent=11 // pred_region
          _
        $region16: #{net_forward.1} parent=11 // pred_fallthru
          _
        // Predicated region
        $region17: #{net_forward.1} parent=11 // pred_check
          %p476 = pneg %p96
        $region18: #{net_forward.1} parent=11 // pred_check_branch
          %478 = sbr.rel (%p476) target = $region20
        $region19: #{net_forward.1} parent=11 // pred_region
          _
        $region20: #{net_forward.1} parent=11 // pred_fallthru
          _
        // Predicated region
        $region21: #{net_forward.1} parent=11 // pred_check
          %p479 = pneg %p117
        $region22: #{net_forward.1} parent=11 // pred_check_branch
          %481 = sbr.rel (%p479) target = $region24
        $region23: #{net_forward.1} parent=11 // pred_region
          _
        $region24: #{net_forward.1} parent=11 // pred_fallthru
          _
        // Predicated region
        $region25: #{net_forward.1} parent=11 // pred_check
          %p482 = pneg %p138
        $region26: #{net_forward.1} parent=11 // pred_check_branch
          %484 = sbr.rel (%p482) target = $region28
        $region27: #{net_forward.1} parent=11 // pred_region
          _
        $region28: #{net_forward.1} parent=11 // pred_fallthru
          _
        // Predicated region
        $region29: #{net_forward.1} parent=11 // pred_check
          %p485 = pneg %p159
        $region30: #{net_forward.1} parent=11 // pred_check_branch
          %487 = sbr.rel (%p485) target = $region32
        $region31: #{net_forward.1} parent=11 // pred_region
          _
        $region32: #{net_forward.1} parent=11 // pred_fallthru
          _
        // Predicated region
        $region33: #{net_forward.1} parent=11 // pred_check
          %p488 = pneg %p180
        $region34: #{net_forward.1} parent=11 // pred_check_branch
          %490 = sbr.rel (%p488) target = $region36
        $region35: #{net_forward.1} parent=11 // pred_region
          _
        $region36: #{net_forward.1} parent=11 // pred_fallthru
          _
        // Predicated region
        $region37: #{net_forward.1} parent=11 // pred_check
          %p491 = pneg %p201
        $region38: #{net_forward.1} parent=11 // pred_check_branch
          %493 = sbr.rel (%p491) target = $region40
        $region39: #{net_forward.1} parent=11 // pred_region
          _
        $region40: #{net_forward.1} parent=11 // pred_fallthru
          _
        // Predicated region
        $region41: #{net_forward.1} parent=11 // pred_check
          %p494 = pneg %p222
        $region42: #{net_forward.1} parent=11 // pred_check_branch
          %496 = sbr.rel (%p494) target = $region44
        $region43: #{net_forward.1} parent=11 // pred_region
          _
        $region44: #{net_forward.1} parent=11 // pred_fallthru
          _
        // Predicated region
        $region45: #{net_forward.1} parent=11 // pred_check
          %p497 = pneg %p243
        $region46: #{net_forward.1} parent=11 // pred_check_branch
          %499 = sbr.rel (%p497) target = $region48
        $region47: #{net_forward.1} parent=11 // pred_region
          _
        $region48: #{net_forward.1} parent=11 // pred_fallthru
          _
        // Predicated region
        $region49: #{net_forward.1} parent=11 // pred_check
          %p500 = pneg %p264
        $region50: #{net_forward.1} parent=11 // pred_check_branch
          %502 = sbr.rel (%p500) target = $region52
        $region51: #{net_forward.1} parent=11 // pred_region
          _
        $region52: #{net_forward.1} parent=11 // pred_fallthru
          _
        // Predicated region
        $region53: #{net_forward.1} parent=11 // pred_check
          %p503 = pneg %p285
        $region54: #{net_forward.1} parent=11 // pred_check_branch
          %505 = sbr.rel (%p503) target = $region56
        $region55: #{net_forward.1} parent=11 // pred_region
          _
        $region56: #{net_forward.1} parent=11 // pred_fallthru
          _
        // Predicated region
        $region57: #{net_forward.1} parent=11 // pred_check
          %p506 = pneg %p306
        $region58: #{net_forward.1} parent=11 // pred_check_branch
          %508 = sbr.rel (%p506) target = $region60
        $region59: #{net_forward.1} parent=11 // pred_region
          _
        $region60: #{net_forward.1} parent=11 // pred_fallthru
          _
        // Predicated region
        $region61: #{net_forward.1} parent=11 // pred_check
          %p509 = pneg %p327
        $region62: #{net_forward.1} parent=11 // pred_check_branch
          %511 = sbr.rel (%p509) target = $region64
        $region63: #{net_forward.1} parent=11 // pred_region
          _
        $region64: #{net_forward.1} parent=11 // pred_fallthru
          _
        // Predicated region
        $region65: #{net_forward.1} parent=11 // pred_check
          %p512 = pneg %p348
        $region66: #{net_forward.1} parent=11 // pred_check_branch
          %514 = sbr.rel (%p512) target = $region68
        $region67: #{net_forward.1} parent=11 // pred_region
          _
        $region68: #{net_forward.1} parent=11 // pred_fallthru
          _
        // Predicated region
        $region69: #{net_forward.1} parent=11 // pred_check
          %p515 = pneg %p369
        $region70: #{net_forward.1} parent=11 // pred_check_branch
          %517 = sbr.rel (%p515) target = $region72
        $region71: #{net_forward.1} parent=11 // pred_region
          _
        $region72: #{net_forward.1} parent=11 // pred_fallthru
          _
        // Predicated region
        $region73: #{net_forward.1} parent=11 // pred_check
          %p518 = pneg %p390
        $region74: #{net_forward.1} parent=11 // pred_check_branch
          %520 = sbr.rel (%p518) target = $region76
        $region75: #{net_forward.1} parent=11 // pred_region
          _
        $region76: #{net_forward.1} parent=11 // pred_fallthru
          _
        // Predicated region
        $region77: #{net_forward.1} parent=11 // pred_check
          %p521 = pneg %p411
        $region78: #{net_forward.1} parent=11 // pred_check_branch
          %523 = sbr.rel (%p521) target = $region80
        $region79: #{net_forward.1} parent=11 // pred_region
          _
        $region80: #{net_forward.1} parent=11 // pred_fallthru
          _
        // Predicated region
        $region81: #{net_forward.1} parent=11 // pred_check
          %p524 = pneg %p432
        $region82: #{net_forward.1} parent=11 // pred_check_branch
          %526 = sbr.rel (%p524) target = $region84
        $region83: #{net_forward.1} parent=11 // pred_region
          _
        $region84: #{net_forward.1} parent=11 // pred_fallthru
          _
      $region12: #{net_forward.1} parent=5 // pred_fallthru
        _
      %p527 = scmp.lt.s32.totalorder %s28, 2
      // Predicated region
      $region85: #{net_forward.1} parent=5 // pred_check
        %p528 = pneg %p527
      $region86: #{net_forward.1} parent=5 // pred_check_branch
        %530 = sbr.rel (%p528) target = $region88
      $region87: #{net_forward.1} parent=5 // pred_region
        // Predicated region
        $region89: #{net_forward.1} parent=87 // pred_check
          %p531 = pneg %p48
        $region90: #{net_forward.1} parent=87 // pred_check_branch
          %533 = sbr.rel (%p531) target = $region92
        $region91: #{net_forward.1} parent=87 // pred_region
          %p534 = scmp.lt.s32.totalorder %s28, 1
          %s535 = scalar_select %p534, %s28, 1
          %s536 = smul.addr %s535, 4
          %s537 = smul.addr %s536, 8
          %s538 = scalar_lea.vmem %s0, %s537
        $region92: #{net_forward.1} parent=87 // pred_fallthru
          _
      $region88: #{net_forward.1} parent=5 // pred_fallthru
        _
      %p539 = scmp.le.s32.totalorder 1, %s28
      %p540 = scmp.lt.s32.totalorder %s28, 3
      %p541 = pnand %p539, %p540
      %p542 = pneg %p541
      // Predicated region
      $region93: #{net_forward.1} parent=5 // pred_check
        _
      $region94: #{net_forward.1} parent=5 // pred_check_branch
        %544 = sbr.rel (%p541) target = $region96
      $region95: #{net_forward.1} parent=5 // pred_region
        %s545 = ssub.s32 %s28, 1
        %p546 = scmp.lt.s32.totalorder %s33, 1
        %s547 = scalar_select %p546, %s33, 1
        %s548 = smul.addr %s547, 4
        %s549 = smul.addr %s548, 8
        %s550 = scalar_lea.vmem %s0, %s549
        %p551 = pneg %p54
        %p552 = pneg %p51
        %p553 = pneg %p75
        %p554 = pneg %p72
        %p555 = pneg %p96
        %p556 = pneg %p93
        %p557 = pneg %p117
        %p558 = pneg %p114
        %p559 = pneg %p138
        %p560 = pneg %p135
        %p561 = pneg %p159
        %p562 = pneg %p156
        %p563 = pneg %p180
        %p564 = pneg %p177
        %p565 = pneg %p201
        %p566 = pneg %p198
        %p567 = pneg %p222
        %p568 = pneg %p219
        %p569 = pneg %p243
        %p570 = pneg %p240
        %p571 = pneg %p264
        %p572 = pneg %p261
        %p573 = pneg %p285
        %p574 = pneg %p282
        %p575 = pneg %p306
        %p576 = pneg %p303
        %p577 = pneg %p327
        %p578 = pneg %p324
        %p579 = pneg %p348
        %p580 = pneg %p345
        %p581 = pneg %p369
        %p582 = pneg %p366
        %p583 = pneg %p390
        %p584 = pneg %p387
        %p585 = pneg %p411
        %p586 = pneg %p408
        %p587 = pneg %p432
        %p588 = pneg %p429
        %p589 = pneg %p458
        %p590 = pneg %p455
        %s591 = sand.u32 %s445, 1
        %s592 = scalar_lea.sflag [#allocation3], %s591
        %s593 = sand.u32 %s445, 1
        %s594 = scalar_lea.vmem [#allocation2], %s593
        %p595 = scmp.lt.s32.totalorder %s33, 1
        %s596 = scalar_select %p595, %s33, 1
        %s597 = smul.addr %s596, 4
        %s598 = smul.addr %s597, 8
        %s599 = scalar_lea.vmem %s0, %s598
        %v601 = vld [vmem:[%s599] sm:$0xff]
        %v602 = vld [vmem:[%s599 + $0x8] sm:$0xff]
        %v603 = vld [vmem:[%s599 + $0x10] sm:$0xff]
        %v604 = vld [vmem:[%s599 + $0x18] sm:$0xff]
        %v605 = vpack.c.bf16 %v602, %v601
        %v606 = vpack.c.bf16 %v604, %v603
        %v607 = vld [vmem:[%s1] sm:$0xff]
        %v608 = vld [vmem:[%s1 + $0x8] sm:$0xff]
        %v609 = vld [vmem:[%s1 + $0x10] sm:$0xff]
        %v610 = vld [vmem:[%s1 + $0x18] sm:$0xff]
        %v611 = vld [vmem:[%s1 + $0x20] sm:$0xff]
        %v612 = vld [vmem:[%s1 + $0x28] sm:$0xff]
        %v613 = vld [vmem:[%s1 + $0x30] sm:$0xff]
        %v614 = vld [vmem:[%s1 + $0x38] sm:$0xff]
        %v615 = vld [vmem:[%s1 + $0x40] sm:$0xff]
        %v616 = vld [vmem:[%s1 + $0x48] sm:$0xff]
        %v617 = vld [vmem:[%s1 + $0x50] sm:$0xff]
        %v618 = vld [vmem:[%s1 + $0x58] sm:$0xff]
        %s619 = scalar_lea.vmem %s1, 96
        %v620 = vld [vmem:[%s619] sm:$0xff]
        %v621 = vld [vmem:[%s619 + $0x8] sm:$0xff]
        %v622 = vld [vmem:[%s619 + $0x10] sm:$0xff]
        %v623 = vld [vmem:[%s619 + $0x18] sm:$0xff]
        %v624 = vld [vmem:[%s619 + $0x20] sm:$0xff]
        %v625 = vld [vmem:[%s619 + $0x28] sm:$0xff]
        %v626 = vld [vmem:[%s619 + $0x30] sm:$0xff]
        %v627 = vld [vmem:[%s619 + $0x38] sm:$0xff]
        %v628 = vld [vmem:[%s619 + $0x40] sm:$0xff]
        %v629 = vld [vmem:[%s619 + $0x48] sm:$0xff]
        %v630 = vld [vmem:[%s619 + $0x50] sm:$0xff]
        %v631 = vld [vmem:[%s619 + $0x58] sm:$0xff]
        %vm632 = vsmask.f32 7424
        %v634 = vshrl.u32 %v605, 16
        %v636 = vshll.u32 %v605, 16
        %v638 = vrot.slane %v636, 1
        %v639 = vor.u32 %v634, %v638
        %v641 = vshll.u32 %v606, 16
        %v643 = vrot.slane %v641, 1
        %v644 = vsel %vm632, %v639, %v643
        %v645 = vshrl.u32 %v606, 16
        %v647 = vor.u32 %v645, %v643
        %v660 = vunpack.c.l.b16 %v620
        %v661 = vunpack.c.h.b16 %v620
        %v662 = vunpack.c.l.b16 %v621
        %v663 = vunpack.c.h.b16 %v621
        %v664 = vunpack.c.l.b16 %v622
        %v665 = vunpack.c.h.b16 %v622
        %v666 = vunpack.c.l.b16 %v623
        %v667 = vunpack.c.h.b16 %v623
        %v668 = vunpack.c.l.b16 %v624
        %v669 = vunpack.c.h.b16 %v624
        %v670 = vunpack.c.l.b16 %v625
        %v671 = vunpack.c.h.b16 %v625
        %v672 = vunpack.c.l.b16 %v626
        %v673 = vunpack.c.h.b16 %v626
        %v674 = vunpack.c.l.b16 %v627
        %v675 = vunpack.c.h.b16 %v627
        %v676 = vunpack.c.l.b16 %v628
        %v677 = vunpack.c.h.b16 %v628
        %v678 = vunpack.c.l.b16 %v629
        %v679 = vunpack.c.h.b16 %v629
        %v680 = vunpack.c.l.b16 %v630
        %v681 = vunpack.c.h.b16 %v630
        %v682 = vunpack.c.l.b16 %v631
        %v683 = vunpack.c.h.b16 %v631
        %v684 = vpack.c.b16 %v662, %v660
        %v685 = vpack.c.b16 %v663, %v661
        %v686 = vpack.c.b16 %v666, %v664
        %v687 = vpack.c.b16 %v667, %v665
        %v688 = vpack.c.b16 %v670, %v668
        %v689 = vpack.c.b16 %v671, %v669
        %v690 = vpack.c.b16 %v674, %v672
        %v691 = vpack.c.b16 %v675, %v673
        %v692 = vpack.c.b16 %v678, %v676
        %v693 = vpack.c.b16 %v679, %v677
        %v694 = vpack.c.b16 %v682, %v680
        %v695 = vpack.c.b16 %v683, %v681
        %vm708 = vcmask 785408
        %v710 = vsel %vm708, %v644, 0
        %v713 = vsel %vm708, %v647, 0
        %715 = vmatprep.subr.bf16.mxu0 %v685
        %716 = vmatpush1.bf16.msra.mxu0 %v684
        %717 = vmatprep.subr.bf16.mxu0 %v687
        %718 = vmatpush1.bf16.msra.mxu0 %v686
        %719 = vmatprep.subr.bf16.mxu0 %v689
        %720 = vmatpush1.bf16.msra.mxu0 %v688
        %721 = vmatprep.subr.bf16.mxu0 %v691
        %722 = vmatpush1.bf16.msra.mxu0 %v690
        %723 = vmatprep.subr.bf16.mxu0 %v693
        %724 = vmatpush1.bf16.msra.mxu0 %v692
        %725 = vmatprep.subr.bf16.mxu0 %v695
        %726 = vmatpush1.bf16.msra.mxu0 %v694
        %727 = vmatprep.subr.bf16.mxu0 0
        %728 = vmatpush1.bf16.msra.mxu0 0
        %729 = vmatprep.subr.bf16.mxu0 0
        %730 = vmatpush1.bf16.msra.mxu0 0
        %731 = vmatprep.subr.bf16.mxu0 0
        %732 = vmatpush1.bf16.msra.mxu0 0
        %733 = vmatprep.subr.bf16.mxu0 0
        %734 = vmatpush1.bf16.msra.mxu0 0
        %735 = vmatprep.subr.bf16.mxu0 0
        %736 = vmatpush1.bf16.msra.mxu0 0
        %737 = vmatprep.subr.bf16.mxu0 0
        %738 = vmatpush1.bf16.msra.mxu0 0
        %739 = vmatprep.subr.bf16.mxu0 0
        %740 = vmatpush1.bf16.msra.mxu0 0
        %741 = vmatprep.subr.bf16.mxu0 0
        %742 = vmatpush1.bf16.msra.mxu0 0
        %743 = vmatprep.subr.bf16.mxu0 0
        %744 = vmatpush1.bf16.msra.mxu0 0
        %745 = vmatprep.subr.bf16.mxu0 0
        %746 = vmatpush1.bf16.msra.mxu0 0
        %747 = vmatprep.mubr.bf16.mxu0 0
        %748 = vmatmul.mubr.bf16.gmra.mrb[0].mxu0 %v710
        %v749 = vpop.f32.mrb[0].mxu0
        %v750 = vadd.f32 0.0, %v749
        %v751 = vpop.f32.mrb[0].mxu0
        %v752 = vadd.f32 0.0, %v751
        %v753 = vpop.f32.mrb[0].mxu0
        %v754 = vadd.f32 0.0, %v753
        %v755 = vpop.f32.mrb[0].mxu0
        %v756 = vadd.f32 0.0, %v755
        %757 = vmatprep.mubr.bf16.mxu0 0
        %758 = vmatmul.mubr.bf16.gmra.mrb[0].mxu0 %v713
        %v759 = vpop.f32.mrb[0].mxu0
        %v760 = vadd.f32 0.0, %v759
        %v761 = vpop.f32.mrb[0].mxu0
        %v762 = vadd.f32 0.0, %v761
        %v763 = vpop.f32.mrb[0].mxu0
        %v764 = vadd.f32 0.0, %v763
        %v765 = vpop.f32.mrb[0].mxu0
        %v766 = vadd.f32 0.0, %v765
        %767 = vdwg.mxu0
        %v780 = vunpack.c.l.b16 %v607
        %v781 = vunpack.c.h.b16 %v607
        %v782 = vunpack.c.l.b16 %v608
        %v783 = vunpack.c.h.b16 %v608
        %v784 = vunpack.c.l.b16 %v609
        %v785 = vunpack.c.h.b16 %v609
        %v786 = vunpack.c.l.b16 %v610
        %v787 = vunpack.c.h.b16 %v610
        %v788 = vunpack.c.l.b16 %v611
        %v789 = vunpack.c.h.b16 %v611
        %v790 = vunpack.c.l.b16 %v612
        %v791 = vunpack.c.h.b16 %v612
        %v792 = vunpack.c.l.b16 %v613
        %v793 = vunpack.c.h.b16 %v613
        %v794 = vunpack.c.l.b16 %v614
        %v795 = vunpack.c.h.b16 %v614
        %v796 = vunpack.c.l.b16 %v615
        %v797 = vunpack.c.h.b16 %v615
        %v798 = vunpack.c.l.b16 %v616
        %v799 = vunpack.c.h.b16 %v616
        %v800 = vunpack.c.l.b16 %v617
        %v801 = vunpack.c.h.b16 %v617
        %v802 = vunpack.c.l.b16 %v618
        %v803 = vunpack.c.h.b16 %v618
        %v804 = vpack.c.b16 %v782, %v780
        %v805 = vpack.c.b16 %v783, %v781
        %v806 = vpack.c.b16 %v786, %v784
        %v807 = vpack.c.b16 %v787, %v785
        %v808 = vpack.c.b16 %v790, %v788
        %v809 = vpack.c.b16 %v791, %v789
        %v810 = vpack.c.b16 %v794, %v792
        %v811 = vpack.c.b16 %v795, %v793
        %v812 = vpack.c.b16 %v798, %v796
        %v813 = vpack.c.b16 %v799, %v797
        %v814 = vpack.c.b16 %v802, %v800
        %v815 = vpack.c.b16 %v803, %v801
        %v828 = vsel %vm708, %v605, 0
        %v830 = vsel %vm708, %v606, 0
        %832 = vmatprep.subr.bf16.mxu0 %v805
        %833 = vmatpush1.bf16.msra.mxu0 %v804
        %834 = vmatprep.subr.bf16.mxu0 %v807
        %835 = vmatpush1.bf16.msra.mxu0 %v806
        %836 = vmatprep.subr.bf16.mxu0 %v809
        %837 = vmatpush1.bf16.msra.mxu0 %v808
        %838 = vmatprep.subr.bf16.mxu0 %v811
        %839 = vmatpush1.bf16.msra.mxu0 %v810
        %840 = vmatprep.subr.bf16.mxu0 %v813
        %841 = vmatpush1.bf16.msra.mxu0 %v812
        %842 = vmatprep.subr.bf16.mxu0 %v815
        %843 = vmatpush1.bf16.msra.mxu0 %v814
        %844 = vmatprep.subr.bf16.mxu0 0
        %845 = vmatpush1.bf16.msra.mxu0 0
        %846 = vmatprep.subr.bf16.mxu0 0
        %847 = vmatpush1.bf16.msra.mxu0 0
        %848 = vmatprep.subr.bf16.mxu0 0
        %849 = vmatpush1.bf16.msra.mxu0 0
        %850 = vmatprep.subr.bf16.mxu0 0
        %851 = vmatpush1.bf16.msra.mxu0 0
        %852 = vmatprep.subr.bf16.mxu0 0
        %853 = vmatpush1.bf16.msra.mxu0 0
        %854 = vmatprep.subr.bf16.mxu0 0
        %855 = vmatpush1.bf16.msra.mxu0 0
        %856 = vmatprep.subr.bf16.mxu0 0
        %857 = vmatpush1.bf16.msra.mxu0 0
        %858 = vmatprep.subr.bf16.mxu0 0
        %859 = vmatpush1.bf16.msra.mxu0 0
        %860 = vmatprep.subr.bf16.mxu0 0
        %861 = vmatpush1.bf16.msra.mxu0 0
        %862 = vmatprep.subr.bf16.mxu0 0
        %863 = vmatpush1.bf16.msra.mxu0 0
        %864 = vmatprep.mubr.bf16.mxu0 0
        %865 = vmatmul.mubr.bf16.gmra.mrb[0].mxu0 %v828
        %v866 = vpop.f32.mrb[0].mxu0
        %v867 = vadd.f32 %v750, %v866
        %v868 = vpop.f32.mrb[0].mxu0
        %v869 = vadd.f32 %v752, %v868
        %v870 = vpop.f32.mrb[0].mxu0
        %v871 = vadd.f32 %v754, %v870
        %v872 = vpop.f32.mrb[0].mxu0
        %v873 = vadd.f32 %v756, %v872
        %874 = vmatprep.mubr.bf16.mxu0 0
        %875 = vmatmul.mubr.bf16.gmra.mrb[0].mxu0 %v830
        %v876 = vpop.f32.mrb[0].mxu0
        %v877 = vadd.f32 %v760, %v876
        %v878 = vpop.f32.mrb[0].mxu0
        %v879 = vadd.f32 %v762, %v878
        %v880 = vpop.f32.mrb[0].mxu0
        %v881 = vadd.f32 %v764, %v880
        %v882 = vpop.f32.mrb[0].mxu0
        %v883 = vadd.f32 %v766, %v882
        %884 = vdwg.mxu0
        %s885 = scalar_lea.vmem %s1, 192
        %v886 = vld [vmem:[%s885] sm:$0xff]
        %v887 = vld [vmem:[%s885 + $0x8] sm:$0xff]
        %v888 = vld [vmem:[%s885 + $0x10] sm:$0xff]
        %v889 = vld [vmem:[%s885 + $0x18] sm:$0xff]
        %v890 = vld [vmem:[%s885 + $0x20] sm:$0xff]
        %v891 = vld [vmem:[%s885 + $0x28] sm:$0xff]
        %v892 = vld [vmem:[%s885 + $0x30] sm:$0xff]
        %v893 = vld [vmem:[%s885 + $0x38] sm:$0xff]
        %v894 = vld [vmem:[%s885 + $0x40] sm:$0xff]
        %v895 = vld [vmem:[%s885 + $0x48] sm:$0xff]
        %v896 = vld [vmem:[%s885 + $0x50] sm:$0xff]
        %v897 = vld [vmem:[%s885 + $0x58] sm:$0xff]
        %vm900 = vcmask 1046528
        %v901 = vrot.slane %v605, 1
        %v902 = vrot.slane %v606, 1
        %v903 = vsel %vm900, %v901, %v902
        %v916 = vunpack.c.l.b16 %v886
        %v917 = vunpack.c.h.b16 %v886
        %v918 = vunpack.c.l.b16 %v887
        %v919 = vunpack.c.h.b16 %v887
        %v920 = vunpack.c.l.b16 %v888
        %v921 = vunpack.c.h.b16 %v888
        %v922 = vunpack.c.l.b16 %v889
        %v923 = vunpack.c.h.b16 %v889
        %v924 = vunpack.c.l.b16 %v890
        %v925 = vunpack.c.h.b16 %v890
        %v926 = vunpack.c.l.b16 %v891
        %v927 = vunpack.c.h.b16 %v891
        %v928 = vunpack.c.l.b16 %v892
        %v929 = vunpack.c.h.b16 %v892
        %v930 = vunpack.c.l.b16 %v893
        %v931 = vunpack.c.h.b16 %v893
        %v932 = vunpack.c.l.b16 %v894
        %v933 = vunpack.c.h.b16 %v894
        %v934 = vunpack.c.l.b16 %v895
        %v935 = vunpack.c.h.b16 %v895
        %v936 = vunpack.c.l.b16 %v896
        %v937 = vunpack.c.h.b16 %v896
        %v938 = vunpack.c.l.b16 %v897
        %v939 = vunpack.c.h.b16 %v897
        %v940 = vpack.c.b16 %v918, %v916
        %v941 = vpack.c.b16 %v919, %v917
        %v942 = vpack.c.b16 %v922, %v920
        %v943 = vpack.c.b16 %v923, %v921
        %v944 = vpack.c.b16 %v926, %v924
        %v945 = vpack.c.b16 %v927, %v925
        %v946 = vpack.c.b16 %v930, %v928
        %v947 = vpack.c.b16 %v931, %v929
        %v948 = vpack.c.b16 %v934, %v932
        %v949 = vpack.c.b16 %v935, %v933
        %v950 = vpack.c.b16 %v938, %v936
        %v951 = vpack.c.b16 %v939, %v937
        %v965 = vsel %vm708, %v903, 0
        %v968 = vsel %vm708, %v902, 0
        %970 = vmatprep.subr.bf16.mxu0 %v941
        %971 = vmatpush1.bf16.msra.mxu0 %v940
        %972 = vmatprep.subr.bf16.mxu0 %v943
        %973 = vmatpush1.bf16.msra.mxu0 %v942
        %974 = vmatprep.subr.bf16.mxu0 %v945
        %975 = vmatpush1.bf16.msra.mxu0 %v944
        %976 = vmatprep.subr.bf16.mxu0 %v947
        %977 = vmatpush1.bf16.msra.mxu0 %v946
        %978 = vmatprep.subr.bf16.mxu0 %v949
        %979 = vmatpush1.bf16.msra.mxu0 %v948
        %980 = vmatprep.subr.bf16.mxu0 %v951
        %981 = vmatpush1.bf16.msra.mxu0 %v950
        %982 = vmatprep.subr.bf16.mxu0 0
        %983 = vmatpush1.bf16.msra.mxu0 0
        %984 = vmatprep.subr.bf16.mxu0 0
        %985 = vmatpush1.bf16.msra.mxu0 0
        %986 = vmatprep.subr.bf16.mxu0 0
        %987 = vmatpush1.bf16.msra.mxu0 0
        %988 = vmatprep.subr.bf16.mxu0 0
        %989 = vmatpush1.bf16.msra.mxu0 0
        %990 = vmatprep.subr.bf16.mxu0 0
        %991 = vmatpush1.bf16.msra.mxu0 0
        %992 = vmatprep.subr.bf16.mxu0 0
        %993 = vmatpush1.bf16.msra.mxu0 0
        %994 = vmatprep.subr.bf16.mxu0 0
        %995 = vmatpush1.bf16.msra.mxu0 0
        %996 = vmatprep.subr.bf16.mxu0 0
        %997 = vmatpush1.bf16.msra.mxu0 0
        %998 = vmatprep.subr.bf16.mxu0 0
        %999 = vmatpush1.bf16.msra.mxu0 0
        %1000 = vmatprep.subr.bf16.mxu0 0
        %1001 = vmatpush1.bf16.msra.mxu0 0
        %1002 = vmatprep.mubr.bf16.mxu0 0
        %1003 = vmatmul.mubr.bf16.gmra.mrb[0].mxu0 %v965
        %v1004 = vpop.f32.mrb[0].mxu0
        %v1005 = vadd.f32 0.0, %v1004
        %v1006 = vpop.f32.mrb[0].mxu0
        %v1007 = vadd.f32 0.0, %v1006
        %v1008 = vpop.f32.mrb[0].mxu0
        %v1009 = vadd.f32 0.0, %v1008
        %v1010 = vpop.f32.mrb[0].mxu0
        %v1011 = vadd.f32 0.0, %v1010
        %1012 = vmatprep.mubr.bf16.mxu0 0
        %1013 = vmatmul.mubr.bf16.gmra.mrb[0].mxu0 %v968
        %v1014 = vpop.f32.mrb[0].mxu0
        %v1015 = vadd.f32 0.0, %v1014
        %v1016 = vpop.f32.mrb[0].mxu0
        %v1017 = vadd.f32 0.0, %v1016
        %v1018 = vpop.f32.mrb[0].mxu0
        %v1019 = vadd.f32 0.0, %v1018
        %v1020 = vpop.f32.mrb[0].mxu0
        %v1021 = vadd.f32 0.0, %v1020
        %1022 = vdwg.mxu0
        %v1023 = vadd.f32 %v867, %v1005
        %v1024 = vadd.f32 %v869, %v1007
        %v1025 = vadd.f32 %v871, %v1009
        %v1026 = vadd.f32 %v873, %v1011
        %v1027 = vadd.f32 %v877, %v1015
        %v1028 = vadd.f32 %v879, %v1017
        %v1029 = vadd.f32 %v881, %v1019
        %v1030 = vadd.f32 %v883, %v1021
        %s1031 = scalar_lea.vmem %s1, 288
        %v1032 = vld [vmem:[%s1031] sm:$0xff]
        %v1033 = vld [vmem:[%s1031 + $0x8] sm:$0xff]
        %v1034 = vld [vmem:[%s1031 + $0x10] sm:$0xff]
        %v1035 = vld [vmem:[%s1031 + $0x18] sm:$0xff]
        %v1036 = vld [vmem:[%s1031 + $0x20] sm:$0xff]
        %v1037 = vld [vmem:[%s1031 + $0x28] sm:$0xff]
        %v1038 = vld [vmem:[%s1031 + $0x30] sm:$0xff]
        %v1039 = vld [vmem:[%s1031 + $0x38] sm:$0xff]
        %v1040 = vld [vmem:[%s1031 + $0x40] sm:$0xff]
        %v1041 = vld [vmem:[%s1031 + $0x48] sm:$0xff]
        %v1042 = vld [vmem:[%s1031 + $0x50] sm:$0xff]
        %v1043 = vld [vmem:[%s1031 + $0x58] sm:$0xff]
        %vm1044 = vsmask.f32 6400
        %v1045 = vrot.slane %v634, 1
        %v1046 = vrot.slane %v636, 2
        %v1047 = vor.u32 %v1045, %v1046
        %v1048 = vrot.slane %v645, 1
        %v1049 = vrot.slane %v641, 2
        %v1050 = vor.u32 %v1048, %v1049
        %v1051 = vsel %vm1044, %v1047, %v1050
        %v1064 = vunpack.c.l.b16 %v1032
        %v1065 = vunpack.c.h.b16 %v1032
        %v1066 = vunpack.c.l.b16 %v1033
        %v1067 = vunpack.c.h.b16 %v1033
        %v1068 = vunpack.c.l.b16 %v1034
        %v1069 = vunpack.c.h.b16 %v1034
        %v1070 = vunpack.c.l.b16 %v1035
        %v1071 = vunpack.c.h.b16 %v1035
        %v1072 = vunpack.c.l.b16 %v1036
        %v1073 = vunpack.c.h.b16 %v1036
        %v1074 = vunpack.c.l.b16 %v1037
        %v1075 = vunpack.c.h.b16 %v1037
        %v1076 = vunpack.c.l.b16 %v1038
        %v1077 = vunpack.c.h.b16 %v1038
        %v1078 = vunpack.c.l.b16 %v1039
        %v1079 = vunpack.c.h.b16 %v1039
        %v1080 = vunpack.c.l.b16 %v1040
        %v1081 = vunpack.c.h.b16 %v1040
        %v1082 = vunpack.c.l.b16 %v1041
        %v1083 = vunpack.c.h.b16 %v1041
        %v1084 = vunpack.c.l.b16 %v1042
        %v1085 = vunpack.c.h.b16 %v1042
        %v1086 = vunpack.c.l.b16 %v1043
        %v1087 = vunpack.c.h.b16 %v1043
        %v1088 = vpack.c.b16 %v1066, %v1064
        %v1089 = vpack.c.b16 %v1067, %v1065
        %v1090 = vpack.c.b16 %v1070, %v1068
        %v1091 = vpack.c.b16 %v1071, %v1069
        %v1092 = vpack.c.b16 %v1074, %v1072
        %v1093 = vpack.c.b16 %v1075, %v1073
        %v1094 = vpack.c.b16 %v1078, %v1076
        %v1095 = vpack.c.b16 %v1079, %v1077
        %v1096 = vpack.c.b16 %v1082, %v1080
        %v1097 = vpack.c.b16 %v1083, %v1081
        %v1098 = vpack.c.b16 %v1086, %v1084
        %v1099 = vpack.c.b16 %v1087, %v1085
        %v1113 = vsel %vm708, %v1051, 0
        %v1116 = vsel %vm708, %v1050, 0
        %1118 = vmatprep.subr.bf16.mxu0 %v1089
        %1119 = vmatpush1.bf16.msra.mxu0 %v1088
        %1120 = vmatprep.subr.bf16.mxu0 %v1091
        %1121 = vmatpush1.bf16.msra.mxu0 %v1090
        %1122 = vmatprep.subr.bf16.mxu0 %v1093
        %1123 = vmatpush1.bf16.msra.mxu0 %v1092
        %1124 = vmatprep.subr.bf16.mxu0 %v1095
        %1125 = vmatpush1.bf16.msra.mxu0 %v1094
        %1126 = vmatprep.subr.bf16.mxu0 %v1097
        %1127 = vmatpush1.bf16.msra.mxu0 %v1096
        %1128 = vmatprep.subr.bf16.mxu0 %v1099
        %1129 = vmatpush1.bf16.msra.mxu0 %v1098
        %1130 = vmatprep.subr.bf16.mxu0 0
        %1131 = vmatpush1.bf16.msra.mxu0 0
        %1132 = vmatprep.subr.bf16.mxu0 0
        %1133 = vmatpush1.bf16.msra.mxu0 0
        %1134 = vmatprep.subr.bf16.mxu0 0
        %1135 = vmatpush1.bf16.msra.mxu0 0
        %1136 = vmatprep.subr.bf16.mxu0 0
        %1137 = vmatpush1.bf16.msra.mxu0 0
        %1138 = vmatprep.subr.bf16.mxu0 0
        %1139 = vmatpush1.bf16.msra.mxu0 0
        %1140 = vmatprep.subr.bf16.mxu0 0
        %1141 = vmatpush1.bf16.msra.mxu0 0
        %1142 = vmatprep.subr.bf16.mxu0 0
        %1143 = vmatpush1.bf16.msra.mxu0 0
        %1144 = vmatprep.subr.bf16.mxu0 0
        %1145 = vmatpush1.bf16.msra.mxu0 0
        %1146 = vmatprep.subr.bf16.mxu0 0
        %1147 = vmatpush1.bf16.msra.mxu0 0
        %1148 = vmatprep.subr.bf16.mxu0 0
        %1149 = vmatpush1.bf16.msra.mxu0 0
        %1150 = vmatprep.mubr.bf16.mxu0 0
        %1151 = vmatmul.mubr.bf16.gmra.mrb[0].mxu0 %v1113
        %v1152 = vpop.f32.mrb[0].mxu0
        %v1153 = vadd.f32 0.0, %v1152
        %v1154 = vpop.f32.mrb[0].mxu0
        %v1155 = vadd.f32 0.0, %v1154
        %v1156 = vpop.f32.mrb[0].mxu0
        %v1157 = vadd.f32 0.0, %v1156
        %v1158 = vpop.f32.mrb[0].mxu0
        %v1159 = vadd.f32 0.0, %v1158
        %1160 = vmatprep.mubr.bf16.mxu0 0
        %1161 = vmatmul.mubr.bf16.gmra.mrb[0].mxu0 %v1116
        %v1162 = vpop.f32.mrb[0].mxu0
        %v1163 = vadd.f32 0.0, %v1162
        %v1164 = vpop.f32.mrb[0].mxu0
        %v1165 = vadd.f32 0.0, %v1164
        %v1166 = vpop.f32.mrb[0].mxu0
        %v1167 = vadd.f32 0.0, %v1166
        %v1168 = vpop.f32.mrb[0].mxu0
        %v1169 = vadd.f32 0.0, %v1168
        %1170 = vdwg.mxu0
        %v1171 = vadd.f32 %v1023, %v1153
        %v1172 = vadd.f32 %v1024, %v1155
        %v1173 = vadd.f32 %v1025, %v1157
        %v1174 = vadd.f32 %v1026, %v1159
        %v1175 = vadd.f32 %v1027, %v1163
        %v1176 = vadd.f32 %v1028, %v1165
        %v1177 = vadd.f32 %v1029, %v1167
        %v1178 = vadd.f32 %v1030, %v1169
        %s1179 = scalar_lea.vmem %s1, 384
        %v1180 = vld [vmem:[%s1179] sm:$0xff]
        %v1181 = vld [vmem:[%s1179 + $0x8] sm:$0xff]
        %v1182 = vld [vmem:[%s1179 + $0x10] sm:$0xff]
        %v1183 = vld [vmem:[%s1179 + $0x18] sm:$0xff]
        %v1184 = vld [vmem:[%s1179 + $0x20] sm:$0xff]
        %v1185 = vld [vmem:[%s1179 + $0x28] sm:$0xff]
        %v1186 = vld [vmem:[%s1179 + $0x30] sm:$0xff]
        %v1187 = vld [vmem:[%s1179 + $0x38] sm:$0xff]
        %v1188 = vld [vmem:[%s1179 + $0x40] sm:$0xff]
        %v1189 = vld [vmem:[%s1179 + $0x48] sm:$0xff]
        %v1190 = vld [vmem:[%s1179 + $0x50] sm:$0xff]
        %v1191 = vld [vmem:[%s1179 + $0x58] sm:$0xff]
        %vm1192 = vcmask 1045504
        %v1193 = vrot.slane %v605, 2
        %v1194 = vrot.slane %v606, 2
        %v1195 = vsel %vm1192, %v1193, %v1194
        %v1208 = vunpack.c.l.b16 %v1180
        %v1209 = vunpack.c.h.b16 %v1180
        %v1210 = vunpack.c.l.b16 %v1181
        %v1211 = vunpack.c.h.b16 %v1181
        %v1212 = vunpack.c.l.b16 %v1182
        %v1213 = vunpack.c.h.b16 %v1182
        %v1214 = vunpack.c.l.b16 %v1183
        %v1215 = vunpack.c.h.b16 %v1183
        %v1216 = vunpack.c.l.b16 %v1184
        %v1217 = vunpack.c.h.b16 %v1184
        %v1218 = vunpack.c.l.b16 %v1185
        %v1219 = vunpack.c.h.b16 %v1185
        %v1220 = vunpack.c.l.b16 %v1186
        %v1221 = vunpack.c.h.b16 %v1186
        %v1222 = vunpack.c.l.b16 %v1187
        %v1223 = vunpack.c.h.b16 %v1187
        %v1224 = vunpack.c.l.b16 %v1188
        %v1225 = vunpack.c.h.b16 %v1188
        %v1226 = vunpack.c.l.b16 %v1189
        %v1227 = vunpack.c.h.b16 %v1189
        %v1228 = vunpack.c.l.b16 %v1190
        %v1229 = vunpack.c.h.b16 %v1190
        %v1230 = vunpack.c.l.b16 %v1191
        %v1231 = vunpack.c.h.b16 %v1191
        %v1232 = vpack.c.b16 %v1210, %v1208
        %v1233 = vpack.c.b16 %v1211, %v1209
        %v1234 = vpack.c.b16 %v1214, %v1212
        %v1235 = vpack.c.b16 %v1215, %v1213
        %v1236 = vpack.c.b16 %v1218, %v1216
        %v1237 = vpack.c.b16 %v1219, %v1217
        %v1238 = vpack.c.b16 %v1222, %v1220
        %v1239 = vpack.c.b16 %v1223, %v1221
        %v1240 = vpack.c.b16 %v1226, %v1224
        %v1241 = vpack.c.b16 %v1227, %v1225
        %v1242 = vpack.c.b16 %v1230, %v1228
        %v1243 = vpack.c.b16 %v1231, %v1229
        %v1257 = vsel %vm708, %v1195, 0
        %v1260 = vsel %vm708, %v1194, 0
        %1262 = vmatprep.subr.bf16.mxu0 %v1233
        %1263 = vmatpush1.bf16.msra.mxu0 %v1232
        %1264 = vmatprep.subr.bf16.mxu0 %v1235
        %1265 = vmatpush1.bf16.msra.mxu0 %v1234
        %1266 = vmatprep.subr.bf16.mxu0 %v1237
        %1267 = vmatpush1.bf16.msra.mxu0 %v1236
        %1268 = vmatprep.subr.bf16.mxu0 %v1239
        %1269 = vmatpush1.bf16.msra.mxu0 %v1238
        %1270 = vmatprep.subr.bf16.mxu0 %v1241
        %1271 = vmatpush1.bf16.msra.mxu0 %v1240
        %1272 = vmatprep.subr.bf16.mxu0 %v1243
        %1273 = vmatpush1.bf16.msra.mxu0 %v1242
        %1274 = vmatprep.subr.bf16.mxu0 0
        %1275 = vmatpush1.bf16.msra.mxu0 0
        %1276 = vmatprep.subr.bf16.mxu0 0
        %1277 = vmatpush1.bf16.msra.mxu0 0
        %1278 = vmatprep.subr.bf16.mxu0 0
        %1279 = vmatpush1.bf16.msra.mxu0 0
        %1280 = vmatprep.subr.bf16.mxu0 0
        %1281 = vmatpush1.bf16.msra.mxu0 0
        %1282 = vmatprep.subr.bf16.mxu0 0
        %1283 = vmatpush1.bf16.msra.mxu0 0
        %1284 = vmatprep.subr.bf16.mxu0 0
        %1285 = vmatpush1.bf16.msra.mxu0 0
        %1286 = vmatprep.subr.bf16.mxu0 0
        %1287 = vmatpush1.bf16.msra.mxu0 0
        %1288 = vmatprep.subr.bf16.mxu0 0
        %1289 = vmatpush1.bf16.msra.mxu0 0
        %1290 = vmatprep.subr.bf16.mxu0 0
        %1291 = vmatpush1.bf16.msra.mxu0 0
        %1292 = vmatprep.subr.bf16.mxu0 0
        %1293 = vmatpush1.bf16.msra.mxu0 0
        %1294 = vmatprep.mubr.bf16.mxu0 0
        %1295 = vmatmul.mubr.bf16.gmra.mrb[0].mxu0 %v1257
        %v1296 = vpop.f32.mrb[0].mxu0
        %v1297 = vadd.f32 0.0, %v1296
        %v1298 = vpop.f32.mrb[0].mxu0
        %v1299 = vadd.f32 0.0, %v1298
        %v1300 = vpop.f32.mrb[0].mxu0
        %v1301 = vadd.f32 0.0, %v1300
        %v1302 = vpop.f32.mrb[0].mxu0
        %v1303 = vadd.f32 0.0, %v1302
        %1304 = vmatprep.mubr.bf16.mxu0 0
        %1305 = vmatmul.mubr.bf16.gmra.mrb[0].mxu0 %v1260
        %v1306 = vpop.f32.mrb[0].mxu0
        %v1307 = vadd.f32 0.0, %v1306
        %v1308 = vpop.f32.mrb[0].mxu0
        %v1309 = vadd.f32 0.0, %v1308
        %v1310 = vpop.f32.mrb[0].mxu0
        %v1311 = vadd.f32 0.0, %v1310
        %v1312 = vpop.f32.mrb[0].mxu0
        %v1313 = vadd.f32 0.0, %v1312
        %1314 = vdwg.mxu0
        %v1315 = vadd.f32 %v1171, %v1297
        %v1316 = vadd.f32 %v1172, %v1299
        %v1317 = vadd.f32 %v1173, %v1301
        %v1318 = vadd.f32 %v1174, %v1303
        %v1319 = vadd.f32 %v1175, %v1307
        %v1320 = vadd.f32 %v1176, %v1309
        %v1321 = vadd.f32 %v1177, %v1311
        %v1322 = vadd.f32 %v1178, %v1313
        %v1323 = vld [vmem:[%s2] sm:$0x3]
        %v1325 = vlaneseq
        %v1326 = vshrl.u32 %v1325, 7
        %v1327 = vsub.s32 0, %v1326
        %v1328 = vrot.slane %v1323, %v1327
        %v1329 = vlaneseq
        %v1330 = vshrl.u32 %v1329, 7
        %v1331 = vsub.s32 1, %v1330
        %v1332 = vrot.slane %v1323, %v1331
        %v1335 = vadd.f32 %v1315, %v1328
        %v1336 = vadd.f32 %v1316, %v1332
        %v1337 = vadd.f32 %v1317, %v1328
        %v1338 = vadd.f32 %v1318, %v1332
        %v1339 = vadd.f32 %v1319, %v1328
        %v1340 = vadd.f32 %v1320, %v1332
        %v1341 = vadd.f32 %v1321, %v1328
        %v1342 = vadd.f32 %v1322, %v1332
        %v1343 = vmax.f32 %v1335, 0.0
        %v1344 = vmax.f32 %v1336, 0.0
        %v1345 = vmax.f32 %v1337, 0.0
        %v1346 = vmax.f32 %v1338, 0.0
        %v1347 = vmax.f32 %v1339, 0.0
        %v1348 = vmax.f32 %v1340, 0.0
        %v1349 = vmax.f32 %v1341, 0.0
        %v1350 = vmax.f32 %v1342, 0.0
        %v1351 = vpack.c.bf16 %v1345, %v1343
        %v1352 = vpack.c.bf16 %v1346, %v1344
        %v1353 = vpack.c.bf16 %v1349, %v1347
        %v1354 = vpack.c.bf16 %v1350, %v1348
        %v1355 = vld [vmem:[%s3] sm:$0xf]
        %v1356 = vld [vmem:[%s3 + $0x4] sm:$0x7]
        %v1359 = vunpack.c.l.b16 %v1355
        %v1360 = vunpack.c.l.b16 %v1356
        %v1361 = vpack.c.b16 %v1360, %v1359
        %vm1362 = vcmask 228352
        %v1364 = vsel %vm1362, %v1361, 0
        %vm1366 = vcmask 1045504
        %v1368 = vsel %vm1366, %v1353, 0
        %v1371 = vsel %vm1366, %v1354, 0
        %1373 = vmatprep.subr.bf16.mxu0 %v1352
        %1374 = vmatpush1.bf16.msra.mxu0 %v1351
        %1375 = vmatprep.subr.bf16.mxu0 %v1371
        %1376 = vmatpush1.bf16.msra.mxu0 %v1368
        %1377 = vmatprep.subr.bf16.mxu0 0
        %1378 = vmatpush1.bf16.msra.mxu0 0
        %1379 = vmatprep.subr.bf16.mxu0 0
        %1380 = vmatpush1.bf16.msra.mxu0 0
        %1381 = vmatprep.subr.bf16.mxu0 0
        %1382 = vmatpush1.bf16.msra.mxu0 0
        %1383 = vmatprep.subr.bf16.mxu0 0
        %1384 = vmatpush1.bf16.msra.mxu0 0
        %1385 = vmatprep.subr.bf16.mxu0 0
        %1386 = vmatpush1.bf16.msra.mxu0 0
        %1387 = vmatprep.subr.bf16.mxu0 0
        %1388 = vmatpush1.bf16.msra.mxu0 0
        %1389 = vmatprep.subr.bf16.mxu0 0
        %1390 = vmatpush1.bf16.msra.mxu0 0
        %1391 = vmatprep.subr.bf16.mxu0 0
        %1392 = vmatpush1.bf16.msra.mxu0 0
        %1393 = vmatprep.subr.bf16.mxu0 0
        %1394 = vmatpush1.bf16.msra.mxu0 0
        %1395 = vmatprep.subr.bf16.mxu0 0
        %1396 = vmatpush1.bf16.msra.mxu0 0
        %1397 = vmatprep.subr.bf16.mxu0 0
        %1398 = vmatpush1.bf16.msra.mxu0 0
        %1399 = vmatprep.subr.bf16.mxu0 0
        %1400 = vmatpush1.bf16.msra.mxu0 0
        %1401 = vmatprep.subr.bf16.mxu0 0
        %1402 = vmatpush1.bf16.msra.mxu0 0
        %1403 = vmatprep.subr.bf16.mxu0 0
        %1404 = vmatpush1.bf16.msra.mxu0 0
        %1405 = vmatprep.mubr.bf16.mxu0 0
        %1406 = vmatmul.mubr.bf16.gmra.mrb[0].mxu0 %v1364
        %v1407 = vpop.f32.mrb[0].mxu0
        %v1408 = vadd.f32 0.0, %v1407
        %v1409 = vpop.f32.mrb[0].mxu0
        %v1410 = vadd.f32 0.0, %v1409
        %v1411 = vpop.f32.mrb[0].mxu0
        %v1412 = vadd.f32 0.0, %v1411
        %v1413 = vpop.f32.mrb[0].mxu0
        %v1414 = vadd.f32 0.0, %v1413
        %1415 = vdwg.mxu0
        %v1416 = vld [vmem:[%s4] sm:$0xf]
        %v1417 = vld [vmem:[%s4 + $0x4] sm:$0x7]
        %v1420 = vunpack.c.l.b16 %v1416
        %v1421 = vunpack.c.l.b16 %v1417
        %v1422 = vpack.c.b16 %v1421, %v1420
        %v1424 = vsel %vm1362, %v1422, 0
        %1426 = vmatprep.subr.bf16.mxu0 %v1352
        %1427 = vmatpush1.bf16.msra.mxu0 %v1351
        %1428 = vmatprep.subr.bf16.mxu0 %v1371
        %1429 = vmatpush1.bf16.msra.mxu0 %v1368
        %1430 = vmatprep.subr.bf16.mxu0 0
        %1431 = vmatpush1.bf16.msra.mxu0 0
        %1432 = vmatprep.subr.bf16.mxu0 0
        %1433 = vmatpush1.bf16.msra.mxu0 0
        %1434 = vmatprep.subr.bf16.mxu0 0
        %1435 = vmatpush1.bf16.msra.mxu0 0
        %1436 = vmatprep.subr.bf16.mxu0 0
        %1437 = vmatpush1.bf16.msra.mxu0 0
        %1438 = vmatprep.subr.bf16.mxu0 0
        %1439 = vmatpush1.bf16.msra.mxu0 0
        %1440 = vmatprep.subr.bf16.mxu0 0
        %1441 = vmatpush1.bf16.msra.mxu0 0
        %1442 = vmatprep.subr.bf16.mxu0 0
        %1443 = vmatpush1.bf16.msra.mxu0 0
        %1444 = vmatprep.subr.bf16.mxu0 0
        %1445 = vmatpush1.bf16.msra.mxu0 0
        %1446 = vmatprep.subr.bf16.mxu0 0
        %1447 = vmatpush1.bf16.msra.mxu0 0
        %1448 = vmatprep.subr.bf16.mxu0 0
        %1449 = vmatpush1.bf16.msra.mxu0 0
        %1450 = vmatprep.subr.bf16.mxu0 0
        %1451 = vmatpush1.bf16.msra.mxu0 0
        %1452 = vmatprep.subr.bf16.mxu0 0
        %1453 = vmatpush1.bf16.msra.mxu0 0
        %1454 = vmatprep.subr.bf16.mxu0 0
        %1455 = vmatpush1.bf16.msra.mxu0 0
        %1456 = vmatprep.subr.bf16.mxu0 0
        %1457 = vmatpush1.bf16.msra.mxu0 0
        %1458 = vmatprep.mubr.bf16.mxu0 0
        %1459 = vmatmul.mubr.bf16.gmra.mrb[0].mxu0 %v1424
        %v1460 = vpop.f32.mrb[0].mxu0
        %v1461 = vadd.f32 0.0, %v1460
        %v1462 = vpop.f32.mrb[0].mxu0
        %v1463 = vadd.f32 0.0, %v1462
        %v1464 = vpop.f32.mrb[0].mxu0
        %v1465 = vadd.f32 0.0, %v1464
        %v1466 = vpop.f32.mrb[0].mxu0
        %v1467 = vadd.f32 0.0, %v1466
        %1468 = vdwg.mxu0
        %v1469 = vmax.f32 %v1408, %v1461
        %v1470 = vmax.f32 %v1410, %v1463
        %v1471 = vmax.f32 %v1412, %v1465
        %v1472 = vmax.f32 %v1414, %v1467
        %v1473 = vpack.c.bf16 %v1471, %v1469
        %v1474 = vpack.c.bf16 %v1472, %v1470
        %v1475 = vld [vmem:[%s5] sm:$0xf]
        %v1476 = vld [vmem:[%s5 + $0x4] sm:$0xf]
        %v1477 = vld [vmem:[%s5 + $0x8] sm:$0xf]
        %v1478 = vld [vmem:[%s5 + $0xc] sm:$0xf]
        %v1479 = vld [vmem:[%s5 + $0x10] sm:$0xf]
        %v1480 = vld [vmem:[%s5 + $0x14] sm:$0xf]
        %v1481 = vld [vmem:[%s5 + $0x18] sm:$0xf]
        %v1482 = vld [vmem:[%s5 + $0x1c] sm:$0xf]
        %v1483 = vld [vmem:[%s5 + $0x20] sm:$0xf]
        %v1484 = vld [vmem:[%s5 + $0x24] sm:$0xf]
        %v1485 = vld [vmem:[%s5 + $0x28] sm:$0xf]
        %v1486 = vld [vmem:[%s5 + $0x2c] sm:$0xf]
        %v1487 = vld [vmem:[%s5 + $0x30] sm:$0xf]
        %v1488 = vld [vmem:[%s5 + $0x34] sm:$0xf]
        %v1489 = vld [vmem:[%s5 + $0x38] sm:$0xf]
        %v1490 = vld [vmem:[%s5 + $0x3c] sm:$0xf]
        %v1491 = vld [vmem:[%s5 + $0x40] sm:$0xf]
        %v1492 = vld [vmem:[%s5 + $0x44] sm:$0xf]
        %v1493 = vld [vmem:[%s5 + $0x48] sm:$0xf]
        %v1494 = vld [vmem:[%s5 + $0x4c] sm:$0xf]
        %v1495 = vld [vmem:[%s5 + $0x50] sm:$0xf]
        %v1517 = vunpack.c.l.b16 %v1475
        %v1518 = vunpack.c.l.b16 %v1476
        %v1519 = vunpack.c.l.b16 %v1477
        %v1520 = vunpack.c.l.b16 %v1478
        %v1521 = vunpack.c.l.b16 %v1479
        %v1522 = vunpack.c.l.b16 %v1480
        %v1523 = vunpack.c.l.b16 %v1481
        %v1524 = vunpack.c.l.b16 %v1482
        %v1525 = vunpack.c.l.b16 %v1483
        %v1526 = vunpack.c.l.b16 %v1484
        %v1527 = vunpack.c.l.b16 %v1485
        %v1528 = vunpack.c.l.b16 %v1486
        %v1529 = vunpack.c.l.b16 %v1487
        %v1530 = vunpack.c.l.b16 %v1488
        %v1531 = vunpack.c.l.b16 %v1489
        %v1532 = vunpack.c.l.b16 %v1490
        %v1533 = vunpack.c.l.b16 %v1491
        %v1534 = vunpack.c.l.b16 %v1492
        %v1535 = vunpack.c.l.b16 %v1493
        %v1536 = vunpack.c.l.b16 %v1494
        %v1537 = vunpack.c.l.b16 %v1495
        %v1538 = vpack.c.b16 %v1518, %v1517
        %v1539 = vpack.c.b16 %v1520, %v1519
        %v1540 = vpack.c.b16 %v1522, %v1521
        %v1541 = vpack.c.b16 %v1524, %v1523
        %v1542 = vpack.c.b16 %v1526, %v1525
        %v1543 = vpack.c.b16 %v1528, %v1527
        %v1544 = vpack.c.b16 %v1530, %v1529
        %v1545 = vpack.c.b16 %v1532, %v1531
        %v1546 = vpack.c.b16 %v1534, %v1533
        %v1547 = vpack.c.b16 %v1536, %v1535
        %v1548 = vpack.c.b16 %v1537, %v1537
        %vm1559 = vcmask 326656
        %v1561 = vsel %vm1559, %v1474, 0
        %vm1563 = vcmask 1043456
        %v1565 = vsel %vm1563, %v1548, 0
        %1567 = vmatprep.subr.bf16.mxu0 0
        %1568 = vmatpush1.bf16.msra.mxu0 %v1538
        %1569 = vmatprep.subr.bf16.mxu0 0
        %1570 = vmatpush1.bf16.msra.mxu0 %v1539
        %1571 = vmatprep.subr.bf16.mxu0 0
        %1572 = vmatpush1.bf16.msra.mxu0 %v1540
        %1573 = vmatprep.subr.bf16.mxu0 0
        %1574 = vmatpush1.bf16.msra.mxu0 %v1541
        %1575 = vmatprep.subr.bf16.mxu0 0
        %1576 = vmatpush1.bf16.msra.mxu0 %v1542
        %1577 = vmatprep.subr.bf16.mxu0 0
        %1578 = vmatpush1.bf16.msra.mxu0 %v1543
        %1579 = vmatprep.subr.bf16.mxu0 0
        %1580 = vmatpush1.bf16.msra.mxu0 %v1544
        %1581 = vmatprep.subr.bf16.mxu0 0
        %1582 = vmatpush1.bf16.msra.mxu0 %v1545
        %1583 = vmatprep.subr.bf16.mxu0 0
        %1584 = vmatpush1.bf16.msra.mxu0 %v1546
        %1585 = vmatprep.subr.bf16.mxu0 0
        %1586 = vmatpush1.bf16.msra.mxu0 %v1547
        %1587 = vmatprep.subr.bf16.mxu0 0
        %1588 = vmatpush1.bf16.msra.mxu0 %v1565
        %1589 = vmatprep.subr.bf16.mxu0 0
        %1590 = vmatpush1.bf16.msra.mxu0 0
        %1591 = vmatprep.subr.bf16.mxu0 0
        %1592 = vmatpush1.bf16.msra.mxu0 0
        %1593 = vmatprep.subr.bf16.mxu0 0
        %1594 = vmatpush1.bf16.msra.mxu0 0
        %1595 = vmatprep.subr.bf16.mxu0 0
        %1596 = vmatpush1.bf16.msra.mxu0 0
        %1597 = vmatprep.subr.bf16.mxu0 0
        %1598 = vmatpush1.bf16.msra.mxu0 0
        %1599 = vmatprep.mubr.bf16.mxu0 %v1561
        %1600 = vmatmul.mubr.bf16.gmra.mrb[0].mxu0 %v1473
        %v1601 = vpop.f32.mrb[0].mxu0
        %v1602 = vadd.f32 0.0, %v1601
        %v1603 = vpop.f32.mrb[0].mxu0
        %v1604 = vpop.f32.mrb[0].mxu0
        %v1605 = vadd.f32 0.0, %v1604
        %v1606 = vpop.f32.mrb[0].mxu0
        %1607 = vdwg.mxu0
        %v1608 = vld [vmem:[%s6] sm:$0xf]
        %v1609 = vld [vmem:[%s6 + $0x4] sm:$0xf]
        %v1610 = vld [vmem:[%s6 + $0x8] sm:$0xf]
        %v1611 = vld [vmem:[%s6 + $0xc] sm:$0xf]
        %v1612 = vld [vmem:[%s6 + $0x10] sm:$0xf]
        %v1613 = vld [vmem:[%s6 + $0x14] sm:$0xf]
        %v1614 = vld [vmem:[%s6 + $0x18] sm:$0xf]
        %v1615 = vld [vmem:[%s6 + $0x1c] sm:$0xf]
        %v1616 = vld [vmem:[%s6 + $0x20] sm:$0xf]
        %v1617 = vld [vmem:[%s6 + $0x24] sm:$0xf]
        %v1618 = vld [vmem:[%s6 + $0x28] sm:$0xf]
        %v1619 = vld [vmem:[%s6 + $0x2c] sm:$0xf]
        %v1620 = vld [vmem:[%s6 + $0x30] sm:$0xf]
        %v1621 = vld [vmem:[%s6 + $0x34] sm:$0xf]
        %v1622 = vld [vmem:[%s6 + $0x38] sm:$0xf]
        %v1623 = vld [vmem:[%s6 + $0x3c] sm:$0xf]
        %v1624 = vld [vmem:[%s6 + $0x40] sm:$0xf]
        %v1625 = vld [vmem:[%s6 + $0x44] sm:$0xf]
        %v1626 = vld [vmem:[%s6 + $0x48] sm:$0xf]
        %v1627 = vld [vmem:[%s6 + $0x4c] sm:$0xf]
        %v1628 = vld [vmem:[%s6 + $0x50] sm:$0xf]
        %v1650 = vunpack.c.l.b16 %v1608
        %v1651 = vunpack.c.l.b16 %v1609
        %v1652 = vunpack.c.l.b16 %v1610
        %v1653 = vunpack.c.l.b16 %v1611
        %v1654 = vunpack.c.l.b16 %v1612
        %v1655 = vunpack.c.l.b16 %v1613
        %v1656 = vunpack.c.l.b16 %v1614
        %v1657 = vunpack.c.l.b16 %v1615
        %v1658 = vunpack.c.l.b16 %v1616
        %v1659 = vunpack.c.l.b16 %v1617
        %v1660 = vunpack.c.l.b16 %v1618
        %v1661 = vunpack.c.l.b16 %v1619
        %v1662 = vunpack.c.l.b16 %v1620
        %v1663 = vunpack.c.l.b16 %v1621
        %v1664 = vunpack.c.l.b16 %v1622
        %v1665 = vunpack.c.l.b16 %v1623
        %v1666 = vunpack.c.l.b16 %v1624
        %v1667 = vunpack.c.l.b16 %v1625
        %v1668 = vunpack.c.l.b16 %v1626
        %v1669 = vunpack.c.l.b16 %v1627
        %v1670 = vunpack.c.l.b16 %v1628
        %v1671 = vpack.c.b16 %v1651, %v1650
        %v1672 = vpack.c.b16 %v1653, %v1652
        %v1673 = vpack.c.b16 %v1655, %v1654
        %v1674 = vpack.c.b16 %v1657, %v1656
        %v1675 = vpack.c.b16 %v1659, %v1658
        %v1676 = vpack.c.b16 %v1661, %v1660
        %v1677 = vpack.c.b16 %v1663, %v1662
        %v1678 = vpack.c.b16 %v1665, %v1664
        %v1679 = vpack.c.b16 %v1667, %v1666
        %v1680 = vpack.c.b16 %v1669, %v1668
        %v1681 = vpack.c.b16 %v1670, %v1670
        %v1693 = vsel %vm1563, %v1681, 0
        %1695 = vmatprep.subr.bf16.mxu0 0
        %1696 = vmatpush1.bf16.msra.mxu0 %v1671
        %1697 = vmatprep.subr.bf16.mxu0 0
        %1698 = vmatpush1.bf16.msra.mxu0 %v1672
        %1699 = vmatprep.subr.bf16.mxu0 0
        %1700 = vmatpush1.bf16.msra.mxu0 %v1673
        %1701 = vmatprep.subr.bf16.mxu0 0
        %1702 = vmatpush1.bf16.msra.mxu0 %v1674
        %1703 = vmatprep.subr.bf16.mxu0 0
        %1704 = vmatpush1.bf16.msra.mxu0 %v1675
        %1705 = vmatprep.subr.bf16.mxu0 0
        %1706 = vmatpush1.bf16.msra.mxu0 %v1676
        %1707 = vmatprep.subr.bf16.mxu0 0
        %1708 = vmatpush1.bf16.msra.mxu0 %v1677
        %1709 = vmatprep.subr.bf16.mxu0 0
        %1710 = vmatpush1.bf16.msra.mxu0 %v1678
        %1711 = vmatprep.subr.bf16.mxu0 0
        %1712 = vmatpush1.bf16.msra.mxu0 %v1679
        %1713 = vmatprep.subr.bf16.mxu0 0
        %1714 = vmatpush1.bf16.msra.mxu0 %v1680
        %1715 = vmatprep.subr.bf16.mxu0 0
        %1716 = vmatpush1.bf16.msra.mxu0 %v1693
        %1717 = vmatprep.subr.bf16.mxu0 0
        %1718 = vmatpush1.bf16.msra.mxu0 0
        %1719 = vmatprep.subr.bf16.mxu0 0
        %1720 = vmatpush1.bf16.msra.mxu0 0
        %1721 = vmatprep.subr.bf16.mxu0 0
        %1722 = vmatpush1.bf16.msra.mxu0 0
        %1723 = vmatprep.subr.bf16.mxu0 0
        %1724 = vmatpush1.bf16.msra.mxu0 0
        %1725 = vmatprep.subr.bf16.mxu0 0
        %1726 = vmatpush1.bf16.msra.mxu0 0
        %1727 = vmatprep.mubr.bf16.mxu0 %v1561
        %1728 = vmatmul.mubr.bf16.gmra.mrb[0].mxu0 %v1473
        %v1729 = vpop.f32.mrb[0].mxu0
        %v1730 = vadd.f32 0.0, %v1729
        %v1731 = vpop.f32.mrb[0].mxu0
        %v1732 = vpop.f32.mrb[0].mxu0
        %v1733 = vadd.f32 0.0, %v1732
        %v1734 = vpop.f32.mrb[0].mxu0
        %1735 = vdwg.mxu0
        %v1736 = vmax.f32 %v1602, %v1730
        %v1737 = vmax.f32 %v1605, %v1733
        %v1738 = vpack.c.bf16 %v1737, %v1736
        %v1739 = vld [vmem:[%s7] sm:$0xff]
        %v1740 = vld [vmem:[%s7 + $0x8] sm:$0xff]
        %v1741 = vld [vmem:[%s7 + $0x10] sm:$0xff]
        %v1742 = vld [vmem:[%s7 + $0x18] sm:$0xff]
        %v1743 = vld [vmem:[%s7 + $0x20] sm:$0xff]
        %v1744 = vld [vmem:[%s7 + $0x28] sm:$0xff]
        %v1745 = vld [vmem:[%s7 + $0x30] sm:$0xff]
        %v1746 = vld [vmem:[%s7 + $0x38] sm:$0xff]
        %v1747 = vld [vmem:[%s7 + $0x40] sm:$0xff]
        %v1748 = vld [vmem:[%s7 + $0x48] sm:$0xff]
        %v1749 = vld [vmem:[%s7 + $0x50] sm:$0x33]
        %s1750 = scalar_lea.vmem %s7, 88
        %v1751 = vld [vmem:[%s1750] sm:$0xff]
        %v1752 = vld [vmem:[%s1750 + $0x8] sm:$0xff]
        %v1753 = vld [vmem:[%s1750 + $0x10] sm:$0xff]
        %v1754 = vld [vmem:[%s1750 + $0x18] sm:$0xff]
        %v1755 = vld [vmem:[%s1750 + $0x20] sm:$0xff]
        %v1756 = vld [vmem:[%s1750 + $0x28] sm:$0xff]
        %v1757 = vld [vmem:[%s1750 + $0x30] sm:$0xff]
        %v1758 = vld [vmem:[%s1750 + $0x38] sm:$0xff]
        %v1759 = vld [vmem:[%s1750 + $0x40] sm:$0xff]
        %v1760 = vld [vmem:[%s1750 + $0x48] sm:$0xff]
        %v1761 = vld [vmem:[%s1750 + $0x50] sm:$0x33]
        %v1763 = vshrl.u32 %v1738, 16
        %v1765 = vshll.u32 %v1738, 16
        %v1767 = vrot.slane %v1765, 1
        %v1768 = vor.u32 %v1763, %v1767
        %v1780 = vunpack.c.l.b16 %v1751
        %v1781 = vunpack.c.h.b16 %v1751
        %v1782 = vunpack.c.l.b16 %v1752
        %v1783 = vunpack.c.h.b16 %v1752
        %v1784 = vunpack.c.l.b16 %v1753
        %v1785 = vunpack.c.h.b16 %v1753
        %v1786 = vunpack.c.l.b16 %v1754
        %v1787 = vunpack.c.h.b16 %v1754
        %v1788 = vunpack.c.l.b16 %v1755
        %v1789 = vunpack.c.h.b16 %v1755
        %v1790 = vunpack.c.l.b16 %v1756
        %v1791 = vunpack.c.h.b16 %v1756
        %v1792 = vunpack.c.l.b16 %v1757
        %v1793 = vunpack.c.h.b16 %v1757
        %v1794 = vunpack.c.l.b16 %v1758
        %v1795 = vunpack.c.h.b16 %v1758
        %v1796 = vunpack.c.l.b16 %v1759
        %v1797 = vunpack.c.h.b16 %v1759
        %v1798 = vunpack.c.l.b16 %v1760
        %v1799 = vunpack.c.h.b16 %v1760
        %v1800 = vunpack.c.l.b16 %v1761
        %v1801 = vunpack.c.h.b16 %v1761
        %v1802 = vpack.c.b16 %v1782, %v1780
        %v1803 = vpack.c.b16 %v1783, %v1781
        %v1804 = vpack.c.b16 %v1786, %v1784
        %v1805 = vpack.c.b16 %v1787, %v1785
        %v1806 = vpack.c.b16 %v1790, %v1788
        %v1807 = vpack.c.b16 %v1791, %v1789
        %v1808 = vpack.c.b16 %v1794, %v1792
        %v1809 = vpack.c.b16 %v1795, %v1793
        %v1810 = vpack.c.b16 %v1798, %v1796
        %v1811 = vpack.c.b16 %v1799, %v1797
        %v1812 = vpack.c.b16 %v1800, %v1800
        %v1813 = vpack.c.b16 %v1801, %v1801
        %vm1824 = vcmask 687104
        %v1826 = vsel %vm1824, %v1768, 0
        %vm1828 = vcmask 1041408
        %v1830 = vsel %vm1828, %v1812, 0
        %v1833 = vsel %vm1828, %v1813, 0
        %1835 = vmatprep.subr.bf16.mxu0 %v1803
        %1836 = vmatpush1.bf16.msra.mxu0 %v1802
        %1837 = vmatprep.subr.bf16.mxu0 %v1805
        %1838 = vmatpush1.bf16.msra.mxu0 %v1804
        %1839 = vmatprep.subr.bf16.mxu0 %v1807
        %1840 = vmatpush1.bf16.msra.mxu0 %v1806
        %1841 = vmatprep.subr.bf16.mxu0 %v1809
        %1842 = vmatpush1.bf16.msra.mxu0 %v1808
        %1843 = vmatprep.subr.bf16.mxu0 %v1811
        %1844 = vmatpush1.bf16.msra.mxu0 %v1810
        %1845 = vmatprep.subr.bf16.mxu0 %v1833
        %1846 = vmatpush1.bf16.msra.mxu0 %v1830
        %1847 = vmatprep.subr.bf16.mxu0 0
        %1848 = vmatpush1.bf16.msra.mxu0 0
        %1849 = vmatprep.subr.bf16.mxu0 0
        %1850 = vmatpush1.bf16.msra.mxu0 0
        %1851 = vmatprep.subr.bf16.mxu0 0
        %1852 = vmatpush1.bf16.msra.mxu0 0
        %1853 = vmatprep.subr.bf16.mxu0 0
        %1854 = vmatpush1.bf16.msra.mxu0 0
        %1855 = vmatprep.subr.bf16.mxu0 0
        %1856 = vmatpush1.bf16.msra.mxu0 0
        %1857 = vmatprep.subr.bf16.mxu0 0
        %1858 = vmatpush1.bf16.msra.mxu0 0
        %1859 = vmatprep.subr.bf16.mxu0 0
        %1860 = vmatpush1.bf16.msra.mxu0 0
        %1861 = vmatprep.subr.bf16.mxu0 0
        %1862 = vmatpush1.bf16.msra.mxu0 0
        %1863 = vmatprep.subr.bf16.mxu0 0
        %1864 = vmatpush1.bf16.msra.mxu0 0
        %1865 = vmatprep.subr.bf16.mxu0 0
        %1866 = vmatpush1.bf16.msra.mxu0 0
        %1867 = vmatprep.mubr.bf16.mxu0 0
        %1868 = vmatmul.mubr.bf16.gmra.mrb[0].mxu0 %v1826
        %v1869 = vpop.f32.mrb[0].mxu0
        %v1870 = vadd.f32 0.0, %v1869
        %v1871 = vpop.f32.mrb[0].mxu0
        %v1872 = vadd.f32 0.0, %v1871
        %v1873 = vpop.f32.mrb[0].mxu0
        %v1874 = vadd.f32 0.0, %v1873
        %v1875 = vpop.f32.mrb[0].mxu0
        %v1876 = vadd.f32 0.0, %v1875
        %1877 = vdwg.mxu0
        %v1889 = vunpack.c.l.b16 %v1739
        %v1890 = vunpack.c.h.b16 %v1739
        %v1891 = vunpack.c.l.b16 %v1740
        %v1892 = vunpack.c.h.b16 %v1740
        %v1893 = vunpack.c.l.b16 %v1741
        %v1894 = vunpack.c.h.b16 %v1741
        %v1895 = vunpack.c.l.b16 %v1742
        %v1896 = vunpack.c.h.b16 %v1742
        %v1897 = vunpack.c.l.b16 %v1743
        %v1898 = vunpack.c.h.b16 %v1743
        %v1899 = vunpack.c.l.b16 %v1744
        %v1900 = vunpack.c.h.b16 %v1744
        %v1901 = vunpack.c.l.b16 %v1745
        %v1902 = vunpack.c.h.b16 %v1745
        %v1903 = vunpack.c.l.b16 %v1746
        %v1904 = vunpack.c.h.b16 %v1746
        %v1905 = vunpack.c.l.b16 %v1747
        %v1906 = vunpack.c.h.b16 %v1747
        %v1907 = vunpack.c.l.b16 %v1748
        %v1908 = vunpack.c.h.b16 %v1748
        %v1909 = vunpack.c.l.b16 %v1749
        %v1910 = vunpack.c.h.b16 %v1749
        %v1911 = vpack.c.b16 %v1891, %v1889
        %v1912 = vpack.c.b16 %v1892, %v1890
        %v1913 = vpack.c.b16 %v1895, %v1893
        %v1914 = vpack.c.b16 %v1896, %v1894
        %v1915 = vpack.c.b16 %v1899, %v1897
        %v1916 = vpack.c.b16 %v1900, %v1898
        %v1917 = vpack.c.b16 %v1903, %v1901
        %v1918 = vpack.c.b16 %v1904, %v1902
        %v1919 = vpack.c.b16 %v1907, %v1905
        %v1920 = vpack.c.b16 %v1908, %v1906
        %v1921 = vpack.c.b16 %v1909, %v1909
        %v1922 = vpack.c.b16 %v1910, %v1910
        %v1933 = vsel %vm1824, %v1738, 0
        %v1936 = vsel %vm1828, %v1921, 0
        %v1939 = vsel %vm1828, %v1922, 0
        %1941 = vmatprep.subr.bf16.mxu0 %v1912
        %1942 = vmatpush1.bf16.msra.mxu0 %v1911
        %1943 = vmatprep.subr.bf16.mxu0 %v1914
        %1944 = vmatpush1.bf16.msra.mxu0 %v1913
        %1945 = vmatprep.subr.bf16.mxu0 %v1916
        %1946 = vmatpush1.bf16.msra.mxu0 %v1915
        %1947 = vmatprep.subr.bf16.mxu0 %v1918
        %1948 = vmatpush1.bf16.msra.mxu0 %v1917
        %1949 = vmatprep.subr.bf16.mxu0 %v1920
        %1950 = vmatpush1.bf16.msra.mxu0 %v1919
        %1951 = vmatprep.subr.bf16.mxu0 %v1939
        %1952 = vmatpush1.bf16.msra.mxu0 %v1936
        %1953 = vmatprep.subr.bf16.mxu0 0
        %1954 = vmatpush1.bf16.msra.mxu0 0
        %1955 = vmatprep.subr.bf16.mxu0 0
        %1956 = vmatpush1.bf16.msra.mxu0 0
        %1957 = vmatprep.subr.bf16.mxu0 0
        %1958 = vmatpush1.bf16.msra.mxu0 0
        %1959 = vmatprep.subr.bf16.mxu0 0
        %1960 = vmatpush1.bf16.msra.mxu0 0
        %1961 = vmatprep.subr.bf16.mxu0 0
        %1962 = vmatpush1.bf16.msra.mxu0 0
        %1963 = vmatprep.subr.bf16.mxu0 0
        %1964 = vmatpush1.bf16.msra.mxu0 0
        %1965 = vmatprep.subr.bf16.mxu0 0
        %1966 = vmatpush1.bf16.msra.mxu0 0
        %1967 = vmatprep.subr.bf16.mxu0 0
        %1968 = vmatpush1.bf16.msra.mxu0 0
        %1969 = vmatprep.subr.bf16.mxu0 0
        %1970 = vmatpush1.bf16.msra.mxu0 0
        %1971 = vmatprep.subr.bf16.mxu0 0
        %1972 = vmatpush1.bf16.msra.mxu0 0
        %1973 = vmatprep.mubr.bf16.mxu0 0
        %1974 = vmatmul.mubr.bf16.gmra.mrb[0].mxu0 %v1933
        %v1975 = vpop.f32.mrb[0].mxu0
        %v1976 = vadd.f32 %v1870, %v1975
        %v1977 = vpop.f32.mrb[0].mxu0
        %v1978 = vadd.f32 %v1872, %v1977
        %v1979 = vpop.f32.mrb[0].mxu0
        %v1980 = vadd.f32 %v1874, %v1979
        %v1981 = vpop.f32.mrb[0].mxu0
        %v1982 = vadd.f32 %v1876, %v1981
        %1983 = vdwg.mxu0
        %s1984 = scalar_lea.vmem %s7, 176
        %v1985 = vld [vmem:[%s1984] sm:$0xff]
        %v1986 = vld [vmem:[%s1984 + $0x8] sm:$0xff]
        %v1987 = vld [vmem:[%s1984 + $0x10] sm:$0xff]
        %v1988 = vld [vmem:[%s1984 + $0x18] sm:$0xff]
        %v1989 = vld [vmem:[%s1984 + $0x20] sm:$0xff]
        %v1990 = vld [vmem:[%s1984 + $0x28] sm:$0xff]
        %v1991 = vld [vmem:[%s1984 + $0x30] sm:$0xff]
        %v1992 = vld [vmem:[%s1984 + $0x38] sm:$0xff]
        %v1993 = vld [vmem:[%s1984 + $0x40] sm:$0xff]
        %v1994 = vld [vmem:[%s1984 + $0x48] sm:$0xff]
        %v1995 = vld [vmem:[%s1984 + $0x50] sm:$0x33]
        %v1997 = vrot.slane %v1738, 1
        %v2009 = vunpack.c.l.b16 %v1985
        %v2010 = vunpack.c.h.b16 %v1985
        %v2011 = vunpack.c.l.b16 %v1986
        %v2012 = vunpack.c.h.b16 %v1986
        %v2013 = vunpack.c.l.b16 %v1987
        %v2014 = vunpack.c.h.b16 %v1987
        %v2015 = vunpack.c.l.b16 %v1988
        %v2016 = vunpack.c.h.b16 %v1988
        %v2017 = vunpack.c.l.b16 %v1989
        %v2018 = vunpack.c.h.b16 %v1989
        %v2019 = vunpack.c.l.b16 %v1990
        %v2020 = vunpack.c.h.b16 %v1990
        %v2021 = vunpack.c.l.b16 %v1991
        %v2022 = vunpack.c.h.b16 %v1991
        %v2023 = vunpack.c.l.b16 %v1992
        %v2024 = vunpack.c.h.b16 %v1992
        %v2025 = vunpack.c.l.b16 %v1993
        %v2026 = vunpack.c.h.b16 %v1993
        %v2027 = vunpack.c.l.b16 %v1994
        %v2028 = vunpack.c.h.b16 %v1994
        %v2029 = vunpack.c.l.b16 %v1995
        %v2030 = vunpack.c.h.b16 %v1995
        %v2031 = vpack.c.b16 %v2011, %v2009
        %v2032 = vpack.c.b16 %v2012, %v2010
        %v2033 = vpack.c.b16 %v2015, %v2013
        %v2034 = vpack.c.b16 %v2016, %v2014
        %v2035 = vpack.c.b16 %v2019, %v2017
        %v2036 = vpack.c.b16 %v2020, %v2018
        %v2037 = vpack.c.b16 %v2023, %v2021
        %v2038 = vpack.c.b16 %v2024, %v2022
        %v2039 = vpack.c.b16 %v2027, %v2025
        %v2040 = vpack.c.b16 %v2028, %v2026
        %v2041 = vpack.c.b16 %v2029, %v2029
        %v2042 = vpack.c.b16 %v2030, %v2030
        %v2054 = vsel %vm1824, %v1997, 0
        %v2057 = vsel %vm1828, %v2041, 0
        %v2060 = vsel %vm1828, %v2042, 0
        %2062 = vmatprep.subr.bf16.mxu0 %v2032
        %2063 = vmatpush1.bf16.msra.mxu0 %v2031
        %2064 = vmatprep.subr.bf16.mxu0 %v2034
        %2065 = vmatpush1.bf16.msra.mxu0 %v2033
        %2066 = vmatprep.subr.bf16.mxu0 %v2036
        %2067 = vmatpush1.bf16.msra.mxu0 %v2035
        %2068 = vmatprep.subr.bf16.mxu0 %v2038
        %2069 = vmatpush1.bf16.msra.mxu0 %v2037
        %2070 = vmatprep.subr.bf16.mxu0 %v2040
        %2071 = vmatpush1.bf16.msra.mxu0 %v2039
        %2072 = vmatprep.subr.bf16.mxu0 %v2060
        %2073 = vmatpush1.bf16.msra.mxu0 %v2057
        %2074 = vmatprep.subr.bf16.mxu0 0
        %2075 = vmatpush1.bf16.msra.mxu0 0
        %2076 = vmatprep.subr.bf16.mxu0 0
        %2077 = vmatpush1.bf16.msra.mxu0 0
        %2078 = vmatprep.subr.bf16.mxu0 0
        %2079 = vmatpush1.bf16.msra.mxu0 0
        %2080 = vmatprep.subr.bf16.mxu0 0
        %2081 = vmatpush1.bf16.msra.mxu0 0
        %2082 = vmatprep.subr.bf16.mxu0 0
        %2083 = vmatpush1.bf16.msra.mxu0 0
        %2084 = vmatprep.subr.bf16.mxu0 0
        %2085 = vmatpush1.bf16.msra.mxu0 0
        %2086 = vmatprep.subr.bf16.mxu0 0
        %2087 = vmatpush1.bf16.msra.mxu0 0
        %2088 = vmatprep.subr.bf16.mxu0 0
        %2089 = vmatpush1.bf16.msra.mxu0 0
        %2090 = vmatprep.subr.bf16.mxu0 0
        %2091 = vmatpush1.bf16.msra.mxu0 0
        %2092 = vmatprep.subr.bf16.mxu0 0
        %2093 = vmatpush1.bf16.msra.mxu0 0
        %2094 = vmatprep.mubr.bf16.mxu0 0
        %2095 = vmatmul.mubr.bf16.gmra.mrb[0].mxu0 %v2054
        %v2096 = vpop.f32.mrb[0].mxu0
        %v2097 = vadd.f32 0.0, %v2096
        %v2098 = vpop.f32.mrb[0].mxu0
        %v2099 = vadd.f32 0.0, %v2098
        %v2100 = vpop.f32.mrb[0].mxu0
        %v2101 = vadd.f32 0.0, %v2100
        %v2102 = vpop.f32.mrb[0].mxu0
        %v2103 = vadd.f32 0.0, %v2102
        %2104 = vdwg.mxu0
        %v2105 = vadd.f32 %v1976, %v2097
        %v2106 = vadd.f32 %v1978, %v2099
        %v2107 = vadd.f32 %v1980, %v2101
        %v2108 = vadd.f32 %v1982, %v2103
        %s2109 = scalar_lea.vmem %s7, 264
        %v2110 = vld [vmem:[%s2109] sm:$0xff]
        %v2111 = vld [vmem:[%s2109 + $0x8] sm:$0xff]
        %v2112 = vld [vmem:[%s2109 + $0x10] sm:$0xff]
        %v2113 = vld [vmem:[%s2109 + $0x18] sm:$0xff]
        %v2114 = vld [vmem:[%s2109 + $0x20] sm:$0xff]
        %v2115 = vld [vmem:[%s2109 + $0x28] sm:$0xff]
        %v2116 = vld [vmem:[%s2109 + $0x30] sm:$0xff]
        %v2117 = vld [vmem:[%s2109 + $0x38] sm:$0xff]
        %v2118 = vld [vmem:[%s2109 + $0x40] sm:$0xff]
        %v2119 = vld [vmem:[%s2109 + $0x48] sm:$0xff]
        %v2120 = vld [vmem:[%s2109 + $0x50] sm:$0x33]
        %v2121 = vrot.slane %v1763, 1
        %v2122 = vrot.slane %v1765, 2
        %v2123 = vor.u32 %v2121, %v2122
        %v2135 = vunpack.c.l.b16 %v2110
        %v2136 = vunpack.c.h.b16 %v2110
        %v2137 = vunpack.c.l.b16 %v2111
        %v2138 = vunpack.c.h.b16 %v2111
        %v2139 = vunpack.c.l.b16 %v2112
        %v2140 = vunpack.c.h.b16 %v2112
        %v2141 = vunpack.c.l.b16 %v2113
        %v2142 = vunpack.c.h.b16 %v2113
        %v2143 = vunpack.c.l.b16 %v2114
        %v2144 = vunpack.c.h.b16 %v2114
        %v2145 = vunpack.c.l.b16 %v2115
        %v2146 = vunpack.c.h.b16 %v2115
        %v2147 = vunpack.c.l.b16 %v2116
        %v2148 = vunpack.c.h.b16 %v2116
        %v2149 = vunpack.c.l.b16 %v2117
        %v2150 = vunpack.c.h.b16 %v2117
        %v2151 = vunpack.c.l.b16 %v2118
        %v2152 = vunpack.c.h.b16 %v2118
        %v2153 = vunpack.c.l.b16 %v2119
        %v2154 = vunpack.c.h.b16 %v2119
        %v2155 = vunpack.c.l.b16 %v2120
        %v2156 = vunpack.c.h.b16 %v2120
        %v2157 = vpack.c.b16 %v2137, %v2135
        %v2158 = vpack.c.b16 %v2138, %v2136
        %v2159 = vpack.c.b16 %v2141, %v2139
        %v2160 = vpack.c.b16 %v2142, %v2140
        %v2161 = vpack.c.b16 %v2145, %v2143
        %v2162 = vpack.c.b16 %v2146, %v2144
        %v2163 = vpack.c.b16 %v2149, %v2147
        %v2164 = vpack.c.b16 %v2150, %v2148
        %v2165 = vpack.c.b16 %v2153, %v2151
        %v2166 = vpack.c.b16 %v2154, %v2152
        %v2167 = vpack.c.b16 %v2155, %v2155
        %v2168 = vpack.c.b16 %v2156, %v2156
        %v2180 = vsel %vm1824, %v2123, 0
        %v2183 = vsel %vm1828, %v2167, 0
        %v2186 = vsel %vm1828, %v2168, 0
        %2188 = vmatprep.subr.bf16.mxu0 %v2158
        %2189 = vmatpush1.bf16.msra.mxu0 %v2157
        %2190 = vmatprep.subr.bf16.mxu0 %v2160
        %2191 = vmatpush1.bf16.msra.mxu0 %v2159
        %2192 = vmatprep.subr.bf16.mxu0 %v2162
        %2193 = vmatpush1.bf16.msra.mxu0 %v2161
        %2194 = vmatprep.subr.bf16.mxu0 %v2164
        %2195 = vmatpush1.bf16.msra.mxu0 %v2163
        %2196 = vmatprep.subr.bf16.mxu0 %v2166
        %2197 = vmatpush1.bf16.msra.mxu0 %v2165
        %2198 = vmatprep.subr.bf16.mxu0 %v2186
        %2199 = vmatpush1.bf16.msra.mxu0 %v2183
        %2200 = vmatprep.subr.bf16.mxu0 0
        %2201 = vmatpush1.bf16.msra.mxu0 0
        %2202 = vmatprep.subr.bf16.mxu0 0
        %2203 = vmatpush1.bf16.msra.mxu0 0
        %2204 = vmatprep.subr.bf16.mxu0 0
        %2205 = vmatpush1.bf16.msra.mxu0 0
        %2206 = vmatprep.subr.bf16.mxu0 0
        %2207 = vmatpush1.bf16.msra.mxu0 0
        %2208 = vmatprep.subr.bf16.mxu0 0
        %2209 = vmatpush1.bf16.msra.mxu0 0
        %2210 = vmatprep.subr.bf16.mxu0 0
        %2211 = vmatpush1.bf16.msra.mxu0 0
        %2212 = vmatprep.subr.bf16.mxu0 0
        %2213 = vmatpush1.bf16.msra.mxu0 0
        %2214 = vmatprep.subr.bf16.mxu0 0
        %2215 = vmatpush1.bf16.msra.mxu0 0
        %2216 = vmatprep.subr.bf16.mxu0 0
        %2217 = vmatpush1.bf16.msra.mxu0 0
        %2218 = vmatprep.subr.bf16.mxu0 0
        %2219 = vmatpush1.bf16.msra.mxu0 0
        %2220 = vmatprep.mubr.bf16.mxu0 0
        %2221 = vmatmul.mubr.bf16.gmra.mrb[0].mxu0 %v2180
        %v2222 = vpop.f32.mrb[0].mxu0
        %v2223 = vadd.f32 0.0, %v2222
        %v2224 = vpop.f32.mrb[0].mxu0
        %v2225 = vadd.f32 0.0, %v2224
        %v2226 = vpop.f32.mrb[0].mxu0
        %v2227 = vadd.f32 0.0, %v2226
        %v2228 = vpop.f32.mrb[0].mxu0
        %v2229 = vadd.f32 0.0, %v2228
        %2230 = vdwg.mxu0
        %v2231 = vadd.f32 %v2105, %v2223
        %v2232 = vadd.f32 %v2106, %v2225
        %v2233 = vadd.f32 %v2107, %v2227
        %v2234 = vadd.f32 %v2108, %v2229
        %s2235 = scalar_lea.vmem %s7, 352
        %v2236 = vld [vmem:[%s2235] sm:$0xff]
        %v2237 = vld [vmem:[%s2235 + $0x8] sm:$0xff]
        %v2238 = vld [vmem:[%s2235 + $0x10] sm:$0xff]
        %v2239 = vld [vmem:[%s2235 + $0x18] sm:$0xff]
        %v2240 = vld [vmem:[%s2235 + $0x20] sm:$0xff]
        %v2241 = vld [vmem:[%s2235 + $0x28] sm:$0xff]
        %v2242 = vld [vmem:[%s2235 + $0x30] sm:$0xff]
        %v2243 = vld [vmem:[%s2235 + $0x38] sm:$0xff]
        %v2244 = vld [vmem:[%s2235 + $0x40] sm:$0xff]
        %v2245 = vld [vmem:[%s2235 + $0x48] sm:$0xff]
        %v2246 = vld [vmem:[%s2235 + $0x50] sm:$0x33]
        %v2247 = vrot.slane %v1738, 2
        %v2259 = vunpack.c.l.b16 %v2236
        %v2260 = vunpack.c.h.b16 %v2236
        %v2261 = vunpack.c.l.b16 %v2237
        %v2262 = vunpack.c.h.b16 %v2237
        %v2263 = vunpack.c.l.b16 %v2238
        %v2264 = vunpack.c.h.b16 %v2238
        %v2265 = vunpack.c.l.b16 %v2239
        %v2266 = vunpack.c.h.b16 %v2239
        %v2267 = vunpack.c.l.b16 %v2240
        %v2268 = vunpack.c.h.b16 %v2240
        %v2269 = vunpack.c.l.b16 %v2241
        %v2270 = vunpack.c.h.b16 %v2241
        %v2271 = vunpack.c.l.b16 %v2242
        %v2272 = vunpack.c.h.b16 %v2242
        %v2273 = vunpack.c.l.b16 %v2243
        %v2274 = vunpack.c.h.b16 %v2243
        %v2275 = vunpack.c.l.b16 %v2244
        %v2276 = vunpack.c.h.b16 %v2244
        %v2277 = vunpack.c.l.b16 %v2245
        %v2278 = vunpack.c.h.b16 %v2245
        %v2279 = vunpack.c.l.b16 %v2246
        %v2280 = vunpack.c.h.b16 %v2246
        %v2281 = vpack.c.b16 %v2261, %v2259
        %v2282 = vpack.c.b16 %v2262, %v2260
        %v2283 = vpack.c.b16 %v2265, %v2263
        %v2284 = vpack.c.b16 %v2266, %v2264
        %v2285 = vpack.c.b16 %v2269, %v2267
        %v2286 = vpack.c.b16 %v2270, %v2268
        %v2287 = vpack.c.b16 %v2273, %v2271
        %v2288 = vpack.c.b16 %v2274, %v2272
        %v2289 = vpack.c.b16 %v2277, %v2275
        %v2290 = vpack.c.b16 %v2278, %v2276
        %v2291 = vpack.c.b16 %v2279, %v2279
        %v2292 = vpack.c.b16 %v2280, %v2280
        %v2304 = vsel %vm1824, %v2247, 0
        %v2307 = vsel %vm1828, %v2291, 0
        %v2310 = vsel %vm1828, %v2292, 0
        %2312 = vmatprep.subr.bf16.mxu0 %v2282
        %2313 = vmatpush1.bf16.msra.mxu0 %v2281
        %2314 = vmatprep.subr.bf16.mxu0 %v2284
        %2315 = vmatpush1.bf16.msra.mxu0 %v2283
        %2316 = vmatprep.subr.bf16.mxu0 %v2286
        %2317 = vmatpush1.bf16.msra.mxu0 %v2285
        %2318 = vmatprep.subr.bf16.mxu0 %v2288
        %2319 = vmatpush1.bf16.msra.mxu0 %v2287
        %2320 = vmatprep.subr.bf16.mxu0 %v2290
        %2321 = vmatpush1.bf16.msra.mxu0 %v2289
        %2322 = vmatprep.subr.bf16.mxu0 %v2310
        %2323 = vmatpush1.bf16.msra.mxu0 %v2307
        %2324 = vmatprep.subr.bf16.mxu0 0
        %2325 = vmatpush1.bf16.msra.mxu0 0
        %2326 = vmatprep.subr.bf16.mxu0 0
        %2327 = vmatpush1.bf16.msra.mxu0 0
        %2328 = vmatprep.subr.bf16.mxu0 0
        %2329 = vmatpush1.bf16.msra.mxu0 0
        %2330 = vmatprep.subr.bf16.mxu0 0
        %2331 = vmatpush1.bf16.msra.mxu0 0
        %2332 = vmatprep.subr.bf16.mxu0 0
        %2333 = vmatpush1.bf16.msra.mxu0 0
        %2334 = vmatprep.subr.bf16.mxu0 0
        %2335 = vmatpush1.bf16.msra.mxu0 0
        %2336 = vmatprep.subr.bf16.mxu0 0
        %2337 = vmatpush1.bf16.msra.mxu0 0
        %2338 = vmatprep.subr.bf16.mxu0 0
        %2339 = vmatpush1.bf16.msra.mxu0 0
        %2340 = vmatprep.subr.bf16.mxu0 0
        %2341 = vmatpush1.bf16.msra.mxu0 0
        %2342 = vmatprep.subr.bf16.mxu0 0
        %2343 = vmatpush1.bf16.msra.mxu0 0
        %2344 = vmatprep.mubr.bf16.mxu0 0
        %2345 = vmatmul.mubr.bf16.gmra.mrb[0].mxu0 %v2304
        %v2346 = vpop.f32.mrb[0].mxu0
        %v2347 = vadd.f32 0.0, %v2346
        %v2348 = vpop.f32.mrb[0].mxu0
        %v2349 = vadd.f32 0.0, %v2348
        %v2350 = vpop.f32.mrb[0].mxu0
        %v2351 = vadd.f32 0.0, %v2350
        %v2352 = vpop.f32.mrb[0].mxu0
        %v2353 = vadd.f32 0.0, %v2352
        %2354 = vdwg.mxu0
        %v2355 = vadd.f32 %v2231, %v2347
        %v2356 = vadd.f32 %v2232, %v2349
        %v2357 = vadd.f32 %v2233, %v2351
        %v2358 = vadd.f32 %v2234, %v2353
        %v2359 = vld [vmem:[%s8] sm:$0x3]
        %v2361 = vlaneseq
        %v2362 = vshrl.u32 %v2361, 7
        %v2363 = vsub.s32 0, %v2362
        %v2364 = vrot.slane %v2359, %v2363
        %v2365 = vlaneseq
        %v2366 = vshrl.u32 %v2365, 7
        %v2367 = vsub.s32 1, %v2366
        %v2368 = vrot.slane %v2359, %v2367
        %v2371 = vadd.f32 %v2355, %v2364
        %v2372 = vadd.f32 %v2356, %v2368
        %v2373 = vadd.f32 %v2357, %v2364
        %v2374 = vadd.f32 %v2358, %v2368
        %v2375 = vmax.f32 %v2371, 0.0
        %v2376 = vmax.f32 %v2372, 0.0
        %v2377 = vmax.f32 %v2373, 0.0
        %v2378 = vmax.f32 %v2374, 0.0
        %v2379 = vpack.c.bf16 %v2377, %v2375
        %v2380 = vpack.c.bf16 %v2378, %v2376
        %v2381 = vld [vmem:[%s9] sm:$0x7]
        %vm2382 = vcmask 80896
        %v2384 = vsel %vm2382, %v2381, 0
        %vm2386 = vcmask 1044480
        %v2388 = vsel %vm2386, %v2379, 0
        %v2391 = vsel %vm2386, %v2380, 0
        %2393 = vmatprep.subr.bf16.mxu0 %v2391
        %2394 = vmatpush1.bf16.msra.mxu0 %v2388
        %2395 = vmatprep.subr.bf16.mxu0 0
        %2396 = vmatpush1.bf16.msra.mxu0 0
        %2397 = vmatprep.subr.bf16.mxu0 0
        %2398 = vmatpush1.bf16.msra.mxu0 0
        %2399 = vmatprep.subr.bf16.mxu0 0
        %2400 = vmatpush1.bf16.msra.mxu0 0
        %2401 = vmatprep.subr.bf16.mxu0 0
        %2402 = vmatpush1.bf16.msra.mxu0 0
        %2403 = vmatprep.subr.bf16.mxu0 0
        %2404 = vmatpush1.bf16.msra.mxu0 0
        %2405 = vmatprep.subr.bf16.mxu0 0
        %2406 = vmatpush1.bf16.msra.mxu0 0
        %2407 = vmatprep.subr.bf16.mxu0 0
        %2408 = vmatpush1.bf16.msra.mxu0 0
        %2409 = vmatprep.subr.bf16.mxu0 0
        %2410 = vmatpush1.bf16.msra.mxu0 0
        %2411 = vmatprep.subr.bf16.mxu0 0
        %2412 = vmatpush1.bf16.msra.mxu0 0
        %2413 = vmatprep.subr.bf16.mxu0 0
        %2414 = vmatpush1.bf16.msra.mxu0 0
        %2415 = vmatprep.subr.bf16.mxu0 0
        %2416 = vmatpush1.bf16.msra.mxu0 0
        %2417 = vmatprep.subr.bf16.mxu0 0
        %2418 = vmatpush1.bf16.msra.mxu0 0
        %2419 = vmatprep.subr.bf16.mxu0 0
        %2420 = vmatpush1.bf16.msra.mxu0 0
        %2421 = vmatprep.subr.bf16.mxu0 0
        %2422 = vmatpush1.bf16.msra.mxu0 0
        %2423 = vmatprep.subr.bf16.mxu0 0
        %2424 = vmatpush1.bf16.msra.mxu0 0
        %2425 = vmatprep.mubr.bf16.mxu0 0
        %2426 = vmatmul.mubr.bf16.gmra.mrb[0].mxu0 %v2384
        %v2427 = vpop.f32.mrb[0].mxu0
        %v2428 = vadd.f32 0.0, %v2427
        %v2429 = vpop.f32.mrb[0].mxu0
        %v2430 = vadd.f32 0.0, %v2429
        %v2431 = vpop.f32.mrb[0].mxu0
        %v2432 = vpop.f32.mrb[0].mxu0
        %2433 = vdwg.mxu0
        %v2434 = vld [vmem:[%s10] sm:$0x7]
        %v2436 = vsel %vm2382, %v2434, 0
        %2438 = vmatprep.subr.bf16.mxu0 %v2391
        %2439 = vmatpush1.bf16.msra.mxu0 %v2388
        %2440 = vmatprep.subr.bf16.mxu0 0
        %2441 = vmatpush1.bf16.msra.mxu0 0
        %2442 = vmatprep.subr.bf16.mxu0 0
        %2443 = vmatpush1.bf16.msra.mxu0 0
        %2444 = vmatprep.subr.bf16.mxu0 0
        %2445 = vmatpush1.bf16.msra.mxu0 0
        %2446 = vmatprep.subr.bf16.mxu0 0
        %2447 = vmatpush1.bf16.msra.mxu0 0
        %2448 = vmatprep.subr.bf16.mxu0 0
        %2449 = vmatpush1.bf16.msra.mxu0 0
        %2450 = vmatprep.subr.bf16.mxu0 0
        %2451 = vmatpush1.bf16.msra.mxu0 0
        %2452 = vmatprep.subr.bf16.mxu0 0
        %2453 = vmatpush1.bf16.msra.mxu0 0
        %2454 = vmatprep.subr.bf16.mxu0 0
        %2455 = vmatpush1.bf16.msra.mxu0 0
        %2456 = vmatprep.subr.bf16.mxu0 0
        %2457 = vmatpush1.bf16.msra.mxu0 0
        %2458 = vmatprep.subr.bf16.mxu0 0
        %2459 = vmatpush1.bf16.msra.mxu0 0
        %2460 = vmatprep.subr.bf16.mxu0 0
        %2461 = vmatpush1.bf16.msra.mxu0 0
        %2462 = vmatprep.subr.bf16.mxu0 0
        %2463 = vmatpush1.bf16.msra.mxu0 0
        %2464 = vmatprep.subr.bf16.mxu0 0
        %2465 = vmatpush1.bf16.msra.mxu0 0
        %2466 = vmatprep.subr.bf16.mxu0 0
        %2467 = vmatpush1.bf16.msra.mxu0 0
        %2468 = vmatprep.subr.bf16.mxu0 0
        %2469 = vmatpush1.bf16.msra.mxu0 0
        %2470 = vmatprep.mubr.bf16.mxu0 0
        %2471 = vmatmul.mubr.bf16.gmra.mrb[0].mxu0 %v2436
        %v2472 = vpop.f32.mrb[0].mxu0
        %v2473 = vadd.f32 0.0, %v2472
        %v2474 = vpop.f32.mrb[0].mxu0
        %v2475 = vadd.f32 0.0, %v2474
        %v2476 = vpop.f32.mrb[0].mxu0
        %v2477 = vpop.f32.mrb[0].mxu0
        %2478 = vdwg.mxu0
        %v2479 = vmax.f32 %v2428, %v2473
        %v2480 = vmax.f32 %v2430, %v2475
        %v2481 = vpack.c.bf16 %v2479, %v2479
        %v2482 = vpack.c.bf16 %v2480, %v2480
        %v2483 = vld [vmem:[%s11] sm:$0xf]
        %v2484 = vld [vmem:[%s11 + $0x4] sm:$0xf]
        %v2485 = vld [vmem:[%s11 + $0x8] sm:$0xf]
        %v2486 = vld [vmem:[%s11 + $0xc] sm:$0xf]
        %v2487 = vld [vmem:[%s11 + $0x10] sm:$0xf]
        %v2488 = vld [vmem:[%s11 + $0x14] sm:$0xf]
        %v2489 = vld [vmem:[%s11 + $0x18] sm:$0xf]
        %v2490 = vld [vmem:[%s11 + $0x1c] sm:$0xf]
        %v2491 = vld [vmem:[%s11 + $0x20] sm:$0xf]
        %v2492 = vld [vmem:[%s11 + $0x24] sm:$0xf]
        %v2493 = vld [vmem:[%s11 + $0x28] sm:$0xf]
        %v2494 = vld [vmem:[%s11 + $0x2c] sm:$0xf]
        %v2495 = vld [vmem:[%s11 + $0x30] sm:$0xf]
        %v2496 = vld [vmem:[%s11 + $0x34] sm:$0xf]
        %v2497 = vld [vmem:[%s11 + $0x38] sm:$0xf]
        %v2498 = vld [vmem:[%s11 + $0x3c] sm:$0xf]
        %v2499 = vld [vmem:[%s11 + $0x40] sm:$0xf]
        %v2500 = vld [vmem:[%s11 + $0x44] sm:$0xf]
        %v2501 = vld [vmem:[%s11 + $0x48] sm:$0xf]
        %v2502 = vld [vmem:[%s11 + $0x4c] sm:$0xf]
        %v2523 = vunpack.c.l.b16 %v2483
        %v2524 = vunpack.c.l.b16 %v2484
        %v2525 = vunpack.c.l.b16 %v2485
        %v2526 = vunpack.c.l.b16 %v2486
        %v2527 = vunpack.c.l.b16 %v2487
        %v2528 = vunpack.c.l.b16 %v2488
        %v2529 = vunpack.c.l.b16 %v2489
        %v2530 = vunpack.c.l.b16 %v2490
        %v2531 = vunpack.c.l.b16 %v2491
        %v2532 = vunpack.c.l.b16 %v2492
        %v2533 = vunpack.c.l.b16 %v2493
        %v2534 = vunpack.c.l.b16 %v2494
        %v2535 = vunpack.c.l.b16 %v2495
        %v2536 = vunpack.c.l.b16 %v2496
        %v2537 = vunpack.c.l.b16 %v2497
        %v2538 = vunpack.c.l.b16 %v2498
        %v2539 = vunpack.c.l.b16 %v2499
        %v2540 = vunpack.c.l.b16 %v2500
        %v2541 = vunpack.c.l.b16 %v2501
        %v2542 = vunpack.c.l.b16 %v2502
        %v2543 = vpack.c.b16 %v2524, %v2523
        %v2544 = vpack.c.b16 %v2526, %v2525
        %v2545 = vpack.c.b16 %v2528, %v2527
        %v2546 = vpack.c.b16 %v2530, %v2529
        %v2547 = vpack.c.b16 %v2532, %v2531
        %v2548 = vpack.c.b16 %v2534, %v2533
        %v2549 = vpack.c.b16 %v2536, %v2535
        %v2550 = vpack.c.b16 %v2538, %v2537
        %v2551 = vpack.c.b16 %v2540, %v2539
        %v2552 = vpack.c.b16 %v2542, %v2541
        %vm2563 = vcmask 261120
        %v2565 = vsel %vm2563, %v2482, 0
        %2567 = vmatprep.subr.bf16.mxu0 0
        %2568 = vmatpush1.bf16.msra.mxu0 %v2543
        %2569 = vmatprep.subr.bf16.mxu0 0
        %2570 = vmatpush1.bf16.msra.mxu0 %v2544
        %2571 = vmatprep.subr.bf16.mxu0 0
        %2572 = vmatpush1.bf16.msra.mxu0 %v2545
        %2573 = vmatprep.subr.bf16.mxu0 0
        %2574 = vmatpush1.bf16.msra.mxu0 %v2546
        %2575 = vmatprep.subr.bf16.mxu0 0
        %2576 = vmatpush1.bf16.msra.mxu0 %v2547
        %2577 = vmatprep.subr.bf16.mxu0 0
        %2578 = vmatpush1.bf16.msra.mxu0 %v2548
        %2579 = vmatprep.subr.bf16.mxu0 0
        %2580 = vmatpush1.bf16.msra.mxu0 %v2549
        %2581 = vmatprep.subr.bf16.mxu0 0
        %2582 = vmatpush1.bf16.msra.mxu0 %v2550
        %2583 = vmatprep.subr.bf16.mxu0 0
        %2584 = vmatpush1.bf16.msra.mxu0 %v2551
        %2585 = vmatprep.subr.bf16.mxu0 0
        %2586 = vmatpush1.bf16.msra.mxu0 %v2552
        %2587 = vmatprep.subr.bf16.mxu0 0
        %2588 = vmatpush1.bf16.msra.mxu0 0
        %2589 = vmatprep.subr.bf16.mxu0 0
        %2590 = vmatpush1.bf16.msra.mxu0 0
        %2591 = vmatprep.subr.bf16.mxu0 0
        %2592 = vmatpush1.bf16.msra.mxu0 0
        %2593 = vmatprep.subr.bf16.mxu0 0
        %2594 = vmatpush1.bf16.msra.mxu0 0
        %2595 = vmatprep.subr.bf16.mxu0 0
        %2596 = vmatpush1.bf16.msra.mxu0 0
        %2597 = vmatprep.subr.bf16.mxu0 0
        %2598 = vmatpush1.bf16.msra.mxu0 0
        %2599 = vmatprep.mubr.bf16.mxu0 %v2565
        %2600 = vmatmul.mubr.bf16.gmra.mrb[0].mxu0 %v2481
        %v2601 = vpop.f32.mrb[0].mxu0
        %v2602 = vadd.f32 0.0, %v2601
        %v2603 = vpop.f32.mrb[0].mxu0
        %v2604 = vpop.f32.mrb[0].mxu0
        %v2605 = vpop.f32.mrb[0].mxu0
        %2606 = vdwg.mxu0
        %v2607 = vld [vmem:[%s12] sm:$0xf]
        %v2608 = vld [vmem:[%s12 + $0x4] sm:$0xf]
        %v2609 = vld [vmem:[%s12 + $0x8] sm:$0xf]
        %v2610 = vld [vmem:[%s12 + $0xc] sm:$0xf]
        %v2611 = vld [vmem:[%s12 + $0x10] sm:$0xf]
        %v2612 = vld [vmem:[%s12 + $0x14] sm:$0xf]
        %v2613 = vld [vmem:[%s12 + $0x18] sm:$0xf]
        %v2614 = vld [vmem:[%s12 + $0x1c] sm:$0xf]
        %v2615 = vld [vmem:[%s12 + $0x20] sm:$0xf]
        %v2616 = vld [vmem:[%s12 + $0x24] sm:$0xf]
        %v2617 = vld [vmem:[%s12 + $0x28] sm:$0xf]
        %v2618 = vld [vmem:[%s12 + $0x2c] sm:$0xf]
        %v2619 = vld [vmem:[%s12 + $0x30] sm:$0xf]
        %v2620 = vld [vmem:[%s12 + $0x34] sm:$0xf]
        %v2621 = vld [vmem:[%s12 + $0x38] sm:$0xf]
        %v2622 = vld [vmem:[%s12 + $0x3c] sm:$0xf]
        %v2623 = vld [vmem:[%s12 + $0x40] sm:$0xf]
        %v2624 = vld [vmem:[%s12 + $0x44] sm:$0xf]
        %v2625 = vld [vmem:[%s12 + $0x48] sm:$0xf]
        %v2626 = vld [vmem:[%s12 + $0x4c] sm:$0xf]
        %v2647 = vunpack.c.l.b16 %v2607
        %v2648 = vunpack.c.l.b16 %v2608
        %v2649 = vunpack.c.l.b16 %v2609
        %v2650 = vunpack.c.l.b16 %v2610
        %v2651 = vunpack.c.l.b16 %v2611
        %v2652 = vunpack.c.l.b16 %v2612
        %v2653 = vunpack.c.l.b16 %v2613
        %v2654 = vunpack.c.l.b16 %v2614
        %v2655 = vunpack.c.l.b16 %v2615
        %v2656 = vunpack.c.l.b16 %v2616
        %v2657 = vunpack.c.l.b16 %v2617
        %v2658 = vunpack.c.l.b16 %v2618
        %v2659 = vunpack.c.l.b16 %v2619
        %v2660 = vunpack.c.l.b16 %v2620
        %v2661 = vunpack.c.l.b16 %v2621
        %v2662 = vunpack.c.l.b16 %v2622
        %v2663 = vunpack.c.l.b16 %v2623
        %v2664 = vunpack.c.l.b16 %v2624
        %v2665 = vunpack.c.l.b16 %v2625
        %v2666 = vunpack.c.l.b16 %v2626
        %v2667 = vpack.c.b16 %v2648, %v2647
        %v2668 = vpack.c.b16 %v2650, %v2649
        %v2669 = vpack.c.b16 %v2652, %v2651
        %v2670 = vpack.c.b16 %v2654, %v2653
        %v2671 = vpack.c.b16 %v2656, %v2655
        %v2672 = vpack.c.b16 %v2658, %v2657
        %v2673 = vpack.c.b16 %v2660, %v2659
        %v2674 = vpack.c.b16 %v2662, %v2661
        %v2675 = vpack.c.b16 %v2664, %v2663
        %v2676 = vpack.c.b16 %v2666, %v2665
        %2687 = vmatprep.subr.bf16.mxu0 0
        %2688 = vmatpush1.bf16.msra.mxu0 %v2667
        %2689 = vmatprep.subr.bf16.mxu0 0
        %2690 = vmatpush1.bf16.msra.mxu0 %v2668
        %2691 = vmatprep.subr.bf16.mxu0 0
        %2692 = vmatpush1.bf16.msra.mxu0 %v2669
        %2693 = vmatprep.subr.bf16.mxu0 0
        %2694 = vmatpush1.bf16.msra.mxu0 %v2670
        %2695 = vmatprep.subr.bf16.mxu0 0
        %2696 = vmatpush1.bf16.msra.mxu0 %v2671
        %2697 = vmatprep.subr.bf16.mxu0 0
        %2698 = vmatpush1.bf16.msra.mxu0 %v2672
        %2699 = vmatprep.subr.bf16.mxu0 0
        %2700 = vmatpush1.bf16.msra.mxu0 %v2673
        %2701 = vmatprep.subr.bf16.mxu0 0
        %2702 = vmatpush1.bf16.msra.mxu0 %v2674
        %2703 = vmatprep.subr.bf16.mxu0 0
        %2704 = vmatpush1.bf16.msra.mxu0 %v2675
        %2705 = vmatprep.subr.bf16.mxu0 0
        %2706 = vmatpush1.bf16.msra.mxu0 %v2676
        %2707 = vmatprep.subr.bf16.mxu0 0
        %2708 = vmatpush1.bf16.msra.mxu0 0
        %2709 = vmatprep.subr.bf16.mxu0 0
        %2710 = vmatpush1.bf16.msra.mxu0 0
        %2711 = vmatprep.subr.bf16.mxu0 0
        %2712 = vmatpush1.bf16.msra.mxu0 0
        %2713 = vmatprep.subr.bf16.mxu0 0
        %2714 = vmatpush1.bf16.msra.mxu0 0
        %2715 = vmatprep.subr.bf16.mxu0 0
        %2716 = vmatpush1.bf16.msra.mxu0 0
        %2717 = vmatprep.subr.bf16.mxu0 0
        %2718 = vmatpush1.bf16.msra.mxu0 0
        %2719 = vmatprep.mubr.bf16.mxu0 %v2565
        %2720 = vmatmul.mubr.bf16.gmra.mrb[0].mxu0 %v2481
        %v2721 = vpop.f32.mrb[0].mxu0
        %v2722 = vadd.f32 0.0, %v2721
        %v2723 = vpop.f32.mrb[0].mxu0
        %v2724 = vpop.f32.mrb[0].mxu0
        %v2725 = vpop.f32.mrb[0].mxu0
        %2726 = vdwg.mxu0
        %v2727 = vmax.f32 %v2602, %v2722
        %v2728 = vpack.c.bf16 %v2727, %v2727
        %v2729 = vld [vmem:[%s13] sm:$0xf]
        %v2730 = vld [vmem:[%s13 + $0x4] sm:$0xf]
        %v2731 = vld [vmem:[%s13 + $0x8] sm:$0xf]
        %v2732 = vld [vmem:[%s13 + $0xc] sm:$0xf]
        %v2733 = vld [vmem:[%s13 + $0x10] sm:$0xf]
        %v2734 = vld [vmem:[%s13 + $0x14] sm:$0xf]
        %v2735 = vld [vmem:[%s13 + $0x18] sm:$0xf]
        %v2736 = vld [vmem:[%s13 + $0x1c] sm:$0xf]
        %v2737 = vld [vmem:[%s13 + $0x20] sm:$0xf]
        %v2738 = vld [vmem:[%s13 + $0x24] sm:$0xf]
        %s2739 = scalar_lea.vmem %s13, 40
        %v2740 = vld [vmem:[%s2739] sm:$0xf]
        %v2741 = vld [vmem:[%s2739 + $0x4] sm:$0xf]
        %v2742 = vld [vmem:[%s2739 + $0x8] sm:$0xf]
        %v2743 = vld [vmem:[%s2739 + $0xc] sm:$0xf]
        %v2744 = vld [vmem:[%s2739 + $0x10] sm:$0xf]
        %v2745 = vld [vmem:[%s2739 + $0x14] sm:$0xf]
        %v2746 = vld [vmem:[%s2739 + $0x18] sm:$0xf]
        %v2747 = vld [vmem:[%s2739 + $0x1c] sm:$0xf]
        %v2748 = vld [vmem:[%s2739 + $0x20] sm:$0xf]
        %v2749 = vld [vmem:[%s2739 + $0x24] sm:$0xf]
        %v2751 = vshrl.u32 %v2728, 16
        %v2763 = vunpack.c.l.b16 %v2740
        %v2764 = vunpack.c.l.b16 %v2741
        %v2765 = vunpack.c.l.b16 %v2742
        %v2766 = vunpack.c.l.b16 %v2743
        %v2767 = vunpack.c.l.b16 %v2744
        %v2768 = vunpack.c.l.b16 %v2745
        %v2769 = vunpack.c.l.b16 %v2746
        %v2770 = vunpack.c.l.b16 %v2747
        %v2771 = vunpack.c.l.b16 %v2748
        %v2772 = vunpack.c.l.b16 %v2749
        %v2773 = vpack.c.b16 %v2764, %v2763
        %v2774 = vpack.c.b16 %v2766, %v2765
        %v2775 = vpack.c.b16 %v2768, %v2767
        %v2776 = vpack.c.b16 %v2770, %v2769
        %v2777 = vpack.c.b16 %v2772, %v2771
        %vm2783 = vcmask 654336
        %v2785 = vsel %vm2783, %v2751, 0
        %2787 = vmatprep.subr.bf16.mxu0 0
        %2788 = vmatpush1.bf16.msra.mxu0 %v2773
        %2789 = vmatprep.subr.bf16.mxu0 0
        %2790 = vmatpush1.bf16.msra.mxu0 %v2774
        %2791 = vmatprep.subr.bf16.mxu0 0
        %2792 = vmatpush1.bf16.msra.mxu0 %v2775
        %2793 = vmatprep.subr.bf16.mxu0 0
        %2794 = vmatpush1.bf16.msra.mxu0 %v2776
        %2795 = vmatprep.subr.bf16.mxu0 0
        %2796 = vmatpush1.bf16.msra.mxu0 %v2777
        %2797 = vmatprep.subr.bf16.mxu0 0
        %2798 = vmatpush1.bf16.msra.mxu0 0
        %2799 = vmatprep.subr.bf16.mxu0 0
        %2800 = vmatpush1.bf16.msra.mxu0 0
        %2801 = vmatprep.subr.bf16.mxu0 0
        %2802 = vmatpush1.bf16.msra.mxu0 0
        %2803 = vmatprep.subr.bf16.mxu0 0
        %2804 = vmatpush1.bf16.msra.mxu0 0
        %2805 = vmatprep.subr.bf16.mxu0 0
        %2806 = vmatpush1.bf16.msra.mxu0 0
        %2807 = vmatprep.subr.bf16.mxu0 0
        %2808 = vmatpush1.bf16.msra.mxu0 0
        %2809 = vmatprep.subr.bf16.mxu0 0
        %2810 = vmatpush1.bf16.msra.mxu0 0
        %2811 = vmatprep.subr.bf16.mxu0 0
        %2812 = vmatpush1.bf16.msra.mxu0 0
        %2813 = vmatprep.subr.bf16.mxu0 0
        %2814 = vmatpush1.bf16.msra.mxu0 0
        %2815 = vmatprep.subr.bf16.mxu0 0
        %2816 = vmatpush1.bf16.msra.mxu0 0
        %2817 = vmatprep.subr.bf16.mxu0 0
        %2818 = vmatpush1.bf16.msra.mxu0 0
        %2819 = vmatprep.mubr.bf16.mxu0 0
        %2820 = vmatmul.mubr.bf16.gmra.mrb[0].mxu0 %v2785
        %v2821 = vpop.f32.mrb[0].mxu0
        %v2822 = vadd.f32 0.0, %v2821
        %v2823 = vpop.f32.mrb[0].mxu0
        %v2824 = vpop.f32.mrb[0].mxu0
        %v2825 = vpop.f32.mrb[0].mxu0
        %2826 = vdwg.mxu0
        %v2837 = vunpack.c.l.b16 %v2729
        %v2838 = vunpack.c.l.b16 %v2730
        %v2839 = vunpack.c.l.b16 %v2731
        %v2840 = vunpack.c.l.b16 %v2732
        %v2841 = vunpack.c.l.b16 %v2733
        %v2842 = vunpack.c.l.b16 %v2734
        %v2843 = vunpack.c.l.b16 %v2735
        %v2844 = vunpack.c.l.b16 %v2736
        %v2845 = vunpack.c.l.b16 %v2737
        %v2846 = vunpack.c.l.b16 %v2738
        %v2847 = vpack.c.b16 %v2838, %v2837
        %v2848 = vpack.c.b16 %v2840, %v2839
        %v2849 = vpack.c.b16 %v2842, %v2841
        %v2850 = vpack.c.b16 %v2844, %v2843
        %v2851 = vpack.c.b16 %v2846, %v2845
        %v2857 = vsel %vm2783, %v2728, 0
        %2859 = vmatprep.subr.bf16.mxu0 0
        %2860 = vmatpush1.bf16.msra.mxu0 %v2847
        %2861 = vmatprep.subr.bf16.mxu0 0
        %2862 = vmatpush1.bf16.msra.mxu0 %v2848
        %2863 = vmatprep.subr.bf16.mxu0 0
        %2864 = vmatpush1.bf16.msra.mxu0 %v2849
        %2865 = vmatprep.subr.bf16.mxu0 0
        %2866 = vmatpush1.bf16.msra.mxu0 %v2850
        %2867 = vmatprep.subr.bf16.mxu0 0
        %2868 = vmatpush1.bf16.msra.mxu0 %v2851
        %2869 = vmatprep.subr.bf16.mxu0 0
        %2870 = vmatpush1.bf16.msra.mxu0 0
        %2871 = vmatprep.subr.bf16.mxu0 0
        %2872 = vmatpush1.bf16.msra.mxu0 0
        %2873 = vmatprep.subr.bf16.mxu0 0
        %2874 = vmatpush1.bf16.msra.mxu0 0
        %2875 = vmatprep.subr.bf16.mxu0 0
        %2876 = vmatpush1.bf16.msra.mxu0 0
        %2877 = vmatprep.subr.bf16.mxu0 0
        %2878 = vmatpush1.bf16.msra.mxu0 0
        %2879 = vmatprep.subr.bf16.mxu0 0
        %2880 = vmatpush1.bf16.msra.mxu0 0
        %2881 = vmatprep.subr.bf16.mxu0 0
        %2882 = vmatpush1.bf16.msra.mxu0 0
        %2883 = vmatprep.subr.bf16.mxu0 0
        %2884 = vmatpush1.bf16.msra.mxu0 0
        %2885 = vmatprep.subr.bf16.mxu0 0
        %2886 = vmatpush1.bf16.msra.mxu0 0
        %2887 = vmatprep.subr.bf16.mxu0 0
        %2888 = vmatpush1.bf16.msra.mxu0 0
        %2889 = vmatprep.subr.bf16.mxu0 0
        %2890 = vmatpush1.bf16.msra.mxu0 0
        %2891 = vmatprep.mubr.bf16.mxu0 0
        %2892 = vmatmul.mubr.bf16.gmra.mrb[0].mxu0 %v2857
        %v2893 = vpop.f32.mrb[0].mxu0
        %v2894 = vadd.f32 %v2822, %v2893
        %v2895 = vpop.f32.mrb[0].mxu0
        %v2896 = vpop.f32.mrb[0].mxu0
        %v2897 = vpop.f32.mrb[0].mxu0
        %2898 = vdwg.mxu0
        %s2899 = scalar_lea.vmem %s13, 80
        %v2900 = vld [vmem:[%s2899] sm:$0xf]
        %v2901 = vld [vmem:[%s2899 + $0x4] sm:$0xf]
        %v2902 = vld [vmem:[%s2899 + $0x8] sm:$0xf]
        %v2903 = vld [vmem:[%s2899 + $0xc] sm:$0xf]
        %v2904 = vld [vmem:[%s2899 + $0x10] sm:$0xf]
        %v2905 = vld [vmem:[%s2899 + $0x14] sm:$0xf]
        %v2906 = vld [vmem:[%s2899 + $0x18] sm:$0xf]
        %v2907 = vld [vmem:[%s2899 + $0x1c] sm:$0xf]
        %v2908 = vld [vmem:[%s2899 + $0x20] sm:$0xf]
        %v2909 = vld [vmem:[%s2899 + $0x24] sm:$0xf]
        %v2911 = vrot.slane %v2728, 1
        %v2922 = vunpack.c.l.b16 %v2900
        %v2923 = vunpack.c.l.b16 %v2901
        %v2924 = vunpack.c.l.b16 %v2902
        %v2925 = vunpack.c.l.b16 %v2903
        %v2926 = vunpack.c.l.b16 %v2904
        %v2927 = vunpack.c.l.b16 %v2905
        %v2928 = vunpack.c.l.b16 %v2906
        %v2929 = vunpack.c.l.b16 %v2907
        %v2930 = vunpack.c.l.b16 %v2908
        %v2931 = vunpack.c.l.b16 %v2909
        %v2932 = vpack.c.b16 %v2923, %v2922
        %v2933 = vpack.c.b16 %v2925, %v2924
        %v2934 = vpack.c.b16 %v2927, %v2926
        %v2935 = vpack.c.b16 %v2929, %v2928
        %v2936 = vpack.c.b16 %v2931, %v2930
        %v2943 = vsel %vm2783, %v2911, 0
        %2945 = vmatprep.subr.bf16.mxu0 0
        %2946 = vmatpush1.bf16.msra.mxu0 %v2932
        %2947 = vmatprep.subr.bf16.mxu0 0
        %2948 = vmatpush1.bf16.msra.mxu0 %v2933
        %2949 = vmatprep.subr.bf16.mxu0 0
        %2950 = vmatpush1.bf16.msra.mxu0 %v2934
        %2951 = vmatprep.subr.bf16.mxu0 0
        %2952 = vmatpush1.bf16.msra.mxu0 %v2935
        %2953 = vmatprep.subr.bf16.mxu0 0
        %2954 = vmatpush1.bf16.msra.mxu0 %v2936
        %2955 = vmatprep.subr.bf16.mxu0 0
        %2956 = vmatpush1.bf16.msra.mxu0 0
        %2957 = vmatprep.subr.bf16.mxu0 0
        %2958 = vmatpush1.bf16.msra.mxu0 0
        %2959 = vmatprep.subr.bf16.mxu0 0
        %2960 = vmatpush1.bf16.msra.mxu0 0
        %2961 = vmatprep.subr.bf16.mxu0 0
        %2962 = vmatpush1.bf16.msra.mxu0 0
        %2963 = vmatprep.subr.bf16.mxu0 0
        %2964 = vmatpush1.bf16.msra.mxu0 0
        %2965 = vmatprep.subr.bf16.mxu0 0
        %2966 = vmatpush1.bf16.msra.mxu0 0
        %2967 = vmatprep.subr.bf16.mxu0 0
        %2968 = vmatpush1.bf16.msra.mxu0 0
        %2969 = vmatprep.subr.bf16.mxu0 0
        %2970 = vmatpush1.bf16.msra.mxu0 0
        %2971 = vmatprep.subr.bf16.mxu0 0
        %2972 = vmatpush1.bf16.msra.mxu0 0
        %2973 = vmatprep.subr.bf16.mxu0 0
        %2974 = vmatpush1.bf16.msra.mxu0 0
        %2975 = vmatprep.subr.bf16.mxu0 0
        %2976 = vmatpush1.bf16.msra.mxu0 0
        %2977 = vmatprep.mubr.bf16.mxu0 0
        %2978 = vmatmul.mubr.bf16.gmra.mrb[0].mxu0 %v2943
        %v2979 = vpop.f32.mrb[0].mxu0
        %v2980 = vadd.f32 0.0, %v2979
        %v2981 = vpop.f32.mrb[0].mxu0
        %v2982 = vpop.f32.mrb[0].mxu0
        %v2983 = vpop.f32.mrb[0].mxu0
        %2984 = vdwg.mxu0
        %v2985 = vadd.f32 %v2894, %v2980
        %s2986 = scalar_lea.vmem %s13, 120
        %v2987 = vld [vmem:[%s2986] sm:$0xf]
        %v2988 = vld [vmem:[%s2986 + $0x4] sm:$0xf]
        %v2989 = vld [vmem:[%s2986 + $0x8] sm:$0xf]
        %v2990 = vld [vmem:[%s2986 + $0xc] sm:$0xf]
        %v2991 = vld [vmem:[%s2986 + $0x10] sm:$0xf]
        %v2992 = vld [vmem:[%s2986 + $0x14] sm:$0xf]
        %v2993 = vld [vmem:[%s2986 + $0x18] sm:$0xf]
        %v2994 = vld [vmem:[%s2986 + $0x1c] sm:$0xf]
        %v2995 = vld [vmem:[%s2986 + $0x20] sm:$0xf]
        %v2996 = vld [vmem:[%s2986 + $0x24] sm:$0xf]
        %v2997 = vrot.slane %v2751, 1
        %v3008 = vunpack.c.l.b16 %v2987
        %v3009 = vunpack.c.l.b16 %v2988
        %v3010 = vunpack.c.l.b16 %v2989
        %v3011 = vunpack.c.l.b16 %v2990
        %v3012 = vunpack.c.l.b16 %v2991
        %v3013 = vunpack.c.l.b16 %v2992
        %v3014 = vunpack.c.l.b16 %v2993
        %v3015 = vunpack.c.l.b16 %v2994
        %v3016 = vunpack.c.l.b16 %v2995
        %v3017 = vunpack.c.l.b16 %v2996
        %v3018 = vpack.c.b16 %v3009, %v3008
        %v3019 = vpack.c.b16 %v3011, %v3010
        %v3020 = vpack.c.b16 %v3013, %v3012
        %v3021 = vpack.c.b16 %v3015, %v3014
        %v3022 = vpack.c.b16 %v3017, %v3016
        %v3029 = vsel %vm2783, %v2997, 0
        %3031 = vmatprep.subr.bf16.mxu0 0
        %3032 = vmatpush1.bf16.msra.mxu0 %v3018
        %3033 = vmatprep.subr.bf16.mxu0 0
        %3034 = vmatpush1.bf16.msra.mxu0 %v3019
        %3035 = vmatprep.subr.bf16.mxu0 0
        %3036 = vmatpush1.bf16.msra.mxu0 %v3020
        %3037 = vmatprep.subr.bf16.mxu0 0
        %3038 = vmatpush1.bf16.msra.mxu0 %v3021
        %3039 = vmatprep.subr.bf16.mxu0 0
        %3040 = vmatpush1.bf16.msra.mxu0 %v3022
        %3041 = vmatprep.subr.bf16.mxu0 0
        %3042 = vmatpush1.bf16.msra.mxu0 0
        %3043 = vmatprep.subr.bf16.mxu0 0
        %3044 = vmatpush1.bf16.msra.mxu0 0
        %3045 = vmatprep.subr.bf16.mxu0 0
        %3046 = vmatpush1.bf16.msra.mxu0 0
        %3047 = vmatprep.subr.bf16.mxu0 0
        %3048 = vmatpush1.bf16.msra.mxu0 0
        %3049 = vmatprep.subr.bf16.mxu0 0
        %3050 = vmatpush1.bf16.msra.mxu0 0
        %3051 = vmatprep.subr.bf16.mxu0 0
        %3052 = vmatpush1.bf16.msra.mxu0 0
        %3053 = vmatprep.subr.bf16.mxu0 0
        %3054 = vmatpush1.bf16.msra.mxu0 0
        %3055 = vmatprep.subr.bf16.mxu0 0
        %3056 = vmatpush1.bf16.msra.mxu0 0
        %3057 = vmatprep.subr.bf16.mxu0 0
        %3058 = vmatpush1.bf16.msra.mxu0 0
        %3059 = vmatprep.subr.bf16.mxu0 0
        %3060 = vmatpush1.bf16.msra.mxu0 0
        %3061 = vmatprep.subr.bf16.mxu0 0
        %3062 = vmatpush1.bf16.msra.mxu0 0
        %3063 = vmatprep.mubr.bf16.mxu0 0
        %3064 = vmatmul.mubr.bf16.gmra.mrb[0].mxu0 %v3029
        %v3065 = vpop.f32.mrb[0].mxu0
        %v3066 = vadd.f32 0.0, %v3065
        %v3067 = vpop.f32.mrb[0].mxu0
        %v3068 = vpop.f32.mrb[0].mxu0
        %v3069 = vpop.f32.mrb[0].mxu0
        %3070 = vdwg.mxu0
        %v3071 = vadd.f32 %v2985, %v3066
        %s3072 = scalar_lea.vmem %s13, 160
        %v3073 = vld [vmem:[%s3072] sm:$0xf]
        %v3074 = vld [vmem:[%s3072 + $0x4] sm:$0xf]
        %v3075 = vld [vmem:[%s3072 + $0x8] sm:$0xf]
        %v3076 = vld [vmem:[%s3072 + $0xc] sm:$0xf]
        %v3077 = vld [vmem:[%s3072 + $0x10] sm:$0xf]
        %v3078 = vld [vmem:[%s3072 + $0x14] sm:$0xf]
        %v3079 = vld [vmem:[%s3072 + $0x18] sm:$0xf]
        %v3080 = vld [vmem:[%s3072 + $0x1c] sm:$0xf]
        %v3081 = vld [vmem:[%s3072 + $0x20] sm:$0xf]
        %v3082 = vld [vmem:[%s3072 + $0x24] sm:$0xf]
        %v3083 = vrot.slane %v2728, 2
        %v3094 = vunpack.c.l.b16 %v3073
        %v3095 = vunpack.c.l.b16 %v3074
        %v3096 = vunpack.c.l.b16 %v3075
        %v3097 = vunpack.c.l.b16 %v3076
        %v3098 = vunpack.c.l.b16 %v3077
        %v3099 = vunpack.c.l.b16 %v3078
        %v3100 = vunpack.c.l.b16 %v3079
        %v3101 = vunpack.c.l.b16 %v3080
        %v3102 = vunpack.c.l.b16 %v3081
        %v3103 = vunpack.c.l.b16 %v3082
        %v3104 = vpack.c.b16 %v3095, %v3094
        %v3105 = vpack.c.b16 %v3097, %v3096
        %v3106 = vpack.c.b16 %v3099, %v3098
        %v3107 = vpack.c.b16 %v3101, %v3100
        %v3108 = vpack.c.b16 %v3103, %v3102
        %v3115 = vsel %vm2783, %v3083, 0
        %3117 = vmatprep.subr.bf16.mxu0 0
        %3118 = vmatpush1.bf16.msra.mxu0 %v3104
        %3119 = vmatprep.subr.bf16.mxu0 0
        %3120 = vmatpush1.bf16.msra.mxu0 %v3105
        %3121 = vmatprep.subr.bf16.mxu0 0
        %3122 = vmatpush1.bf16.msra.mxu0 %v3106
        %3123 = vmatprep.subr.bf16.mxu0 0
        %3124 = vmatpush1.bf16.msra.mxu0 %v3107
        %3125 = vmatprep.subr.bf16.mxu0 0
        %3126 = vmatpush1.bf16.msra.mxu0 %v3108
        %3127 = vmatprep.subr.bf16.mxu0 0
        %3128 = vmatpush1.bf16.msra.mxu0 0
        %3129 = vmatprep.subr.bf16.mxu0 0
        %3130 = vmatpush1.bf16.msra.mxu0 0
        %3131 = vmatprep.subr.bf16.mxu0 0
        %3132 = vmatpush1.bf16.msra.mxu0 0
        %3133 = vmatprep.subr.bf16.mxu0 0
        %3134 = vmatpush1.bf16.msra.mxu0 0
        %3135 = vmatprep.subr.bf16.mxu0 0
        %3136 = vmatpush1.bf16.msra.mxu0 0
        %3137 = vmatprep.subr.bf16.mxu0 0
        %3138 = vmatpush1.bf16.msra.mxu0 0
        %3139 = vmatprep.subr.bf16.mxu0 0
        %3140 = vmatpush1.bf16.msra.mxu0 0
        %3141 = vmatprep.subr.bf16.mxu0 0
        %3142 = vmatpush1.bf16.msra.mxu0 0
        %3143 = vmatprep.subr.bf16.mxu0 0
        %3144 = vmatpush1.bf16.msra.mxu0 0
        %3145 = vmatprep.subr.bf16.mxu0 0
        %3146 = vmatpush1.bf16.msra.mxu0 0
        %3147 = vmatprep.subr.bf16.mxu0 0
        %3148 = vmatpush1.bf16.msra.mxu0 0
        %3149 = vmatprep.mubr.bf16.mxu0 0
        %3150 = vmatmul.mubr.bf16.gmra.mrb[0].mxu0 %v3115
        %v3151 = vpop.f32.mrb[0].mxu0
        %v3152 = vadd.f32 0.0, %v3151
        %v3153 = vpop.f32.mrb[0].mxu0
        %v3154 = vpop.f32.mrb[0].mxu0
        %v3155 = vpop.f32.mrb[0].mxu0
        %3156 = vdwg.mxu0
        %v3157 = vadd.f32 %v3071, %v3152
        %v3158 = vld [vmem:[%s14] sm:$0x1]
        %v3159 = vadd.f32 %v3157, %v3158
        %v3160 = vmax.f32 %v3159, 0.0
        %v3161 = vpack.c.bf16 %v3160, %v3160
        %v3162 = vld [vmem:[%s15] sm:$0xf]
        %v3163 = vld [vmem:[%s15 + $0x4] sm:$0xf]
        %v3164 = vld [vmem:[%s15 + $0x8] sm:$0xf]
        %v3165 = vld [vmem:[%s15 + $0xc] sm:$0xf]
        %v3166 = vld [vmem:[%s15 + $0x10] sm:$0xf]
        %v3167 = vld [vmem:[%s15 + $0x14] sm:$0xf]
        %v3168 = vld [vmem:[%s15 + $0x18] sm:$0xf]
        %v3169 = vld [vmem:[%s15 + $0x1c] sm:$0xf]
        %v3170 = vld [vmem:[%s15 + $0x20] sm:$0xf]
        %v3171 = vld [vmem:[%s15 + $0x24] sm:$0xf]
        %v3172 = vld [vmem:[%s15 + $0x28] sm:$0xf]
        %v3173 = vld [vmem:[%s15 + $0x2c] sm:$0xf]
        %v3174 = vld [vmem:[%s15 + $0x30] sm:$0xf]
        %v3175 = vld [vmem:[%s15 + $0x34] sm:$0xf]
        %v3176 = vld [vmem:[%s15 + $0x38] sm:$0xf]
        %v3177 = vld [vmem:[%s15 + $0x3c] sm:$0xf]
        %v3178 = vld [vmem:[%s16] sm:$0x1]
        %v3195 = vunpack.c.l.b16 %v3162
        %v3196 = vunpack.c.l.b16 %v3163
        %v3197 = vunpack.c.l.b16 %v3164
        %v3198 = vunpack.c.l.b16 %v3165
        %v3199 = vunpack.c.l.b16 %v3166
        %v3200 = vunpack.c.l.b16 %v3167
        %v3201 = vunpack.c.l.b16 %v3168
        %v3202 = vunpack.c.l.b16 %v3169
        %v3203 = vunpack.c.l.b16 %v3170
        %v3204 = vunpack.c.l.b16 %v3171
        %v3205 = vunpack.c.l.b16 %v3172
        %v3206 = vunpack.c.l.b16 %v3173
        %v3207 = vunpack.c.l.b16 %v3174
        %v3208 = vunpack.c.l.b16 %v3175
        %v3209 = vunpack.c.l.b16 %v3176
        %v3210 = vunpack.c.l.b16 %v3177
        %v3211 = vpack.c.b16 %v3196, %v3195
        %v3212 = vpack.c.b16 %v3198, %v3197
        %v3213 = vpack.c.b16 %v3200, %v3199
        %v3214 = vpack.c.b16 %v3202, %v3201
        %v3215 = vpack.c.b16 %v3204, %v3203
        %v3216 = vpack.c.b16 %v3206, %v3205
        %v3217 = vpack.c.b16 %v3208, %v3207
        %v3218 = vpack.c.b16 %v3210, %v3209
        %3227 = vmatprep.subr.bf16.mxu0 0
        %3228 = vmatpush1.bf16.msra.mxu0 %v3211
        %3229 = vmatprep.subr.bf16.mxu0 0
        %3230 = vmatpush1.bf16.msra.mxu0 %v3212
        %3231 = vmatprep.subr.bf16.mxu0 0
        %3232 = vmatpush1.bf16.msra.mxu0 %v3213
        %3233 = vmatprep.subr.bf16.mxu0 0
        %3234 = vmatpush1.bf16.msra.mxu0 %v3214
        %3235 = vmatprep.subr.bf16.mxu0 0
        %3236 = vmatpush1.bf16.msra.mxu0 %v3215
        %3237 = vmatprep.subr.bf16.mxu0 0
        %3238 = vmatpush1.bf16.msra.mxu0 %v3216
        %3239 = vmatprep.subr.bf16.mxu0 0
        %3240 = vmatpush1.bf16.msra.mxu0 %v3217
        %3241 = vmatprep.subr.bf16.mxu0 0
        %3242 = vmatpush1.bf16.msra.mxu0 %v3218
        %3243 = vmatprep.subr.bf16.mxu0 0
        %3244 = vmatpush1.bf16.msra.mxu0 0
        %3245 = vmatprep.subr.bf16.mxu0 0
        %3246 = vmatpush1.bf16.msra.mxu0 0
        %3247 = vmatprep.subr.bf16.mxu0 0
        %3248 = vmatpush1.bf16.msra.mxu0 0
        %3249 = vmatprep.subr.bf16.mxu0 0
        %3250 = vmatpush1.bf16.msra.mxu0 0
        %3251 = vmatprep.subr.bf16.mxu0 0
        %3252 = vmatpush1.bf16.msra.mxu0 0
        %3253 = vmatprep.subr.bf16.mxu0 0
        %3254 = vmatpush1.bf16.msra.mxu0 0
        %3255 = vmatprep.subr.bf16.mxu0 0
        %3256 = vmatpush1.bf16.msra.mxu0 0
        %3257 = vmatprep.subr.bf16.mxu0 0
        %3258 = vmatpush1.bf16.msra.mxu0 0
        %3259 = vmatprep.mubr.bf16.mxu0 0
        %3260 = vmatmul.mubr.bf16.gmra.mrb[0].mxu0 %v3161
        %v3261 = vpop.f32.mrb[0].mxu0
        %v3262 = vadd.f32 %v3178, %v3261
        %v3263 = vpop.f32.mrb[0].mxu0
        %v3264 = vpop.f32.mrb[0].mxu0
        %v3265 = vpop.f32.mrb[0].mxu0
        %3266 = vdwg.mxu0
        %v3267 = vmax.f32 %v3262, 0.0
        %v3268 = vpack.c.bf16 %v3267, %v3267
        %v3269 = vld [vmem:[%s17] sm:$0xf]
        %v3270 = vld [vmem:[%s17 + $0x4] sm:$0xf]
        %v3271 = vld [vmem:[%s17 + $0x8] sm:$0xf]
        %v3272 = vld [vmem:[%s17 + $0xc] sm:$0xf]
        %v3273 = vld [vmem:[%s17 + $0x10] sm:$0xf]
        %v3274 = vld [vmem:[%s17 + $0x14] sm:$0xf]
        %v3275 = vld [vmem:[%s17 + $0x18] sm:$0xf]
        %v3276 = vld [vmem:[%s17 + $0x1c] sm:$0xf]
        %v3277 = vld [vmem:[%s17 + $0x20] sm:$0xf]
        %v3278 = vld [vmem:[%s17 + $0x24] sm:$0xf]
        %v3279 = vld [vmem:[%s17 + $0x28] sm:$0xf]
        %v3280 = vld [vmem:[%s17 + $0x2c] sm:$0xf]
        %v3281 = vld [vmem:[%s17 + $0x30] sm:$0xf]
        %v3282 = vld [vmem:[%s17 + $0x34] sm:$0xf]
        %v3283 = vld [vmem:[%s17 + $0x38] sm:$0xf]
        %v3284 = vld [vmem:[%s17 + $0x3c] sm:$0xf]
        %v3285 = vld [vmem:[%s18] sm:$0x1]
        %v3302 = vunpack.c.l.b16 %v3269
        %v3303 = vunpack.c.l.b16 %v3270
        %v3304 = vunpack.c.l.b16 %v3271
        %v3305 = vunpack.c.l.b16 %v3272
        %v3306 = vunpack.c.l.b16 %v3273
        %v3307 = vunpack.c.l.b16 %v3274
        %v3308 = vunpack.c.l.b16 %v3275
        %v3309 = vunpack.c.l.b16 %v3276
        %v3310 = vunpack.c.l.b16 %v3277
        %v3311 = vunpack.c.l.b16 %v3278
        %v3312 = vunpack.c.l.b16 %v3279
        %v3313 = vunpack.c.l.b16 %v3280
        %v3314 = vunpack.c.l.b16 %v3281
        %v3315 = vunpack.c.l.b16 %v3282
        %v3316 = vunpack.c.l.b16 %v3283
        %v3317 = vunpack.c.l.b16 %v3284
        %v3318 = vpack.c.b16 %v3303, %v3302
        %v3319 = vpack.c.b16 %v3305, %v3304
        %v3320 = vpack.c.b16 %v3307, %v3306
        %v3321 = vpack.c.b16 %v3309, %v3308
        %v3322 = vpack.c.b16 %v3311, %v3310
        %v3323 = vpack.c.b16 %v3313, %v3312
        %v3324 = vpack.c.b16 %v3315, %v3314
        %v3325 = vpack.c.b16 %v3317, %v3316
        %3334 = vmatprep.subr.bf16.mxu0 0
        %3335 = vmatpush1.bf16.msra.mxu0 %v3318
        %3336 = vmatprep.subr.bf16.mxu0 0
        %3337 = vmatpush1.bf16.msra.mxu0 %v3319
        %3338 = vmatprep.subr.bf16.mxu0 0
        %3339 = vmatpush1.bf16.msra.mxu0 %v3320
        %3340 = vmatprep.subr.bf16.mxu0 0
        %3341 = vmatpush1.bf16.msra.mxu0 %v3321
        %3342 = vmatprep.subr.bf16.mxu0 0
        %3343 = vmatpush1.bf16.msra.mxu0 %v3322
        %3344 = vmatprep.subr.bf16.mxu0 0
        %3345 = vmatpush1.bf16.msra.mxu0 %v3323
        %3346 = vmatprep.subr.bf16.mxu0 0
        %3347 = vmatpush1.bf16.msra.mxu0 %v3324
        %3348 = vmatprep.subr.bf16.mxu0 0
        %3349 = vmatpush1.bf16.msra.mxu0 %v3325
        %3350 = vmatprep.subr.bf16.mxu0 0
        %3351 = vmatpush1.bf16.msra.mxu0 0
        %3352 = vmatprep.subr.bf16.mxu0 0
        %3353 = vmatpush1.bf16.msra.mxu0 0
        %3354 = vmatprep.subr.bf16.mxu0 0
        %3355 = vmatpush1.bf16.msra.mxu0 0
        %3356 = vmatprep.subr.bf16.mxu0 0
        %3357 = vmatpush1.bf16.msra.mxu0 0
        %3358 = vmatprep.subr.bf16.mxu0 0
        %3359 = vmatpush1.bf16.msra.mxu0 0
        %3360 = vmatprep.subr.bf16.mxu0 0
        %3361 = vmatpush1.bf16.msra.mxu0 0
        %3362 = vmatprep.subr.bf16.mxu0 0
        %3363 = vmatpush1.bf16.msra.mxu0 0
        %3364 = vmatprep.subr.bf16.mxu0 0
        %3365 = vmatpush1.bf16.msra.mxu0 0
        %3366 = vmatprep.mubr.bf16.mxu0 0
        %3367 = vmatmul.mubr.bf16.gmra.mrb[0].mxu0 %v3268
        %v3368 = vpop.f32.mrb[0].mxu0
        %v3369 = vadd.f32 %v3285, %v3368
        %v3370 = vpop.f32.mrb[0].mxu0
        %v3371 = vpop.f32.mrb[0].mxu0
        %v3372 = vpop.f32.mrb[0].mxu0
        %3373 = vdwg.mxu0
        %3374 = vst [vmem:[%s594] sm:$0x1] %v3369
        %s3375 = sand.u32 %s445, 1
        %s3376 = scalar_lea.sflag [#allocation3], %s3375
        %s3377 = sand.u32 %s445, 1
        %s3378 = scalar_lea.vmem [#allocation2], %s3377
        // Predicated region
        $region97: #{net_forward.1} parent=95 // pred_check
          %p3379 = pneg %p455
        $region98: #{net_forward.1} parent=95 // pred_check_branch
          %3381 = sbr.rel (%p3379) target = $region100
        $region99: #{net_forward.1} parent=95 // pred_region
          %s3383 = ssub.s32 16, 16
          %3384 = vsyncadd %s3376, %s3383
          %s3385 = smul.addr %s33, 16
          %s3386 = scalar_lea.hbm %s19, %s3385
          %s3388 = sshll.u32 %s3378, 4
          %s3389 = int_to_ptr.vmem [resolvable:$true] %s3388
          %3391 = dma.vmem_to_hbm [thread:$0]  %s3389, 16, %s3386, %s3376
        $region100: #{net_forward.1} parent=95 // pred_fallthru
          _
      $region96: #{net_forward.1} parent=5 // pred_fallthru
        _
      %p3392 = scmp.le.s32.totalorder 2, %s28
      // Predicated region
      $region101: #{net_forward.1} parent=5 // pred_check
        %p3393 = pneg %p3392
      $region102: #{net_forward.1} parent=5 // pred_check_branch
        %3395 = sbr.rel (%p3393) target = $region104
      $region103: #{net_forward.1} parent=5 // pred_region
        %s3396 = ssub.s32 %s28, 2
        // Predicated region
        $region105: #{net_forward.1} parent=103 // pred_check
          %p3397 = pneg %p461
        $region106: #{net_forward.1} parent=103 // pred_check_branch
          %3399 = sbr.rel (%p3397) target = $region108
        $region107: #{net_forward.1} parent=103 // pred_region
          %s3400 = sand.u32 %s446, 1
          %s3401 = scalar_lea.sflag [#allocation3], %s3400
          %s3402 = sand.u32 %s446, 1
          %s3403 = scalar_lea.vmem [#allocation2], %s3402
          %3404 = dma.done %s3401, 16
        $region108: #{net_forward.1} parent=103 // pred_fallthru
          _
      $region104: #{net_forward.1} parent=5 // pred_fallthru
        _
    $region6: #{net_forward.1} parent=1 // loop_footer
      %s32 = sadd.s32 1, %s28
    $region7: #{net_forward.1} parent=1 // loop_footer_branch
      %27 = sbr.rel target = $region3
    $region8: #{net_forward.1} parent=1 // loop_exit
      _
    %3405 = vsyncpa [#allocation3], 1
    %s3406 = scalar_lea.sflag [#allocation3], 1
    %3407 = vsyncpa %s3406, 1

</llo_original>
